<compile_context>
chip_gen: v6e
topology: v6e:2x2x1
jax: 0.10.0
libtpu: 0.0.40
codegen_flags: <defaults>
</compile_context>

<pallas_src>
import functools

import jax
import jax.numpy as jnp
from jax import lax
from jax.experimental import pallas as pl
from jax.experimental.pallas import tpu as pltpu

LN_EPS = 1e-5
CLIP_MEAN = (0.48145466, 0.4578275, 0.40821073)
CLIP_STD = (0.26862954, 0.26130258, 0.27577711)


# --------------------------------------------------------------------------- #
# Small host-side helpers                                                      #
# --------------------------------------------------------------------------- #
@functools.lru_cache(maxsize=None)
def _vmem_limit_bytes() -> int:
    """Generation-dependent VMEM limit (static int at trace time)."""
    phys = 128 * 1024 * 1024
    try:
        info = pltpu.get_tpu_info()
        phys = int(getattr(info, "vmem_capacity_bytes", phys))
    except Exception:
        pass
    if phys >= 128 * 1024 * 1024:          # v5e / v6e (128 MiB physical)
        return 100 * 1024 * 1024
    return min(48 * 1024 * 1024, (phys * 3) // 4)   # v7x (64 MiB physical)


def _pick_tile(n, candidates):
    """Largest candidate that divides n, else n itself (single block)."""
    for c in candidates:
        if n % c == 0:
            return c
    return n


def _pick_ff_chunk(ffn):
    """FF hidden-dim chunk: largest of 512/256/128 strictly below ffn."""
    for c in (512, 256, 128):
        if c < ffn and ffn % c == 0:
            return c
    return ffn


# --------------------------------------------------------------------------- #
# In-kernel helpers                                                            #
# --------------------------------------------------------------------------- #
def _layer_norm(x, g, b):
    mu = jnp.mean(x, axis=-1, keepdims=True)
    xc = x - mu
    var = jnp.mean(xc * xc, axis=-1, keepdims=True)
    return xc * lax.rsqrt(var + LN_EPS) * g + b


# --------------------------------------------------------------------------- #
# Kernels                                                                      #
# --------------------------------------------------------------------------- #
def patch_embed_kernel(x_ref, w_ref, b_ref, o_ref):
    # (TM, Kp) bf16 @ (Kp, W) bf16 -> f32, plus folded-normalization bias.
    o_ref[...] = (
        jnp.dot(x_ref[...], w_ref[...], preferred_element_type=jnp.float32)
        + b_ref[...]
    )


def vit_stack_kernel(tok_ref, pos_ref, lnpre_g_ref, lnpre_b_ref,
                     ln1g_ref, ln1b_ref, wqkv_ref, bqkv_ref, wo_ref, bo_ref,
                     ln2g_ref, ln2b_ref, wfc_ref, bfc_ref, wpj_ref, bpj_ref,
                     lnpost_g_ref, lnpost_b_ref, proj_ref,
                     emb_ref, xs_ref, ctx_ref, ffacc_ref,
                     *, n_heads, ff_chunk):
    """Grid = (batch_chunk, layer, batch_in_chunk).

    Weights are indexed by the layer axis only (re-used across the batch);
    xs_ref holds the residual streams of all batch elements of the chunk.
    """
    layer = pl.program_id(1)
    n_layers = pl.num_programs(1)
    b = pl.program_id(2)

    # ---- first layer step for this batch element: tokens + pos, ln_pre ----
    @pl.when(layer == 0)
    def _init():
        x0 = tok_ref[b] + pos_ref[0]                              # (S, W)
        xs_ref[b] = _layer_norm(x0, lnpre_g_ref[0], lnpre_b_ref[0])

    x = xs_ref[b]                                                 # (S, W) f32
    seq, width = x.shape
    dh = width // n_heads

    # ---- multi-head self-attention (pre-LN, residual) ----
    h = _layer_norm(x, ln1g_ref[0], ln1b_ref[0])
    qkv = jnp.dot(h.astype(jnp.bfloat16), wqkv_ref[0],
                  preferred_element_type=jnp.float32) + bqkv_ref[0]   # (S, 3W)
    q = qkv[:, 0 * width:1 * width] * (dh ** -0.5)   # scale folded into q once
    k = qkv[:, 1 * width:2 * width]
    v = qkv[:, 2 * width:3 * width]
    # Static head loop; each head writes straight into the (S, W) bf16 scratch
    # (no all-heads-live list / lane concat).
    for hd in range(n_heads):
        sl = slice(hd * dh, (hd + 1) * dh)
        qh = q[:, sl].astype(jnp.bfloat16)
        kh = k[:, sl].astype(jnp.bfloat16)
        vh = v[:, sl].astype(jnp.bfloat16)
        s = lax.dot_general(qh, kh, (((1,), (1,)), ((), ())),
                            preferred_element_type=jnp.float32)
        s = s - jnp.max(s, axis=-1, keepdims=True)
        p = jnp.exp(s)
        p = p * pl.reciprocal(jnp.sum(p, axis=-1, keepdims=True), approx=True)
        ctx_ref[:, sl] = jnp.dot(p.astype(jnp.bfloat16), vh,
                                 preferred_element_type=jnp.float32
                                 ).astype(jnp.bfloat16)
    attn = jnp.dot(ctx_ref[...], wo_ref[0],
                   preferred_element_type=jnp.float32) + bo_ref[0]
    x = x + attn

    # ---- MLP with QuickGELU (CLIP), residual; hidden dim tiled ----
    h2 = _layer_norm(x, ln2g_ref[0], ln2b_ref[0]).astype(jnp.bfloat16)
    ffn = wfc_ref.shape[2]
    n_ch = ffn // ff_chunk
    if n_ch == 1:
        f = jnp.dot(h2, wfc_ref[0], preferred_element_type=jnp.float32) + bfc_ref[0]
        f = f * jax.nn.sigmoid(1.702 * f.astype(jnp.bfloat16)).astype(jnp.float32)
        x = x + jnp.dot(f.astype(jnp.bfloat16), wpj_ref[0],
                        preferred_element_type=jnp.float32) + bpj_ref[0]
    else:
        ffacc_ref[...] = x          # accumulate residual + FF chunks

        @pl.loop(0, n_ch)
        def _ff(c):
            c0 = pl.multiple_of(c * ff_chunk, ff_chunk)
            f = jnp.dot(h2, wfc_ref[0, :, pl.ds(c0, ff_chunk)],
                        preferred_element_type=jnp.float32)
            f = f + bfc_ref[0, :, pl.ds(c0, ff_chunk)]
            f = f * jax.nn.sigmoid(1.702 * f.astype(jnp.bfloat16)
                                   ).astype(jnp.float32)
            ffacc_ref[...] += jnp.dot(f.astype(jnp.bfloat16),
                                      wpj_ref[0, pl.ds(c0, ff_chunk), :],
                                      preferred_element_type=jnp.float32)
        x = ffacc_ref[...] + bpj_ref[0]
    xs_ref[b] = x

    # ---- last layer step: ln_post on CLS token + output projection ----
    @pl.when(layer == n_layers - 1)
    def _head():
        cls = _layer_norm(x[0:1, :], lnpost_g_ref[0], lnpost_b_ref[0])   # (1, W)
        emb_ref[b] = jnp.dot(cls.astype(jnp.bfloat16), proj_ref[...],
                             preferred_element_type=jnp.float32)         # (1, E)


# --------------------------------------------------------------------------- #
# Parameters (synthetic, deterministic — clip.load replaced by PRNG init)      #
# --------------------------------------------------------------------------- #
def init_params(key, *, width, heads, layers, patch, resolution, embed_dim):
    del heads
    n_patches = (resolution // patch) ** 2
    seq = n_patches + 1
    ks = jax.random.split(key, 8 + layers)
    s = 0.02
    p = {}
    conv_w = s * jax.random.normal(ks[0], (width, 3, patch, patch), jnp.float32)
    p['patch_w'] = conv_w.transpose(2, 3, 1, 0).reshape(patch * patch * 3, width)
    p['cls'] = s * jax.random.normal(ks[1], (width,), jnp.float32)
    p['pos'] = s * jax.random.normal(ks[2], (seq, width), jnp.float32)
    p['ln_pre_g'] = jnp.ones((width,), jnp.float32)
    p['ln_pre_b'] = jnp.zeros((width,), jnp.float32)
    p['ln_post_g'] = jnp.ones((width,), jnp.float32)
    p['ln_post_b'] = jnp.zeros((width,), jnp.float32)
    p['proj'] = s * jax.random.normal(ks[3], (width, embed_dim), jnp.float32)
    layer_params = []
    for li in range(layers):
        lk = jax.random.split(ks[8 + li], 6)
        layer_params.append(dict(
            ln1_g=jnp.ones((width,), jnp.float32),
            ln1_b=jnp.zeros((width,), jnp.float32),
            w_qkv=s * jax.random.normal(lk[0], (width, 3 * width), jnp.float32),
            b_qkv=s * jax.random.normal(lk[1], (3 * width,), jnp.float32),
            w_o=s * jax.random.normal(lk[2], (width, width), jnp.float32),
            b_o=jnp.zeros((width,), jnp.float32),
            ln2_g=jnp.ones((width,), jnp.float32),
            ln2_b=jnp.zeros((width,), jnp.float32),
            w_fc=s * jax.random.normal(lk[3], (width, 4 * width), jnp.float32),
            b_fc=s * jax.random.normal(lk[4], (4 * width,), jnp.float32),
            w_proj=s * jax.random.normal(lk[5], (4 * width, width), jnp.float32),
            b_proj=jnp.zeros((width,), jnp.float32),
        ))
    p['layers'] = layer_params
    return p


def prepare_params(params):
    """Fold CLIP normalization into the patch embed, pad K to a 128 multiple,
    stack per-layer weights along a leading L dim, cast matmul weights to bf16."""
    width = params['patch_w'].shape[1]
    K = params['patch_w'].shape[0]
    mean = jnp.asarray(CLIP_MEAN, jnp.float32)
    std = jnp.asarray(CLIP_STD, jnp.float32)
    s_c = 0.5 / std                              # normalize(x) = x*s_c + t_c
    t_c = (0.5 - mean) / std
    ch = jnp.arange(K) % 3                       # channel of row r (order i, j, c)
    w_fold = params['patch_w'] * s_c[ch][:, None]              # (K, W) f32
    b_fold = t_c[ch] @ params['patch_w']                       # (W,)  f32
    Kp = ((K + 127) // 128) * 128
    w_fold = jnp.pad(w_fold, ((0, Kp - K), (0, 0)))

    stack = lambda name: jnp.stack([lp[name] for lp in params['layers']], axis=0)
    L = len(params['layers'])
    prep = {
        'patch_w': w_fold.astype(jnp.bfloat16),                  # (Kp, W)
        'patch_b': b_fold.reshape(1, width),                     # f32
        'cls': params['cls'],
        'pos': params['pos'][None],                              # (1, S, W)
        'ln_pre_g': params['ln_pre_g'].reshape(1, 1, width),
        'ln_pre_b': params['ln_pre_b'].reshape(1, 1, width),
        'ln_post_g': params['ln_post_g'].reshape(1, 1, width),
        'ln_post_b': params['ln_post_b'].reshape(1, 1, width),
        'proj': params['proj'].astype(jnp.bfloat16),             # (W, E)
        'ln1_g': stack('ln1_g').reshape(L, 1, width),
        'ln1_b': stack('ln1_b').reshape(L, 1, width),
        'w_qkv': stack('w_qkv').astype(jnp.bfloat16),            # (L, W, 3W)
        'b_qkv': stack('b_qkv').reshape(L, 1, 3 * width),
        'w_o': stack('w_o').astype(jnp.bfloat16),                # (L, W, W)
        'b_o': stack('b_o').reshape(L, 1, width),
        'ln2_g': stack('ln2_g').reshape(L, 1, width),
        'ln2_b': stack('ln2_b').reshape(L, 1, width),
        'w_fc': stack('w_fc').astype(jnp.bfloat16),              # (L, W, 4W)
        'b_fc': stack('b_fc').reshape(L, 1, 4 * width),
        'w_pj': stack('w_proj').astype(jnp.bfloat16),            # (L, 4W, W)
        'b_pj': stack('b_proj').reshape(L, 1, width),
    }
    return prep


# --------------------------------------------------------------------------- #
# Forward pass (Pallas)                                                        #
# --------------------------------------------------------------------------- #
@functools.partial(jax.jit, static_argnames=('resolution', 'patch', 'heads'))
def frozen_clip_image_embedder(x_nchw, prep, *, resolution, patch, heads):
    B = x_nchw.shape[0]
    width = prep['w_qkv'].shape[1]
    n_layers = prep['w_qkv'].shape[0]
    ffn = prep['w_fc'].shape[2]
    embed_dim = prep['proj'].shape[1]
    vmem_limit = _vmem_limit_bytes()

    # ---- preprocess (glue): bicubic resize; normalization folded into patch W/b.
    # TODO(synk): kornia resize uses align_corners=True; jax.image.resize has no
    # align_corners knob, so border sample positions differ slightly.
    x = jax.image.resize(x_nchw, (B, 3, resolution, resolution), method='bicubic')
    x = jnp.transpose(x, (0, 2, 3, 1))                           # NHWC
    g = resolution // patch
    patches = x.reshape(B, g, patch, g, patch, 3).transpose(0, 1, 3, 2, 4, 5)
    patches = patches.reshape(B * g * g, patch * patch * 3)
    K = patches.shape[1]
    Kp = prep['patch_w'].shape[0]
    # Pad K to 128 multiple and cast to bf16 host-side (half the HBM read bytes).
    patches = jnp.pad(patches, ((0, 0), (0, Kp - K))).astype(jnp.bfloat16)

    # ---- patch embedding: Conv2d(stride=patch, no bias) as an M-tiled matmul ----
    M = B * g * g
    TM = _pick_tile(M, (256, 128, 64, 32, 16, 8))
    tokens = pl.pallas_call(
        patch_embed_kernel,
        out_shape=jax.ShapeDtypeStruct((M, width), jnp.float32),
        grid=(M // TM,),
        in_specs=[pl.BlockSpec((TM, Kp), lambda i: (i, 0)),
                  pl.BlockSpec((Kp, width), lambda i: (0, 0)),
                  pl.BlockSpec((1, width), lambda i: (0, 0))],
        out_specs=pl.BlockSpec((TM, width), lambda i: (i, 0)),
        compiler_params=pltpu.CompilerParams(
            dimension_semantics=("parallel",),
            vmem_limit_bytes=vmem_limit),
    )(patches, prep['patch_w'], prep['patch_b'])
    tokens = tokens.reshape(B, g * g, width)

    # ---- CLS token concat (glue) ----
    cls_tok = jnp.broadcast_to(prep['cls'].reshape(1, 1, width), (B, 1, width))
    tokens = jnp.concatenate([cls_tok, tokens], axis=1)          # (B, S, W)
    seq = tokens.shape[1]

    # ---- fused transformer stack: grid = (batch_chunks, layers, batch_in_chunk) ----
    ff_chunk = _pick_ff_chunk(ffn)
    n_chunks = 2 if (B % 2 == 0 and B >= 2) else 1   # v7x megacore split
    B_in = B // n_chunks

    perc = lambda c, l, b: (c, 0, 0)       # per-batch-chunk tensors
    perl = lambda c, l, b: (l, 0, 0)       # per-layer (stacked) weights
    cst = lambda c, l, b: (0, 0, 0)        # constant tensors

    in_specs = [
        pl.BlockSpec((B_in, seq, width), perc),                  # tokens
        pl.BlockSpec((1, seq, width), cst),                      # pos
        pl.BlockSpec((1, 1, width), cst),                        # ln_pre_g
        pl.BlockSpec((1, 1, width), cst),                        # ln_pre_b
        pl.BlockSpec((1, 1, width), perl),                       # ln1_g
        pl.BlockSpec((1, 1, width), perl),                       # ln1_b
        pl.BlockSpec((1, width, 3 * width), perl),               # w_qkv (bf16)
        pl.BlockSpec((1, 1, 3 * width), perl),                   # b_qkv
        pl.BlockSpec((1, width, width), perl),                   # w_o   (bf16)
        pl.BlockSpec((1, 1, width), perl),                       # b_o
        pl.BlockSpec((1, 1, width), perl),                       # ln2_g
        pl.BlockSpec((1, 1, width), perl),                       # ln2_b
        pl.BlockSpec((1, width, ffn), perl),                     # w_fc  (bf16)
        pl.BlockSpec((1, 1, ffn), perl),                         # b_fc
        pl.BlockSpec((1, ffn, width), perl),                     # w_pj  (bf16)
        pl.BlockSpec((1, 1, width), perl),                       # b_pj
        pl.BlockSpec((1, 1, width), cst),                        # ln_post_g
        pl.BlockSpec((1, 1, width), cst),                        # ln_post_b
        pl.BlockSpec((width, embed_dim), lambda c, l, b: (0, 0)),  # proj (bf16)
    ]
    out_specs = pl.BlockSpec((B_in, 1, embed_dim), perc)

    emb = pl.pallas_call(
        functools.partial(vit_stack_kernel, n_heads=heads, ff_chunk=ff_chunk),
        out_shape=jax.ShapeDtypeStruct((B, 1, embed_dim), jnp.float32),
        grid=(n_chunks, n_layers, B_in),
        in_specs=in_specs,
        out_specs=out_specs,
        scratch_shapes=[
            pltpu.VMEM((B_in, seq, width), jnp.float32),   # residual streams
            pltpu.VMEM((seq, width), jnp.bfloat16),        # attention ctx
            pltpu.VMEM((seq, width), jnp.float32),         # FF chunk accumulator
        ],
        compiler_params=pltpu.CompilerParams(
            dimension_semantics=("parallel", "arbitrary", "arbitrary"),
            vmem_limit_bytes=vmem_limit),
    )(tokens, prep['pos'], prep['ln_pre_g'], prep['ln_pre_b'],
      prep['ln1_g'], prep['ln1_b'], prep['w_qkv'], prep['b_qkv'],
      prep['w_o'], prep['b_o'], prep['ln2_g'], prep['ln2_b'],
      prep['w_fc'], prep['b_fc'], prep['w_pj'], prep['b_pj'],
      prep['ln_post_g'], prep['ln_post_b'], prep['proj'])
    return emb.reshape(B, embed_dim)


# --------------------------------------------------------------------------- #
# Pure-JAX reference (module-faithful math, matching bf16 matmul precision)    #
# --------------------------------------------------------------------------- #
def _ln_ref(x, g, b):
    mu = x.mean(-1, keepdims=True)
    var = ((x - mu) ** 2).mean(-1, keepdims=True)
    return (x - mu) / jnp.sqrt(var + LN_EPS) * g + b


def reference_forward(x_nchw, params, *, resolution, patch, heads):
    bf = lambda a: a.astype(jnp.bfloat16)
    mm = lambda a, b: jnp.matmul(bf(a), bf(b), preferred_element_type=jnp.float32)
    B = x_nchw.shape[0]
    width = params['patch_w'].shape[1]
    mean = jnp.asarray(CLIP_MEAN, jnp.float32)
    std = jnp.asarray(CLIP_STD, jnp.float32)
    x = jax.image.resize(x_nchw, (B, 3, resolution, resolution), method='bicubic')
    x = (x + 1.0) / 2.0
    x = (x - mean.reshape(1, 3, 1, 1)) / std.reshape(1, 3, 1, 1)
    x = jnp.transpose(x, (0, 2, 3, 1))
    g = resolution // patch
    patches = x.reshape(B, g, patch, g, patch, 3).transpose(0, 1, 3, 2, 4, 5)
    patches = patches.reshape(B, g * g, patch * patch * 3)
    tok = mm(patches, params['patch_w'])
    cls_tok = jnp.broadcast_to(params['cls'].reshape(1, 1, width), (B, 1, width))
    tok = jnp.concatenate([cls_tok, tok], axis=1) + params['pos'][None]
    tok = _ln_ref(tok, params['ln_pre_g'], params['ln_pre_b'])
    dh = width // heads
    for lp in params['layers']:
        h = _ln_ref(tok, lp['ln1_g'], lp['ln1_b'])
        qkv = mm(h, lp['w_qkv']) + lp['b_qkv']
        q, k, v = jnp.split(qkv, 3, axis=-1)
        sh = lambda t: t.reshape(B, -1, heads, dh).transpose(0, 2, 1, 3)
        qh, kh, vh = sh(q), sh(k), sh(v)
        s = jnp.einsum('bhqd,bhkd->bhqk', bf(qh), bf(kh),
                       preferred_element_type=jnp.float32) * (dh ** -0.5)
        p = jax.nn.softmax(s, axis=-1)
        ctx = jnp.einsum('bhqk,bhkd->bhqd', bf(p), bf(vh),
                         preferred_element_type=jnp.float32)
        ctx = ctx.transpose(0, 2, 1, 3).reshape(B, -1, width)
        tok = tok + mm(ctx, lp['w_o']) + lp['b_o']
        h2 = _ln_ref(tok, lp['ln2_g'], lp['ln2_b'])
        ff = mm(h2, lp['w_fc']) + lp['b_fc']
        ff = ff * jax.nn.sigmoid(1.702 * ff)
        tok = tok + mm(ff, lp['w_proj']) + lp['b_proj']
    cls_out = _ln_ref(tok[:, 0, :], params['ln_post_g'], params['ln_post_b'])
    return jnp.matmul(bf(cls_out), bf(params['proj']),
                      preferred_element_type=jnp.float32)


# --------------------------------------------------------------------------- #
if __name__ == "__main__":
    key = jax.random.PRNGKey(0)
    kx, kp = jax.random.split(key)

    # Small config consistent with a scaled-down CLIP ViT.  width=64 so the
    # FF hidden dim (256) exercises the chunked MLP path (2 chunks of 128),
    # and B=4 so the batch-chunk axis (2) and dynamic in-chunk batch indexing
    # are both exercised.
    cfg = dict(width=64, heads=4, layers=2, patch=8, resolution=32, embed_dim=16)
    B, C, H, W_in = 4, 3, 16, 16
    x = jax.random.uniform(kx, (B, C, H, W_in), jnp.float32, -1.0, 1.0)  # NCHW in [-1,1]

    params = init_params(kp, **cfg)
    prep = prepare_params(params)

    out = frozen_clip_image_embedder(x, prep,
                                     resolution=cfg['resolution'],
                                     patch=cfg['patch'],
                                     heads=cfg['heads'])
    out = jax.block_until_ready(out)

    ref = reference_forward(x, params,
                            resolution=cfg['resolution'],
                            patch=cfg['patch'],
                            heads=cfg['heads'])

    assert out.shape == (B, cfg['embed_dim'])
    assert bool(jnp.all(jnp.isfinite(out)))
    max_err = float(jnp.max(jnp.abs(out - ref)))
    assert max_err < 1e-2, f"mismatch vs reference: {max_err}"
    print("KERNEL_OK")
</pallas_src>

<mosaic_0001>
module attributes {stable_mosaic.version = 11 : i64} {
  func.func @patch_embed_kernel(%arg0: i32, %arg1: memref<64x256xbf16, #tpu.memory_space<vmem>>, %arg2: memref<256x64xbf16, #tpu.memory_space<vmem>>, %arg3: memref<1x64xf32, #tpu.memory_space<vmem>>, %arg4: memref<64x64xf32, #tpu.memory_space<vmem>>) attributes {dimension_semantics = [#tpu.dimension_semantics<parallel>], iteration_bounds = array<i64: 1>, scalar_prefetch = 0 : i64, scratch_operands = 0 : i64, tpu.core_type = #tpu.core_type<tc>, window_params = [{transform_indices = @transform_0, window_bounds = array<i64: 64, 256>}, {pipeline_mode = #tpu.pipeline_mode<synchronous>, transform_indices = @transform_1, window_bounds = array<i64: 256, 64>}, {pipeline_mode = #tpu.pipeline_mode<synchronous>, transform_indices = @transform_2, window_bounds = array<i64: 1, 64>}, {transform_indices = @transform_3, window_bounds = array<i64: 64, 64>}]} {
    %c0 = arith.constant 0 : index
    %c0_0 = arith.constant 0 : index
    %0 = vector.load %arg1[%c0, %c0_0] : memref<64x256xbf16, #tpu.memory_space<vmem>>, vector<64x256xbf16>
    %c0_1 = arith.constant 0 : index
    %c0_2 = arith.constant 0 : index
    %1 = vector.load %arg2[%c0_1, %c0_2] : memref<256x64xbf16, #tpu.memory_space<vmem>>, vector<256x64xbf16>
    %cst = arith.constant dense<0.000000e+00> : vector<64x64xf32>
    %2 = tpu.matmul %0, %1, %cst {dimension_numbers = #tpu.dot_dimension_numbers<[1], [0], [0], [1], [0, 0, 1, 1], [], []>} : vector<64x256xbf16>, vector<256x64xbf16>, vector<64x64xf32> -> vector<64x64xf32>
    %c0_3 = arith.constant 0 : index
    %c0_4 = arith.constant 0 : index
    %3 = vector.load %arg3[%c0_3, %c0_4] : memref<1x64xf32, #tpu.memory_space<vmem>>, vector<1x64xf32>
    %4 = vector.broadcast %3 : vector<1x64xf32> to vector<64x64xf32>
    %5 = arith.addf %2, %4 : vector<64x64xf32>
    %c0_5 = arith.constant 0 : index
    %c0_6 = arith.constant 0 : index
    %6 = vector.load %arg4[%c0_5, %c0_6] : memref<64x64xf32, #tpu.memory_space<vmem>>, vector<64x64xf32>
    tpu.vector_store %arg4[%c0_5, %c0_6], %5 {strides = array<i32>} : memref<64x64xf32, #tpu.memory_space<vmem>>, vector<64x64xf32>,
    return
  }
  func.func @transform_0(%arg0: i32) -> (i32, i32) {
    %c0_i32 = arith.constant 0 : i32
    %c0_i32_0 = arith.constant 0 : i32
    return %arg0, %c0_i32 : i32, i32
  }
  func.func @transform_1(%arg0: i32) -> (i32, i32) {
    %c0_i32 = arith.constant 0 : i32
    %c0_i32_0 = arith.constant 0 : i32
    %c0_i32_1 = arith.constant 0 : i32
    return %c0_i32, %c0_i32_0 : i32, i32
  }
  func.func @transform_2(%arg0: i32) -> (i32, i32) {
    %c0_i32 = arith.constant 0 : i32
    %c0_i32_0 = arith.constant 0 : i32
    %c0_i32_1 = arith.constant 0 : i32
    return %c0_i32, %c0_i32_0 : i32, i32
  }
  func.func @transform_3(%arg0: i32) -> (i32, i32) {
    %c0_i32 = arith.constant 0 : i32
    %c0_i32_0 = arith.constant 0 : i32
    return %arg0, %c0_i32 : i32, i32
  }
}

module attributes {stable_mosaic.version = 11 : i64} {
  func.func @vit_stack_kernel(%arg0: i32, %arg1: i32, %arg2: i32, %arg3: memref<2x17x64xf32, #tpu.memory_space<vmem>>, %arg4: memref<1x17x64xf32, #tpu.memory_space<vmem>>, %arg5: memref<1x1x64xf32, #tpu.memory_space<vmem>>, %arg6: memref<1x1x64xf32, #tpu.memory_space<vmem>>, %arg7: memref<1x1x64xf32, #tpu.memory_space<vmem>>, %arg8: memref<1x1x64xf32, #tpu.memory_space<vmem>>, %arg9: memref<1x64x192xbf16, #tpu.memory_space<vmem>>, %arg10: memref<1x1x192xf32, #tpu.memory_space<vmem>>, %arg11: memref<1x64x64xbf16, #tpu.memory_space<vmem>>, %arg12: memref<1x1x64xf32, #tpu.memory_space<vmem>>, %arg13: memref<1x1x64xf32, #tpu.memory_space<vmem>>, %arg14: memref<1x1x64xf32, #tpu.memory_space<vmem>>, %arg15: memref<1x64x256xbf16, #tpu.memory_space<vmem>>, %arg16: memref<1x1x256xf32, #tpu.memory_space<vmem>>, %arg17: memref<1x256x64xbf16, #tpu.memory_space<vmem>>, %arg18: memref<1x1x64xf32, #tpu.memory_space<vmem>>, %arg19: memref<1x1x64xf32, #tpu.memory_space<vmem>>, %arg20: memref<1x1x64xf32, #tpu.memory_space<vmem>>, %arg21: memref<64x16xbf16, #tpu.memory_space<vmem>>, %arg22: memref<2x1x16xf32, #tpu.memory_space<vmem>>, %arg23: memref<2x17x64xf32, #tpu.memory_space<vmem>>, %arg24: memref<17x64xbf16, #tpu.memory_space<vmem>>, %arg25: memref<17x64xf32, #tpu.memory_space<vmem>>) attributes {dimension_semantics = [#tpu.dimension_semantics<parallel>, #tpu.dimension_semantics<arbitrary>, #tpu.dimension_semantics<arbitrary>], iteration_bounds = array<i64: 2, 2, 2>, scalar_prefetch = 0 : i64, scratch_operands = 3 : i64, tpu.core_type = #tpu.core_type<tc>, window_params = [{transform_indices = @transform_0, window_bounds = array<i64: 2, 17, 64>}, {pipeline_mode = #tpu.pipeline_mode<synchronous>, transform_indices = @transform_1, window_bounds = array<i64: 1, 17, 64>}, {pipeline_mode = #tpu.pipeline_mode<synchronous>, transform_indices = @transform_2, window_bounds = array<i64: 1, 1, 64>}, {pipeline_mode = #tpu.pipeline_mode<synchronous>, transform_indices = @transform_3, window_bounds = array<i64: 1, 1, 64>}, {transform_indices = @transform_4, window_bounds = array<i64: 1, 1, 64>}, {transform_indices = @transform_5, window_bounds = array<i64: 1, 1, 64>}, {transform_indices = @transform_6, window_bounds = array<i64: 1, 64, 192>}, {transform_indices = @transform_7, window_bounds = array<i64: 1, 1, 192>}, {transform_indices = @transform_8, window_bounds = array<i64: 1, 64, 64>}, {transform_indices = @transform_9, window_bounds = array<i64: 1, 1, 64>}, {transform_indices = @transform_10, window_bounds = array<i64: 1, 1, 64>}, {transform_indices = @transform_11, window_bounds = array<i64: 1, 1, 64>}, {transform_indices = @transform_12, window_bounds = array<i64: 1, 64, 256>}, {transform_indices = @transform_13, window_bounds = array<i64: 1, 1, 256>}, {transform_indices = @transform_14, window_bounds = array<i64: 1, 256, 64>}, {transform_indices = @transform_15, window_bounds = array<i64: 1, 1, 64>}, {pipeline_mode = #tpu.pipeline_mode<synchronous>, transform_indices = @transform_16, window_bounds = array<i64: 1, 1, 64>}, {pipeline_mode = #tpu.pipeline_mode<synchronous>, transform_indices = @transform_17, window_bounds = array<i64: 1, 1, 64>}, {pipeline_mode = #tpu.pipeline_mode<synchronous>, transform_indices = @transform_18, window_bounds = array<i64: 64, 16>}, {transform_indices = @transform_19, window_bounds = array<i64: 2, 1, 16>}]} {
    %c0_i32 = arith.constant 0 : i32
    %0 = arith.cmpi eq, %arg1, %c0_i32 : i32
    %1 = arith.extui %0 : i1 to i32
    %c0_i32_0 = arith.constant 0 : i32
    %2 = arith.cmpi ne, %1, %c0_i32_0 : i32
    scf.if %2 {
      %175 = arith.index_cast %arg2 : i32 to index
      %c0_74 = arith.constant 0 : index
      %c0_75 = arith.constant 0 : index
      %176 = vector.load %arg3[%175, %c0_74, %c0_75] : memref<2x17x64xf32, #tpu.memory_space<vmem>>, vector<1x17x64xf32>
      %177 = vector.shape_cast %176 : vector<1x17x64xf32> to vector<17x64xf32>
      %c0_76 = arith.constant 0 : index
      %c0_77 = arith.constant 0 : index
      %c0_78 = arith.constant 0 : index
      %178 = vector.load %arg4[%c0_76, %c0_77, %c0_78] : memref<1x17x64xf32, #tpu.memory_space<vmem>>, vector<1x17x64xf32>
      %179 = vector.shape_cast %178 : vector<1x17x64xf32> to vector<17x64xf32>
      %180 = arith.addf %177, %179 : vector<17x64xf32>
      %c0_79 = arith.constant 0 : index
      %c0_80 = arith.constant 0 : index
      %c0_81 = arith.constant 0 : index
      %181 = vector.load %arg5[%c0_79, %c0_80, %c0_81] : memref<1x1x64xf32, #tpu.memory_space<vmem>>, vector<1x1x64xf32>
      %182 = vector.shape_cast %181 : vector<1x1x64xf32> to vector<1x64xf32>
      %c0_82 = arith.constant 0 : index
      %c0_83 = arith.constant 0 : index
      %c0_84 = arith.constant 0 : index
      %183 = vector.load %arg6[%c0_82, %c0_83, %c0_84] : memref<1x1x64xf32, #tpu.memory_space<vmem>>, vector<1x1x64xf32>
      %184 = vector.shape_cast %183 : vector<1x1x64xf32> to vector<1x64xf32>
      %cst_85 = arith.constant dense<0.000000e+00> : vector<17xf32>
      %185 = vector.multi_reduction <add>, %180, %cst_85 [1] : vector<17x64xf32> to vector<17xf32>
      %186 = vector.shape_cast %185 : vector<17xf32> to vector<17x1xf32>
      %cst_86 = arith.constant 6.400000e+01 : f32
      %187 = vector.broadcast %cst_86 : f32 to vector<17x1xf32>
      %188 = arith.divf %186, %187 : vector<17x1xf32>
      %189 = vector.broadcast %188 : vector<17x1xf32> to vector<17x64xf32>
      %190 = arith.subf %180, %189 : vector<17x64xf32>
      %191 = arith.mulf %190, %190 : vector<17x64xf32>
      %cst_87 = arith.constant dense<0.000000e+00> : vector<17xf32>
      %192 = vector.multi_reduction <add>, %191, %cst_87 [1] : vector<17x64xf32> to vector<17xf32>
      %193 = vector.shape_cast %192 : vector<17xf32> to vector<17x1xf32>
      %cst_88 = arith.constant 6.400000e+01 : f32
      %194 = vector.broadcast %cst_88 : f32 to vector<17x1xf32>
      %195 = arith.divf %193, %194 : vector<17x1xf32>
      %cst_89 = arith.constant 9.99999974E-6 : f32
      %196 = vector.broadcast %cst_89 : f32 to vector<17x1xf32>
      %197 = arith.addf %195, %196 : vector<17x1xf32>
      %198 = math.rsqrt %197 : vector<17x1xf32>
      %199 = vector.broadcast %198 : vector<17x1xf32> to vector<17x64xf32>
      %200 = arith.mulf %190, %199 : vector<17x64xf32>
      %201 = vector.broadcast %182 : vector<1x64xf32> to vector<17x64xf32>
      %202 = arith.mulf %200, %201 : vector<17x64xf32>
      %203 = vector.broadcast %184 : vector<1x64xf32> to vector<17x64xf32>
      %204 = arith.addf %202, %203 : vector<17x64xf32>
      %205 = arith.index_cast %arg2 : i32 to index
      %c0_90 = arith.constant 0 : index
      %c0_91 = arith.constant 0 : index
      %206 = vector.load %arg23[%205, %c0_90, %c0_91] : memref<2x17x64xf32, #tpu.memory_space<vmem>>, vector<1x17x64xf32>
      %207 = vector.shape_cast %206 : vector<1x17x64xf32> to vector<17x64xf32>
      %208 = vector.shape_cast %204 : vector<17x64xf32> to vector<1x17x64xf32>
      tpu.vector_store %arg23[%205, %c0_90, %c0_91], %208 {strides = array<i32>} : memref<2x17x64xf32, #tpu.memory_space<vmem>>, vector<1x17x64xf32>,
    } else {
    }
    %3 = arith.index_cast %arg2 : i32 to index
    %c0 = arith.constant 0 : index
    %c0_1 = arith.constant 0 : index
    %4 = vector.load %arg23[%3, %c0, %c0_1] : memref<2x17x64xf32, #tpu.memory_space<vmem>>, vector<1x17x64xf32>
    %5 = vector.shape_cast %4 : vector<1x17x64xf32> to vector<17x64xf32>
    %c0_2 = arith.constant 0 : index
    %c0_3 = arith.constant 0 : index
    %c0_4 = arith.constant 0 : index
    %6 = vector.load %arg7[%c0_2, %c0_3, %c0_4] : memref<1x1x64xf32, #tpu.memory_space<vmem>>, vector<1x1x64xf32>
    %7 = vector.shape_cast %6 : vector<1x1x64xf32> to vector<1x64xf32>
    %c0_5 = arith.constant 0 : index
    %c0_6 = arith.constant 0 : index
    %c0_7 = arith.constant 0 : index
    %8 = vector.load %arg8[%c0_5, %c0_6, %c0_7] : memref<1x1x64xf32, #tpu.memory_space<vmem>>, vector<1x1x64xf32>
    %9 = vector.shape_cast %8 : vector<1x1x64xf32> to vector<1x64xf32>
    %cst = arith.constant dense<0.000000e+00> : vector<17xf32>
    %10 = vector.multi_reduction <add>, %5, %cst [1] : vector<17x64xf32> to vector<17xf32>
    %11 = vector.shape_cast %10 : vector<17xf32> to vector<17x1xf32>
    %cst_8 = arith.constant 6.400000e+01 : f32
    %12 = vector.broadcast %cst_8 : f32 to vector<17x1xf32>
    %13 = arith.divf %11, %12 : vector<17x1xf32>
    %14 = vector.broadcast %13 : vector<17x1xf32> to vector<17x64xf32>
    %15 = arith.subf %5, %14 : vector<17x64xf32>
    %16 = arith.mulf %15, %15 : vector<17x64xf32>
    %cst_9 = arith.constant dense<0.000000e+00> : vector<17xf32>
    %17 = vector.multi_reduction <add>, %16, %cst_9 [1] : vector<17x64xf32> to vector<17xf32>
    %18 = vector.shape_cast %17 : vector<17xf32> to vector<17x1xf32>
    %cst_10 = arith.constant 6.400000e+01 : f32
    %19 = vector.broadcast %cst_10 : f32 to vector<17x1xf32>
    %20 = arith.divf %18, %19 : vector<17x1xf32>
    %cst_11 = arith.constant 9.99999974E-6 : f32
    %21 = vector.broadcast %cst_11 : f32 to vector<17x1xf32>
    %22 = arith.addf %20, %21 : vector<17x1xf32>
    %23 = math.rsqrt %22 : vector<17x1xf32>
    %24 = vector.broadcast %23 : vector<17x1xf32> to vector<17x64xf32>
    %25 = arith.mulf %15, %24 : vector<17x64xf32>
    %26 = vector.broadcast %7 : vector<1x64xf32> to vector<17x64xf32>
    %27 = arith.mulf %25, %26 : vector<17x64xf32>
    %28 = vector.broadcast %9 : vector<1x64xf32> to vector<17x64xf32>
    %29 = arith.addf %27, %28 : vector<17x64xf32>
    %30 = arith.truncf %29 : vector<17x64xf32> to vector<17x64xbf16>
    %c0_12 = arith.constant 0 : index
    %c0_13 = arith.constant 0 : index
    %c0_14 = arith.constant 0 : index
    %31 = vector.load %arg9[%c0_12, %c0_13, %c0_14] : memref<1x64x192xbf16, #tpu.memory_space<vmem>>, vector<1x64x192xbf16>
    %32 = vector.shape_cast %31 : vector<1x64x192xbf16> to vector<64x192xbf16>
    %cst_15 = arith.constant dense<0.000000e+00> : vector<17x192xf32>
    %33 = tpu.matmul %30, %32, %cst_15 {dimension_numbers = #tpu.dot_dimension_numbers<[1], [0], [0], [1], [0, 0, 1, 1], [], []>} : vector<17x64xbf16>, vector<64x192xbf16>, vector<17x192xf32> -> vector<17x192xf32>
    %c0_16 = arith.constant 0 : index
    %c0_17 = arith.constant 0 : index
    %c0_18 = arith.constant 0 : index
    %34 = vector.load %arg10[%c0_16, %c0_17, %c0_18] : memref<1x1x192xf32, #tpu.memory_space<vmem>>, vector<1x1x192xf32>
    %35 = vector.shape_cast %34 : vector<1x1x192xf32> to vector<1x192xf32>
    %36 = vector.broadcast %35 : vector<1x192xf32> to vector<17x192xf32>
    %37 = arith.addf %33, %36 : vector<17x192xf32>
    %38 = vector.extract_strided_slice %37 {offsets = [0, 0], sizes = [17, 64], strides = [1, 1]} : vector<17x192xf32> to vector<17x64xf32>
    %cst_19 = arith.constant 2.500000e-01 : f32
    %39 = vector.broadcast %cst_19 : f32 to vector<17x64xf32>
    %40 = arith.mulf %38, %39 : vector<17x64xf32>
    %41 = vector.extract_strided_slice %37 {offsets = [0, 64], sizes = [17, 64], strides = [1, 1]} : vector<17x192xf32> to vector<17x64xf32>
    %42 = vector.extract_strided_slice %37 {offsets = [0, 128], sizes = [17, 64], strides = [1, 1]} : vector<17x192xf32> to vector<17x64xf32>
    %43 = vector.extract_strided_slice %40 {offsets = [0, 0], sizes = [17, 16], strides = [1, 1]} : vector<17x64xf32> to vector<17x16xf32>
    %44 = arith.truncf %43 : vector<17x16xf32> to vector<17x16xbf16>
    %45 = vector.extract_strided_slice %41 {offsets = [0, 0], sizes = [17, 16], strides = [1, 1]} : vector<17x64xf32> to vector<17x16xf32>
    %46 = arith.truncf %45 : vector<17x16xf32> to vector<17x16xbf16>
    %47 = vector.extract_strided_slice %42 {offsets = [0, 0], sizes = [17, 16], strides = [1, 1]} : vector<17x64xf32> to vector<17x16xf32>
    %48 = arith.truncf %47 : vector<17x16xf32> to vector<17x16xbf16>
    %cst_20 = arith.constant dense<0.000000e+00> : vector<17x17xf32>
    %49 = tpu.matmul %44, %46, %cst_20 {dimension_numbers = #tpu.dot_dimension_numbers<[1], [1], [0], [0], [0, 0, 1, 0], [], []>} : vector<17x16xbf16>, vector<17x16xbf16>, vector<17x17xf32> -> vector<17x17xf32>
    %cst_21 = arith.constant dense<0xFF800000> : vector<17xf32>
    %50 = vector.multi_reduction <maximumf>, %49, %cst_21 [1] : vector<17x17xf32> to vector<17xf32>
    %51 = vector.shape_cast %50 : vector<17xf32> to vector<17x1xf32>
    %52 = vector.broadcast %51 : vector<17x1xf32> to vector<17x17xf32>
    %53 = arith.subf %49, %52 : vector<17x17xf32>
    %54 = math.exp %53 : vector<17x17xf32>
    %cst_22 = arith.constant dense<0.000000e+00> : vector<17xf32>
    %55 = vector.multi_reduction <add>, %54, %cst_22 [1] : vector<17x17xf32> to vector<17xf32>
    %56 = vector.shape_cast %55 : vector<17xf32> to vector<17x1xf32>
    %57 = tpu.reciprocal %56 {approx = true} : vector<17x1xf32> -> vector<17x1xf32>
    %58 = vector.broadcast %57 : vector<17x1xf32> to vector<17x17xf32>
    %59 = arith.mulf %54, %58 : vector<17x17xf32>
    %60 = arith.truncf %59 : vector<17x17xf32> to vector<17x17xbf16>
    %cst_23 = arith.constant dense<0.000000e+00> : vector<17x16xf32>
    %61 = tpu.matmul %60, %48, %cst_23 {dimension_numbers = #tpu.dot_dimension_numbers<[1], [0], [0], [1], [0, 0, 1, 1], [], []>} : vector<17x17xbf16>, vector<17x16xbf16>, vector<17x16xf32> -> vector<17x16xf32>
    %62 = arith.truncf %61 : vector<17x16xf32> to vector<17x16xbf16>
    %c0_24 = arith.constant 0 : index
    %c0_25 = arith.constant 0 : index
    %63 = vector.load %arg24[%c0_24, %c0_25] : memref<17x64xbf16, #tpu.memory_space<vmem>>, vector<17x16xbf16>
    tpu.vector_store %arg24[%c0_24, %c0_25], %62 {strides = array<i32>} : memref<17x64xbf16, #tpu.memory_space<vmem>>, vector<17x16xbf16>,
    %64 = vector.extract_strided_slice %40 {offsets = [0, 16], sizes = [17, 16], strides = [1, 1]} : vector<17x64xf32> to vector<17x16xf32>
    %65 = arith.truncf %64 : vector<17x16xf32> to vector<17x16xbf16>
    %66 = vector.extract_strided_slice %41 {offsets = [0, 16], sizes = [17, 16], strides = [1, 1]} : vector<17x64xf32> to vector<17x16xf32>
    %67 = arith.truncf %66 : vector<17x16xf32> to vector<17x16xbf16>
    %68 = vector.extract_strided_slice %42 {offsets = [0, 16], sizes = [17, 16], strides = [1, 1]} : vector<17x64xf32> to vector<17x16xf32>
    %69 = arith.truncf %68 : vector<17x16xf32> to vector<17x16xbf16>
    %cst_26 = arith.constant dense<0.000000e+00> : vector<17x17xf32>
    %70 = tpu.matmul %65, %67, %cst_26 {dimension_numbers = #tpu.dot_dimension_numbers<[1], [1], [0], [0], [0, 0, 1, 0], [], []>} : vector<17x16xbf16>, vector<17x16xbf16>, vector<17x17xf32> -> vector<17x17xf32>
    %cst_27 = arith.constant dense<0xFF800000> : vector<17xf32>
    %71 = vector.multi_reduction <maximumf>, %70, %cst_27 [1] : vector<17x17xf32> to vector<17xf32>
    %72 = vector.shape_cast %71 : vector<17xf32> to vector<17x1xf32>
    %73 = vector.broadcast %72 : vector<17x1xf32> to vector<17x17xf32>
    %74 = arith.subf %70, %73 : vector<17x17xf32>
    %75 = math.exp %74 : vector<17x17xf32>
    %cst_28 = arith.constant dense<0.000000e+00> : vector<17xf32>
    %76 = vector.multi_reduction <add>, %75, %cst_28 [1] : vector<17x17xf32> to vector<17xf32>
    %77 = vector.shape_cast %76 : vector<17xf32> to vector<17x1xf32>
    %78 = tpu.reciprocal %77 {approx = true} : vector<17x1xf32> -> vector<17x1xf32>
    %79 = vector.broadcast %78 : vector<17x1xf32> to vector<17x17xf32>
    %80 = arith.mulf %75, %79 : vector<17x17xf32>
    %81 = arith.truncf %80 : vector<17x17xf32> to vector<17x17xbf16>
    %cst_29 = arith.constant dense<0.000000e+00> : vector<17x16xf32>
    %82 = tpu.matmul %81, %69, %cst_29 {dimension_numbers = #tpu.dot_dimension_numbers<[1], [0], [0], [1], [0, 0, 1, 1], [], []>} : vector<17x17xbf16>, vector<17x16xbf16>, vector<17x16xf32> -> vector<17x16xf32>
    %83 = arith.truncf %82 : vector<17x16xf32> to vector<17x16xbf16>
    %c0_30 = arith.constant 0 : index
    %c16 = arith.constant 16 : index
    %84 = vector.load %arg24[%c0_30, %c16] : memref<17x64xbf16, #tpu.memory_space<vmem>>, vector<17x16xbf16>
    tpu.vector_store %arg24[%c0_30, %c16], %83 {strides = array<i32>} : memref<17x64xbf16, #tpu.memory_space<vmem>>, vector<17x16xbf16>,
    %85 = vector.extract_strided_slice %40 {offsets = [0, 32], sizes = [17, 16], strides = [1, 1]} : vector<17x64xf32> to vector<17x16xf32>
    %86 = arith.truncf %85 : vector<17x16xf32> to vector<17x16xbf16>
    %87 = vector.extract_strided_slice %41 {offsets = [0, 32], sizes = [17, 16], strides = [1, 1]} : vector<17x64xf32> to vector<17x16xf32>
    %88 = arith.truncf %87 : vector<17x16xf32> to vector<17x16xbf16>
    %89 = vector.extract_strided_slice %42 {offsets = [0, 32], sizes = [17, 16], strides = [1, 1]} : vector<17x64xf32> to vector<17x16xf32>
    %90 = arith.truncf %89 : vector<17x16xf32> to vector<17x16xbf16>
    %cst_31 = arith.constant dense<0.000000e+00> : vector<17x17xf32>
    %91 = tpu.matmul %86, %88, %cst_31 {dimension_numbers = #tpu.dot_dimension_numbers<[1], [1], [0], [0], [0, 0, 1, 0], [], []>} : vector<17x16xbf16>, vector<17x16xbf16>, vector<17x17xf32> -> vector<17x17xf32>
    %cst_32 = arith.constant dense<0xFF800000> : vector<17xf32>
    %92 = vector.multi_reduction <maximumf>, %91, %cst_32 [1] : vector<17x17xf32> to vector<17xf32>
    %93 = vector.shape_cast %92 : vector<17xf32> to vector<17x1xf32>
    %94 = vector.broadcast %93 : vector<17x1xf32> to vector<17x17xf32>
    %95 = arith.subf %91, %94 : vector<17x17xf32>
    %96 = math.exp %95 : vector<17x17xf32>
    %cst_33 = arith.constant dense<0.000000e+00> : vector<17xf32>
    %97 = vector.multi_reduction <add>, %96, %cst_33 [1] : vector<17x17xf32> to vector<17xf32>
    %98 = vector.shape_cast %97 : vector<17xf32> to vector<17x1xf32>
    %99 = tpu.reciprocal %98 {approx = true} : vector<17x1xf32> -> vector<17x1xf32>
    %100 = vector.broadcast %99 : vector<17x1xf32> to vector<17x17xf32>
    %101 = arith.mulf %96, %100 : vector<17x17xf32>
    %102 = arith.truncf %101 : vector<17x17xf32> to vector<17x17xbf16>
    %cst_34 = arith.constant dense<0.000000e+00> : vector<17x16xf32>
    %103 = tpu.matmul %102, %90, %cst_34 {dimension_numbers = #tpu.dot_dimension_numbers<[1], [0], [0], [1], [0, 0, 1, 1], [], []>} : vector<17x17xbf16>, vector<17x16xbf16>, vector<17x16xf32> -> vector<17x16xf32>
    %104 = arith.truncf %103 : vector<17x16xf32> to vector<17x16xbf16>
    %c0_35 = arith.constant 0 : index
    %c32 = arith.constant 32 : index
    %105 = vector.load %arg24[%c0_35, %c32] : memref<17x64xbf16, #tpu.memory_space<vmem>>, vector<17x16xbf16>
    tpu.vector_store %arg24[%c0_35, %c32], %104 {strides = array<i32>} : memref<17x64xbf16, #tpu.memory_space<vmem>>, vector<17x16xbf16>,
    %106 = vector.extract_strided_slice %40 {offsets = [0, 48], sizes = [17, 16], strides = [1, 1]} : vector<17x64xf32> to vector<17x16xf32>
    %107 = arith.truncf %106 : vector<17x16xf32> to vector<17x16xbf16>
    %108 = vector.extract_strided_slice %41 {offsets = [0, 48], sizes = [17, 16], strides = [1, 1]} : vector<17x64xf32> to vector<17x16xf32>
    %109 = arith.truncf %108 : vector<17x16xf32> to vector<17x16xbf16>
    %110 = vector.extract_strided_slice %42 {offsets = [0, 48], sizes = [17, 16], strides = [1, 1]} : vector<17x64xf32> to vector<17x16xf32>
    %111 = arith.truncf %110 : vector<17x16xf32> to vector<17x16xbf16>
    %cst_36 = arith.constant dense<0.000000e+00> : vector<17x17xf32>
    %112 = tpu.matmul %107, %109, %cst_36 {dimension_numbers = #tpu.dot_dimension_numbers<[1], [1], [0], [0], [0, 0, 1, 0], [], []>} : vector<17x16xbf16>, vector<17x16xbf16>, vector<17x17xf32> -> vector<17x17xf32>
    %cst_37 = arith.constant dense<0xFF800000> : vector<17xf32>
    %113 = vector.multi_reduction <maximumf>, %112, %cst_37 [1] : vector<17x17xf32> to vector<17xf32>
    %114 = vector.shape_cast %113 : vector<17xf32> to vector<17x1xf32>
    %115 = vector.broadcast %114 : vector<17x1xf32> to vector<17x17xf32>
    %116 = arith.subf %112, %115 : vector<17x17xf32>
    %117 = math.exp %116 : vector<17x17xf32>
    %cst_38 = arith.constant dense<0.000000e+00> : vector<17xf32>
    %118 = vector.multi_reduction <add>, %117, %cst_38 [1] : vector<17x17xf32> to vector<17xf32>
    %119 = vector.shape_cast %118 : vector<17xf32> to vector<17x1xf32>
    %120 = tpu.reciprocal %119 {approx = true} : vector<17x1xf32> -> vector<17x1xf32>
    %121 = vector.broadcast %120 : vector<17x1xf32> to vector<17x17xf32>
    %122 = arith.mulf %117, %121 : vector<17x17xf32>
    %123 = arith.truncf %122 : vector<17x17xf32> to vector<17x17xbf16>
    %cst_39 = arith.constant dense<0.000000e+00> : vector<17x16xf32>
    %124 = tpu.matmul %123, %111, %cst_39 {dimension_numbers = #tpu.dot_dimension_numbers<[1], [0], [0], [1], [0, 0, 1, 1], [], []>} : vector<17x17xbf16>, vector<17x16xbf16>, vector<17x16xf32> -> vector<17x16xf32>
    %125 = arith.truncf %124 : vector<17x16xf32> to vector<17x16xbf16>
    %c0_40 = arith.constant 0 : index
    %c48 = arith.constant 48 : index
    %126 = vector.load %arg24[%c0_40, %c48] : memref<17x64xbf16, #tpu.memory_space<vmem>>, vector<17x16xbf16>
    tpu.vector_store %arg24[%c0_40, %c48], %125 {strides = array<i32>} : memref<17x64xbf16, #tpu.memory_space<vmem>>, vector<17x16xbf16>,
    %c0_41 = arith.constant 0 : index
    %c0_42 = arith.constant 0 : index
    %127 = vector.load %arg24[%c0_41, %c0_42] : memref<17x64xbf16, #tpu.memory_space<vmem>>, vector<17x64xbf16>
    %c0_43 = arith.constant 0 : index
    %c0_44 = arith.constant 0 : index
    %c0_45 = arith.constant 0 : index
    %128 = vector.load %arg11[%c0_43, %c0_44, %c0_45] : memref<1x64x64xbf16, #tpu.memory_space<vmem>>, vector<1x64x64xbf16>
    %129 = vector.shape_cast %128 : vector<1x64x64xbf16> to vector<64x64xbf16>
    %cst_46 = arith.constant dense<0.000000e+00> : vector<17x64xf32>
    %130 = tpu.matmul %127, %129, %cst_46 {dimension_numbers = #tpu.dot_dimension_numbers<[1], [0], [0], [1], [0, 0, 1, 1], [], []>} : vector<17x64xbf16>, vector<64x64xbf16>, vector<17x64xf32> -> vector<17x64xf32>
    %c0_47 = arith.constant 0 : index
    %c0_48 = arith.constant 0 : index
    %c0_49 = arith.constant 0 : index
    %131 = vector.load %arg12[%c0_47, %c0_48, %c0_49] : memref<1x1x64xf32, #tpu.memory_space<vmem>>, vector<1x1x64xf32>
    %132 = vector.shape_cast %131 : vector<1x1x64xf32> to vector<1x64xf32>
    %133 = vector.broadcast %132 : vector<1x64xf32> to vector<17x64xf32>
    %134 = arith.addf %130, %133 : vector<17x64xf32>
    %135 = arith.addf %5, %134 : vector<17x64xf32>
    %c0_50 = arith.constant 0 : index
    %c0_51 = arith.constant 0 : index
    %c0_52 = arith.constant 0 : index
    %136 = vector.load %arg13[%c0_50, %c0_51, %c0_52] : memref<1x1x64xf32, #tpu.memory_space<vmem>>, vector<1x1x64xf32>
    %137 = vector.shape_cast %136 : vector<1x1x64xf32> to vector<1x64xf32>
    %c0_53 = arith.constant 0 : index
    %c0_54 = arith.constant 0 : index
    %c0_55 = arith.constant 0 : index
    %138 = vector.load %arg14[%c0_53, %c0_54, %c0_55] : memref<1x1x64xf32, #tpu.memory_space<vmem>>, vector<1x1x64xf32>
    %139 = vector.shape_cast %138 : vector<1x1x64xf32> to vector<1x64xf32>
    %cst_56 = arith.constant dense<0.000000e+00> : vector<17xf32>
    %140 = vector.multi_reduction <add>, %135, %cst_56 [1] : vector<17x64xf32> to vector<17xf32>
    %141 = vector.shape_cast %140 : vector<17xf32> to vector<17x1xf32>
    %cst_57 = arith.constant 6.400000e+01 : f32
    %142 = vector.broadcast %cst_57 : f32 to vector<17x1xf32>
    %143 = arith.divf %141, %142 : vector<17x1xf32>
    %144 = vector.broadcast %143 : vector<17x1xf32> to vector<17x64xf32>
    %145 = arith.subf %135, %144 : vector<17x64xf32>
    %146 = arith.mulf %145, %145 : vector<17x64xf32>
    %cst_58 = arith.constant dense<0.000000e+00> : vector<17xf32>
    %147 = vector.multi_reduction <add>, %146, %cst_58 [1] : vector<17x64xf32> to vector<17xf32>
    %148 = vector.shape_cast %147 : vector<17xf32> to vector<17x1xf32>
    %cst_59 = arith.constant 6.400000e+01 : f32
    %149 = vector.broadcast %cst_59 : f32 to vector<17x1xf32>
    %150 = arith.divf %148, %149 : vector<17x1xf32>
    %cst_60 = arith.constant 9.99999974E-6 : f32
    %151 = vector.broadcast %cst_60 : f32 to vector<17x1xf32>
    %152 = arith.addf %150, %151 : vector<17x1xf32>
    %153 = math.rsqrt %152 : vector<17x1xf32>
    %154 = vector.broadcast %153 : vector<17x1xf32> to vector<17x64xf32>
    %155 = arith.mulf %145, %154 : vector<17x64xf32>
    %156 = vector.broadcast %137 : vector<1x64xf32> to vector<17x64xf32>
    %157 = arith.mulf %155, %156 : vector<17x64xf32>
    %158 = vector.broadcast %139 : vector<1x64xf32> to vector<17x64xf32>
    %159 = arith.addf %157, %158 : vector<17x64xf32>
    %160 = arith.truncf %159 : vector<17x64xf32> to vector<17x64xbf16>
    %c0_61 = arith.constant 0 : index
    %c0_62 = arith.constant 0 : index
    %161 = vector.load %arg25[%c0_61, %c0_62] : memref<17x64xf32, #tpu.memory_space<vmem>>, vector<17x64xf32>
    tpu.vector_store %arg25[%c0_61, %c0_62], %135 {strides = array<i32>} : memref<17x64xf32, #tpu.memory_space<vmem>>, vector<17x64xf32>,
    %c0_i32_63 = arith.constant 0 : i32
    %c2_i32 = arith.constant 2 : i32
    %162 = arith.addi %c0_i32_63, %c2_i32 : i32
    %c1_i32 = arith.constant 1 : i32
    scf.for %arg26 = %c0_i32_63 to %162 step %c1_i32  : i32 {
      %c1_i32_74 = arith.constant 1 : i32
      %175 = arith.muli %arg26, %c1_i32_74 : i32
      %c0_i32_75 = arith.constant 0 : i32
      %176 = arith.addi %c0_i32_75, %175 : i32
      %c128_i32 = arith.constant 128 : i32
      %177 = arith.muli %176, %c128_i32 : i32
      %178 = tpu.assume_multiple %177, 128 : i32
      %c0_76 = arith.constant 0 : index
      %c0_77 = arith.constant 0 : index
      %179 = arith.index_cast %178 : i32 to index
      %180 = vector.load %arg15[%c0_76, %c0_77, %179] : memref<1x64x256xbf16, #tpu.memory_space<vmem>>, vector<1x64x128xbf16>
      %181 = vector.shape_cast %180 : vector<1x64x128xbf16> to vector<64x128xbf16>
      %cst_78 = arith.constant dense<0.000000e+00> : vector<17x128xf32>
      %182 = tpu.matmul %160, %181, %cst_78 {dimension_numbers = #tpu.dot_dimension_numbers<[1], [0], [0], [1], [0, 0, 1, 1], [], []>} : vector<17x64xbf16>, vector<64x128xbf16>, vector<17x128xf32> -> vector<17x128xf32>
      %c0_79 = arith.constant 0 : index
      %c0_80 = arith.constant 0 : index
      %183 = arith.index_cast %178 : i32 to index
      %184 = vector.load %arg16[%c0_79, %c0_80, %183] : memref<1x1x256xf32, #tpu.memory_space<vmem>>, vector<1x1x128xf32>
      %185 = vector.shape_cast %184 : vector<1x1x128xf32> to vector<1x128xf32>
      %186 = vector.broadcast %185 : vector<1x128xf32> to vector<17x128xf32>
      %187 = arith.addf %182, %186 : vector<17x128xf32>
      %188 = arith.truncf %187 : vector<17x128xf32> to vector<17x128xbf16>
      %cst_81 = arith.constant 1.703130e+00 : bf16
      %189 = vector.broadcast %cst_81 : bf16 to vector<17x128xbf16>
      %190 = arith.mulf %189, %188 : vector<17x128xbf16>
      %191 = arith.negf %190 : vector<17x128xbf16>
      %192 = math.exp %191 : vector<17x128xbf16>
      %cst_82 = arith.constant 1.000000e+00 : bf16
      %193 = vector.broadcast %cst_82 : bf16 to vector<17x128xbf16>
      %194 = arith.addf %193, %192 : vector<17x128xbf16>
      %195 = arith.divf %193, %194 : vector<17x128xbf16>
      %196 = arith.extf %195 : vector<17x128xbf16> to vector<17x128xf32>
      %197 = arith.mulf %187, %196 : vector<17x128xf32>
      %c0_83 = arith.constant 0 : index
      %c0_84 = arith.constant 0 : index
      %198 = vector.load %arg25[%c0_83, %c0_84] : memref<17x64xf32, #tpu.memory_space<vmem>>, vector<17x64xf32>
      %199 = arith.truncf %197 : vector<17x128xf32> to vector<17x128xbf16>
      %c0_85 = arith.constant 0 : index
      %200 = arith.index_cast %178 : i32 to index
      %c0_86 = arith.constant 0 : index
      %201 = vector.load %arg17[%c0_85, %200, %c0_86] : memref<1x256x64xbf16, #tpu.memory_space<vmem>>, vector<1x128x64xbf16>
      %202 = vector.shape_cast %201 : vector<1x128x64xbf16> to vector<128x64xbf16>
      %cst_87 = arith.constant dense<0.000000e+00> : vector<17x64xf32>
      %203 = tpu.matmul %199, %202, %cst_87 {dimension_numbers = #tpu.dot_dimension_numbers<[1], [0], [0], [1], [0, 0, 1, 1], [], []>} : vector<17x128xbf16>, vector<128x64xbf16>, vector<17x64xf32> -> vector<17x64xf32>
      %204 = arith.addf %198, %203 : vector<17x64xf32>
      %c0_88 = arith.constant 0 : index
      %c0_89 = arith.constant 0 : index
      %205 = vector.load %arg25[%c0_88, %c0_89] : memref<17x64xf32, #tpu.memory_space<vmem>>, vector<17x64xf32>
      tpu.vector_store %arg25[%c0_88, %c0_89], %204 {strides = array<i32>} : memref<17x64xf32, #tpu.memory_space<vmem>>, vector<17x64xf32>,
    }
    %c2_i32_64 = arith.constant 2 : i32
    %c0_65 = arith.constant 0 : index
    %c0_66 = arith.constant 0 : index
    %163 = vector.load %arg25[%c0_65, %c0_66] : memref<17x64xf32, #tpu.memory_space<vmem>>, vector<17x64xf32>
    %c0_67 = arith.constant 0 : index
    %c0_68 = arith.constant 0 : index
    %c0_69 = arith.constant 0 : index
    %164 = vector.load %arg18[%c0_67, %c0_68, %c0_69] : memref<1x1x64xf32, #tpu.memory_space<vmem>>, vector<1x1x64xf32>
    %165 = vector.shape_cast %164 : vector<1x1x64xf32> to vector<1x64xf32>
    %166 = vector.broadcast %165 : vector<1x64xf32> to vector<17x64xf32>
    %167 = arith.addf %163, %166 : vector<17x64xf32>
    %168 = arith.index_cast %arg2 : i32 to index
    %c0_70 = arith.constant 0 : index
    %c0_71 = arith.constant 0 : index
    %169 = vector.load %arg23[%168, %c0_70, %c0_71] : memref<2x17x64xf32, #tpu.memory_space<vmem>>, vector<1x17x64xf32>
    %170 = vector.shape_cast %169 : vector<1x17x64xf32> to vector<17x64xf32>
    %171 = vector.shape_cast %167 : vector<17x64xf32> to vector<1x17x64xf32>
    tpu.vector_store %arg23[%168, %c0_70, %c0_71], %171 {strides = array<i32>} : memref<2x17x64xf32, #tpu.memory_space<vmem>>, vector<1x17x64xf32>,
    %c1_i32_72 = arith.constant 1 : i32
    %172 = arith.cmpi eq, %arg1, %c1_i32_72 : i32
    %173 = arith.extui %172 : i1 to i32
    %c0_i32_73 = arith.constant 0 : i32
    %174 = arith.cmpi ne, %173, %c0_i32_73 : i32
    scf.if %174 {
      %175 = vector.extract_strided_slice %167 {offsets = [0, 0], sizes = [1, 64], strides = [1, 1]} : vector<17x64xf32> to vector<1x64xf32>
      %c0_74 = arith.constant 0 : index
      %c0_75 = arith.constant 0 : index
      %c0_76 = arith.constant 0 : index
      %176 = vector.load %arg19[%c0_74, %c0_75, %c0_76] : memref<1x1x64xf32, #tpu.memory_space<vmem>>, vector<1x1x64xf32>
      %177 = vector.shape_cast %176 : vector<1x1x64xf32> to vector<1x64xf32>
      %c0_77 = arith.constant 0 : index
      %c0_78 = arith.constant 0 : index
      %c0_79 = arith.constant 0 : index
      %178 = vector.load %arg20[%c0_77, %c0_78, %c0_79] : memref<1x1x64xf32, #tpu.memory_space<vmem>>, vector<1x1x64xf32>
      %179 = vector.shape_cast %178 : vector<1x1x64xf32> to vector<1x64xf32>
      %cst_80 = arith.constant dense<0.000000e+00> : vector<1xf32>
      %180 = vector.multi_reduction <add>, %175, %cst_80 [1] : vector<1x64xf32> to vector<1xf32>
      %181 = vector.shape_cast %180 : vector<1xf32> to vector<1x1xf32>
      %cst_81 = arith.constant 6.400000e+01 : f32
      %182 = vector.broadcast %cst_81 : f32 to vector<1x1xf32>
      %183 = arith.divf %181, %182 : vector<1x1xf32>
      %184 = vector.broadcast %183 : vector<1x1xf32> to vector<1x64xf32>
      %185 = arith.subf %175, %184 : vector<1x64xf32>
      %186 = arith.mulf %185, %185 : vector<1x64xf32>
      %cst_82 = arith.constant dense<0.000000e+00> : vector<1xf32>
      %187 = vector.multi_reduction <add>, %186, %cst_82 [1] : vector<1x64xf32> to vector<1xf32>
      %188 = vector.shape_cast %187 : vector<1xf32> to vector<1x1xf32>
      %cst_83 = arith.constant 6.400000e+01 : f32
      %189 = vector.broadcast %cst_83 : f32 to vector<1x1xf32>
      %190 = arith.divf %188, %189 : vector<1x1xf32>
      %cst_84 = arith.constant 9.99999974E-6 : f32
      %191 = vector.broadcast %cst_84 : f32 to vector<1x1xf32>
      %192 = arith.addf %190, %191 : vector<1x1xf32>
      %193 = math.rsqrt %192 : vector<1x1xf32>
      %194 = vector.broadcast %193 : vector<1x1xf32> to vector<1x64xf32>
      %195 = arith.mulf %185, %194 : vector<1x64xf32>
      %196 = arith.mulf %195, %177 : vector<1x64xf32>
      %197 = arith.addf %196, %179 : vector<1x64xf32>
      %198 = arith.truncf %197 : vector<1x64xf32> to vector<1x64xbf16>
      %c0_85 = arith.constant 0 : index
      %c0_86 = arith.constant 0 : index
      %199 = vector.load %arg21[%c0_85, %c0_86] : memref<64x16xbf16, #tpu.memory_space<vmem>>, vector<64x16xbf16>
      %cst_87 = arith.constant dense<0.000000e+00> : vector<1x16xf32>
      %200 = tpu.matmul %198, %199, %cst_87 {dimension_numbers = #tpu.dot_dimension_numbers<[1], [0], [0], [1], [0, 0, 1, 1], [], []>} : vector<1x64xbf16>, vector<64x16xbf16>, vector<1x16xf32> -> vector<1x16xf32>
      %201 = arith.index_cast %arg2 : i32 to index
      %c0_88 = arith.constant 0 : index
      %c0_89 = arith.constant 0 : index
      %202 = vector.load %arg22[%201, %c0_88, %c0_89] : memref<2x1x16xf32, #tpu.memory_space<vmem>>, vector<1x1x16xf32>
      %203 = vector.shape_cast %202 : vector<1x1x16xf32> to vector<1x16xf32>
      %204 = vector.shape_cast %200 : vector<1x16xf32> to vector<1x1x16xf32>
      tpu.vector_store %arg22[%201, %c0_88, %c0_89], %204 {strides = array<i32>} : memref<2x1x16xf32, #tpu.memory_space<vmem>>, vector<1x1x16xf32>,
    } else {
    }
    return
  }
  func.func @transform_0(%arg0: i32, %arg1: i32, %arg2: i32) -> (i32, i32, i32) {
    %c0_i32 = arith.constant 0 : i32
    %c0_i32_0 = arith.constant 0 : i32
    %c0_i32_1 = arith.constant 0 : i32
    return %arg0, %c0_i32, %c0_i32_0 : i32, i32, i32
  }
  func.func @transform_1(%arg0: i32, %arg1: i32, %arg2: i32) -> (i32, i32, i32) {
    %c0_i32 = arith.constant 0 : i32
    %c0_i32_0 = arith.constant 0 : i32
    %c0_i32_1 = arith.constant 0 : i32
    %c0_i32_2 = arith.constant 0 : i32
    return %c0_i32, %c0_i32_0, %c0_i32_1 : i32, i32, i32
  }
  func.func @transform_2(%arg0: i32, %arg1: i32, %arg2: i32) -> (i32, i32, i32) {
    %c0_i32 = arith.constant 0 : i32
    %c0_i32_0 = arith.constant 0 : i32
    %c0_i32_1 = arith.constant 0 : i32
    %c0_i32_2 = arith.constant 0 : i32
    return %c0_i32, %c0_i32_0, %c0_i32_1 : i32, i32, i32
  }
  func.func @transform_3(%arg0: i32, %arg1: i32, %arg2: i32) -> (i32, i32, i32) {
    %c0_i32 = arith.constant 0 : i32
    %c0_i32_0 = arith.constant 0 : i32
    %c0_i32_1 = arith.constant 0 : i32
    %c0_i32_2 = arith.constant 0 : i32
    return %c0_i32, %c0_i32_0, %c0_i32_1 : i32, i32, i32
  }
  func.func @transform_4(%arg0: i32, %arg1: i32, %arg2: i32) -> (i32, i32, i32) {
    %c0_i32 = arith.constant 0 : i32
    %c0_i32_0 = arith.constant 0 : i32
    %c0_i32_1 = arith.constant 0 : i32
    return %arg1, %c0_i32, %c0_i32_0 : i32, i32, i32
  }
  func.func @transform_5(%arg0: i32, %arg1: i32, %arg2: i32) -> (i32, i32, i32) {
    %c0_i32 = arith.constant 0 : i32
    %c0_i32_0 = arith.constant 0 : i32
    %c0_i32_1 = arith.constant 0 : i32
    return %arg1, %c0_i32, %c0_i32_0 : i32, i32, i32
  }
  func.func @transform_6(%arg0: i32, %arg1: i32, %arg2: i32) -> (i32, i32, i32) {
    %c0_i32 = arith.constant 0 : i32
    %c0_i32_0 = arith.constant 0 : i32
    %c0_i32_1 = arith.constant 0 : i32
    return %arg1, %c0_i32, %c0_i32_0 : i32, i32, i32
  }
  func.func @transform_7(%arg0: i32, %arg1: i32, %arg2: i32) -> (i32, i32, i32) {
    %c0_i32 = arith.constant 0 : i32
    %c0_i32_0 = arith.constant 0 : i32
    %c0_i32_1 = arith.constant 0 : i32
    return %arg1, %c0_i32, %c0_i32_0 : i32, i32, i32
  }
  func.func @transform_8(%arg0: i32, %arg1: i32, %arg2: i32) -> (i32, i32, i32) {
    %c0_i32 = arith.constant 0 : i32
    %c0_i32_0 = arith.constant 0 : i32
    %c0_i32_1 = arith.constant 0 : i32
    return %arg1, %c0_i32, %c0_i32_0 : i32, i32, i32
  }
  func.func @transform_9(%arg0: i32, %arg1: i32, %arg2: i32) -> (i32, i32, i32) {
    %c0_i32 = arith.constant 0 : i32
    %c0_i32_0 = arith.constant 0 : i32
    %c0_i32_1 = arith.constant 0 : i32
    return %arg1, %c0_i32, %c0_i32_0 : i32, i32, i32
  }
  func.func @transform_10(%arg0: i32, %arg1: i32, %arg2: i32) -> (i32, i32, i32) {
    %c0_i32 = arith.constant 0 : i32
    %c0_i32_0 = arith.constant 0 : i32
    %c0_i32_1 = arith.constant 0 : i32
    return %arg1, %c0_i32, %c0_i32_0 : i32, i32, i32
  }
  func.func @transform_11(%arg0: i32, %arg1: i32, %arg2: i32) -> (i32, i32, i32) {
    %c0_i32 = arith.constant 0 : i32
    %c0_i32_0 = arith.constant 0 : i32
    %c0_i32_1 = arith.constant 0 : i32
    return %arg1, %c0_i32, %c0_i32_0 : i32, i32, i32
  }
  func.func @transform_12(%arg0: i32, %arg1: i32, %arg2: i32) -> (i32, i32, i32) {
    %c0_i32 = arith.constant 0 : i32
    %c0_i32_0 = arith.constant 0 : i32
    %c0_i32_1 = arith.constant 0 : i32
    return %arg1, %c0_i32, %c0_i32_0 : i32, i32, i32
  }
  func.func @transform_13(%arg0: i32, %arg1: i32, %arg2: i32) -> (i32, i32, i32) {
    %c0_i32 = arith.constant 0 : i32
    %c0_i32_0 = arith.constant 0 : i32
    %c0_i32_1 = arith.constant 0 : i32
    return %arg1, %c0_i32, %c0_i32_0 : i32, i32, i32
  }
  func.func @transform_14(%arg0: i32, %arg1: i32, %arg2: i32) -> (i32, i32, i32) {
    %c0_i32 = arith.constant 0 : i32
    %c0_i32_0 = arith.constant 0 : i32
    %c0_i32_1 = arith.constant 0 : i32
    return %arg1, %c0_i32, %c0_i32_0 : i32, i32, i32
  }
  func.func @transform_15(%arg0: i32, %arg1: i32, %arg2: i32) -> (i32, i32, i32) {
    %c0_i32 = arith.constant 0 : i32
    %c0_i32_0 = arith.constant 0 : i32
    %c0_i32_1 = arith.constant 0 : i32
    return %arg1, %c0_i32, %c0_i32_0 : i32, i32, i32
  }
  func.func @transform_16(%arg0: i32, %arg1: i32, %arg2: i32) -> (i32, i32, i32) {
    %c0_i32 = arith.constant 0 : i32
    %c0_i32_0 = arith.constant 0 : i32
    %c0_i32_1 = arith.constant 0 : i32
    %c0_i32_2 = arith.constant 0 : i32
    return %c0_i32, %c0_i32_0, %c0_i32_1 : i32, i32, i32
  }
  func.func @transform_17(%arg0: i32, %arg1: i32, %arg2: i32) -> (i32, i32, i32) {
    %c0_i32 = arith.constant 0 : i32
    %c0_i32_0 = arith.constant 0 : i32
    %c0_i32_1 = arith.constant 0 : i32
    %c0_i32_2 = arith.constant 0 : i32
    return %c0_i32, %c0_i32_0, %c0_i32_1 : i32, i32, i32
  }
  func.func @transform_18(%arg0: i32, %arg1: i32, %arg2: i32) -> (i32, i32) {
    %c0_i32 = arith.constant 0 : i32
    %c0_i32_0 = arith.constant 0 : i32
    %c0_i32_1 = arith.constant 0 : i32
    return %c0_i32, %c0_i32_0 : i32, i32
  }
  func.func @transform_19(%arg0: i32, %arg1: i32, %arg2: i32) -> (i32, i32, i32) {
    %c0_i32 = arith.constant 0 : i32
    %c0_i32_0 = arith.constant 0 : i32
    %c0_i32_1 = arith.constant 0 : i32
    return %arg0, %c0_i32, %c0_i32_0 : i32, i32, i32
  }
}

</mosaic_0001>

<llo_original>
// kernel: frozen_clip_image_embedder.2
$region0: #{frozen_clip_image_embedder.2}
  #allocation0 [shape = 'u32[]', space=smem, size = 0x4, offset = 0x4, fixed_abs, tag = 'smem constant byte address 0x4 - core index']
  #allocation1 [shape = 'u32[144,128]{1,0:T(1,128)}', space=vmem, size = 0x12000, scoped, tag = 'internal scratch']
  %s0 = inlined_call_operand.vmem [shape: bf16[64,256], index: 0, kind: input, shape index: {}]
  %s1 = inlined_call_operand.vmem [shape: bf16[256,64], index: 1, kind: input, shape index: {}]
  %s2 = inlined_call_operand.vmem [shape: f32[1,64], index: 2, kind: input, shape index: {}]
  %s3 = inlined_call_operand.vmem [shape: f32[64,64], index: 3, kind: output, shape index: {}]
  %s4 = sld [smem:[#allocation0]]
  $region22: #{frozen_clip_image_embedder.2} parent=0
    _
  %s6 = ssub.s32 1, %s4
  %s7 = scalar_select 0, %s6, %s4
  // Predicated region
  $region2: #{frozen_clip_image_embedder.2} parent=0 // pred_check
    _
  $region3: #{frozen_clip_image_embedder.2} parent=0 // pred_check_branch
    %9 = sbr.rel (0) target = $region5
  $region4: #{frozen_clip_image_embedder.2} parent=0 // pred_region
    _
  $region5: #{frozen_clip_image_embedder.2} parent=0 // pred_fallthru
    _
  // Predicated region
  $region6: #{frozen_clip_image_embedder.2} parent=0 // pred_check
    _
  $region7: #{frozen_clip_image_embedder.2} parent=0 // pred_check_branch
    %11 = sbr.rel (0) target = $region9
  $region8: #{frozen_clip_image_embedder.2} parent=0 // pred_region
    _
  $region9: #{frozen_clip_image_embedder.2} parent=0 // pred_fallthru
    _
  // Predicated region
  $region10: #{frozen_clip_image_embedder.2} parent=0 // pred_check
    _
  $region11: #{frozen_clip_image_embedder.2} parent=0 // pred_check_branch
    %13 = sbr.rel (0) target = $region13
  $region12: #{frozen_clip_image_embedder.2} parent=0 // pred_region
    _
  $region13: #{frozen_clip_image_embedder.2} parent=0 // pred_fallthru
    _
  %v15 = vld [vmem:[%s0] sm:$0xff]
  %v16 = vld [vmem:[%s0 + $0x8] sm:$0xff]
  %v17 = vld [vmem:[%s0 + $0x10] sm:$0xff]
  %v18 = vld [vmem:[%s0 + $0x18] sm:$0xff]
  %v19 = vld [vmem:[%s0 + $0x20] sm:$0xff]
  %v20 = vld [vmem:[%s0 + $0x28] sm:$0xff]
  %v21 = vld [vmem:[%s0 + $0x30] sm:$0xff]
  %v22 = vld [vmem:[%s0 + $0x38] sm:$0xff]
  %v23 = vld [vmem:[%s1] sm:$0xf]
  %v24 = vld [vmem:[%s1 + $0x4] sm:$0xf]
  %v25 = vld [vmem:[%s1 + $0x8] sm:$0xf]
  %v26 = vld [vmem:[%s1 + $0xc] sm:$0xf]
  %v27 = vld [vmem:[%s1 + $0x10] sm:$0xf]
  %v28 = vld [vmem:[%s1 + $0x14] sm:$0xf]
  %v29 = vld [vmem:[%s1 + $0x18] sm:$0xf]
  %v30 = vld [vmem:[%s1 + $0x1c] sm:$0xf]
  %v31 = vld [vmem:[%s1 + $0x20] sm:$0xf]
  %v32 = vld [vmem:[%s1 + $0x24] sm:$0xf]
  %v33 = vld [vmem:[%s1 + $0x28] sm:$0xf]
  %v34 = vld [vmem:[%s1 + $0x2c] sm:$0xf]
  %v35 = vld [vmem:[%s1 + $0x30] sm:$0xf]
  %v36 = vld [vmem:[%s1 + $0x34] sm:$0xf]
  %v37 = vld [vmem:[%s1 + $0x38] sm:$0xf]
  %v38 = vld [vmem:[%s1 + $0x3c] sm:$0xf]
  %v39 = vld [vmem:[%s1 + $0x40] sm:$0xf]
  %v40 = vld [vmem:[%s1 + $0x44] sm:$0xf]
  %v41 = vld [vmem:[%s1 + $0x48] sm:$0xf]
  %v42 = vld [vmem:[%s1 + $0x4c] sm:$0xf]
  %v43 = vld [vmem:[%s1 + $0x50] sm:$0xf]
  %v44 = vld [vmem:[%s1 + $0x54] sm:$0xf]
  %v45 = vld [vmem:[%s1 + $0x58] sm:$0xf]
  %v46 = vld [vmem:[%s1 + $0x5c] sm:$0xf]
  %v47 = vld [vmem:[%s1 + $0x60] sm:$0xf]
  %v48 = vld [vmem:[%s1 + $0x64] sm:$0xf]
  %v49 = vld [vmem:[%s1 + $0x68] sm:$0xf]
  %v50 = vld [vmem:[%s1 + $0x6c] sm:$0xf]
  %v51 = vld [vmem:[%s1 + $0x70] sm:$0xf]
  %v52 = vld [vmem:[%s1 + $0x74] sm:$0xf]
  %v53 = vld [vmem:[%s1 + $0x78] sm:$0xf]
  %v54 = vld [vmem:[%s1 + $0x7c] sm:$0xf]
  %v55 = vld [vmem:[%s2] sm:$0x1]
  %v57 = vlaneseq
  %v58 = vshrl.u32 %v57, 7
  %v59 = vsub.s32 0, %v58
  %v60 = vrot.slane %v55, %v59
  %v70 = vunpack.c.l.b16 %v15
  %v71 = vunpack.c.h.b16 %v15
  %v72 = vunpack.c.l.b16 %v16
  %v73 = vunpack.c.h.b16 %v16
  %v74 = vunpack.c.l.b16 %v17
  %v75 = vunpack.c.h.b16 %v17
  %v76 = vunpack.c.l.b16 %v18
  %v77 = vunpack.c.h.b16 %v18
  %v78 = vunpack.c.l.b16 %v19
  %v79 = vunpack.c.h.b16 %v19
  %v80 = vunpack.c.l.b16 %v20
  %v81 = vunpack.c.h.b16 %v20
  %v82 = vunpack.c.l.b16 %v21
  %v83 = vunpack.c.h.b16 %v21
  %v84 = vunpack.c.l.b16 %v22
  %v85 = vunpack.c.h.b16 %v22
  %v86 = vpack.c.b16 %v72, %v70
  %v87 = vpack.c.b16 %v73, %v71
  %v88 = vpack.c.b16 %v76, %v74
  %v89 = vpack.c.b16 %v77, %v75
  %v90 = vpack.c.b16 %v80, %v78
  %v91 = vpack.c.b16 %v81, %v79
  %v92 = vpack.c.b16 %v84, %v82
  %v93 = vpack.c.b16 %v85, %v83
  %v134 = vunpack.c.l.b16 %v23
  %v135 = vunpack.c.l.b16 %v24
  %v136 = vunpack.c.l.b16 %v25
  %v137 = vunpack.c.l.b16 %v26
  %v138 = vunpack.c.l.b16 %v27
  %v139 = vunpack.c.l.b16 %v28
  %v140 = vunpack.c.l.b16 %v29
  %v141 = vunpack.c.l.b16 %v30
  %v142 = vunpack.c.l.b16 %v31
  %v143 = vunpack.c.l.b16 %v32
  %v144 = vunpack.c.l.b16 %v33
  %v145 = vunpack.c.l.b16 %v34
  %v146 = vunpack.c.l.b16 %v35
  %v147 = vunpack.c.l.b16 %v36
  %v148 = vunpack.c.l.b16 %v37
  %v149 = vunpack.c.l.b16 %v38
  %v150 = vunpack.c.l.b16 %v39
  %v151 = vunpack.c.l.b16 %v40
  %v152 = vunpack.c.l.b16 %v41
  %v153 = vunpack.c.l.b16 %v42
  %v154 = vunpack.c.l.b16 %v43
  %v155 = vunpack.c.l.b16 %v44
  %v156 = vunpack.c.l.b16 %v45
  %v157 = vunpack.c.l.b16 %v46
  %v158 = vunpack.c.l.b16 %v47
  %v159 = vunpack.c.l.b16 %v48
  %v160 = vunpack.c.l.b16 %v49
  %v161 = vunpack.c.l.b16 %v50
  %v162 = vunpack.c.l.b16 %v51
  %v163 = vunpack.c.l.b16 %v52
  %v164 = vunpack.c.l.b16 %v53
  %v165 = vunpack.c.l.b16 %v54
  %v166 = vpack.c.b16 %v135, %v134
  %v167 = vpack.c.b16 %v137, %v136
  %v168 = vpack.c.b16 %v139, %v138
  %v169 = vpack.c.b16 %v141, %v140
  %v170 = vpack.c.b16 %v143, %v142
  %v171 = vpack.c.b16 %v145, %v144
  %v172 = vpack.c.b16 %v147, %v146
  %v173 = vpack.c.b16 %v149, %v148
  %v174 = vpack.c.b16 %v151, %v150
  %v175 = vpack.c.b16 %v153, %v152
  %v176 = vpack.c.b16 %v155, %v154
  %v177 = vpack.c.b16 %v157, %v156
  %v178 = vpack.c.b16 %v159, %v158
  %v179 = vpack.c.b16 %v161, %v160
  %v180 = vpack.c.b16 %v163, %v162
  %v181 = vpack.c.b16 %v165, %v164
  %198 = vmatprep.subr.bf16.mxu0 0
  %199 = vmatpush1.bf16.msra.mxu0 %v173
  %200 = vmatprep.subr.bf16.mxu0 0
  %201 = vmatpush1.bf16.msra.mxu0 %v172
  %202 = vmatprep.subr.bf16.mxu0 0
  %203 = vmatpush1.bf16.msra.mxu0 %v171
  %204 = vmatprep.subr.bf16.mxu0 0
  %205 = vmatpush1.bf16.msra.mxu0 %v170
  %206 = vmatprep.subr.bf16.mxu0 0
  %207 = vmatpush1.bf16.msra.mxu0 %v169
  %208 = vmatprep.subr.bf16.mxu0 0
  %209 = vmatpush1.bf16.msra.mxu0 %v168
  %210 = vmatprep.subr.bf16.mxu0 0
  %211 = vmatpush1.bf16.msra.mxu0 %v167
  %212 = vmatprep.subr.bf16.mxu0 0
  %213 = vmatpush1.bf16.msra.mxu0 %v166
  %214 = vmatprep.subr.bf16.mxu0 0
  %215 = vmatpush2.bf16.msra.mxu0 %v181
  %216 = vmatprep.subr.bf16.mxu0 0
  %217 = vmatpush2.bf16.msra.mxu0 %v180
  %218 = vmatprep.subr.bf16.mxu0 0
  %219 = vmatpush2.bf16.msra.mxu0 %v179
  %220 = vmatprep.subr.bf16.mxu0 0
  %221 = vmatpush2.bf16.msra.mxu0 %v178
  %222 = vmatprep.subr.bf16.mxu0 0
  %223 = vmatpush2.bf16.msra.mxu0 %v177
  %224 = vmatprep.subr.bf16.mxu0 0
  %225 = vmatpush2.bf16.msra.mxu0 %v176
  %226 = vmatprep.subr.bf16.mxu0 0
  %227 = vmatpush2.bf16.msra.mxu0 %v175
  %228 = vmatprep.subr.bf16.mxu0 0
  %229 = vmatpush2.bf16.msra.mxu0 %v174
  %230 = vmatprep.mubr.bf16.mxu0 %v87
  %231 = vmatmul.mubr.bf16.gmra.mxu0 %v86
  %v232 = vpop.f32.mrf.mxu0
  %v233 = vadd.f32 %v60, %v232
  %v234 = vpop.f32.mrf.mxu0
  %v235 = vpop.f32.mrf.mxu0
  %v236 = vadd.f32 %v60, %v235
  %v237 = vpop.f32.mrf.mxu0
  %238 = vmatprep.mubr.bf16.mxu0 %v89
  %239 = vmatmul.mubr.bf16.gmra.mxu0 %v88
  %v240 = vpop.f32.mrf.mxu0
  %v241 = vadd.f32 %v60, %v240
  %v242 = vpop.f32.mrf.mxu0
  %v243 = vpop.f32.mrf.mxu0
  %v244 = vadd.f32 %v60, %v243
  %v245 = vpop.f32.mrf.mxu0
  %246 = vmatprep.mubr.bf16.mxu0 %v91
  %247 = vmatmul.mubr.bf16.gmra.mxu0 %v90
  %v248 = vpop.f32.mrf.mxu0
  %v249 = vadd.f32 %v60, %v248
  %v250 = vpop.f32.mrf.mxu0
  %v251 = vpop.f32.mrf.mxu0
  %v252 = vadd.f32 %v60, %v251
  %v253 = vpop.f32.mrf.mxu0
  %254 = vmatprep.mubr.bf16.mxu0 %v93
  %255 = vmatmul.mubr.bf16.gmra.mxu0 %v92
  %v256 = vpop.f32.mrf.mxu0
  %v257 = vadd.f32 %v60, %v256
  %v258 = vpop.f32.mrf.mxu0
  %v259 = vpop.f32.mrf.mxu0
  %v260 = vadd.f32 %v60, %v259
  %v261 = vpop.f32.mrf.mxu0
  %262 = vdwg.mxu0
  %vm263 = vcmask 523264
  %264 = vst.msk [vmem:[%s3] sm:$0xff] %vm263, %v233
  %265 = vst.msk [vmem:[%s3 + $0x8] sm:$0xff] %vm263, %v236
  %266 = vst.msk [vmem:[%s3 + $0x10] sm:$0xff] %vm263, %v241
  %267 = vst.msk [vmem:[%s3 + $0x18] sm:$0xff] %vm263, %v244
  %268 = vst.msk [vmem:[%s3 + $0x20] sm:$0xff] %vm263, %v249
  %269 = vst.msk [vmem:[%s3 + $0x28] sm:$0xff] %vm263, %v252
  %270 = vst.msk [vmem:[%s3 + $0x30] sm:$0xff] %vm263, %v257
  %271 = vst.msk [vmem:[%s3 + $0x38] sm:$0xff] %vm263, %v260
  // Predicated region
  $region14: #{frozen_clip_image_embedder.2} parent=0 // pred_check
    _
  $region15: #{frozen_clip_image_embedder.2} parent=0 // pred_check_branch
    %273 = sbr.rel (0) target = $region17
  $region16: #{frozen_clip_image_embedder.2} parent=0 // pred_region
    _
  $region17: #{frozen_clip_image_embedder.2} parent=0 // pred_fallthru
    _
  // Predicated region
  $region18: #{frozen_clip_image_embedder.2} parent=0 // pred_check
    _
  $region19: #{frozen_clip_image_embedder.2} parent=0 // pred_check_branch
    %275 = sbr.rel (0) target = $region21
  $region20: #{frozen_clip_image_embedder.2} parent=0 // pred_region
    _
  $region21: #{frozen_clip_image_embedder.2} parent=0 // pred_fallthru
    _

// kernel: frozen_clip_image_embedder.3
$region0: #{frozen_clip_image_embedder.3}
  #allocation0 [shape = 'u32[]', space=smem, size = 0x4, offset = 0x4, fixed_abs, tag = 'smem constant byte address 0x4 - core index']
  #allocation1 [shape = 'u32[144,128]{1,0:T(1,128)}', space=vmem, size = 0x12000, scoped, tag = 'internal scratch']
  #allocation2 [shape = 'f32[2,17,64]{2,1,0:T(8,128)}', space=vmem, size = 0x6000, scoped, tag = 'scratch operand']
  #allocation3 [shape = 'bf16[17,64]{1,0:T(8,128)(2,1)}', space=vmem, size = 0x1800, scoped, tag = 'scratch operand']
  #allocation4 [shape = 'f32[17,64]{1,0:T(8,128)}', space=vmem, size = 0x3000, scoped, tag = 'scratch operand']
  %s0 = inlined_call_operand.vmem [shape: f32[4,17,64], index: 0, kind: input, shape index: {}]
  %s1 = inlined_call_operand.vmem [shape: f32[1,17,64], index: 1, kind: input, shape index: {}]
  %s2 = inlined_call_operand.vmem [shape: f32[1,1,64], index: 2, kind: input, shape index: {}]
  %s3 = inlined_call_operand.vmem [shape: f32[1,1,64], index: 3, kind: input, shape index: {}]
  %s4 = inlined_call_operand.vmem [shape: f32[2,1,64], index: 4, kind: input, shape index: {}]
  %s5 = inlined_call_operand.vmem [shape: f32[2,1,64], index: 5, kind: input, shape index: {}]
  %s6 = inlined_call_operand.vmem [shape: bf16[2,64,192], index: 6, kind: input, shape index: {}]
  %s7 = inlined_call_operand.vmem [shape: f32[2,1,192], index: 7, kind: input, shape index: {}]
  %s8 = inlined_call_operand.vmem [shape: bf16[2,64,64], index: 8, kind: input, shape index: {}]
  %s9 = inlined_call_operand.vmem [shape: f32[2,1,64], index: 9, kind: input, shape index: {}]
  %s10 = inlined_call_operand.vmem [shape: f32[2,1,64], index: 10, kind: input, shape index: {}]
  %s11 = inlined_call_operand.vmem [shape: f32[2,1,64], index: 11, kind: input, shape index: {}]
  %s12 = inlined_call_operand.vmem [shape: bf16[2,64,256], index: 12, kind: input, shape index: {}]
  %s13 = inlined_call_operand.vmem [shape: f32[2,1,256], index: 13, kind: input, shape index: {}]
  %s14 = inlined_call_operand.vmem [shape: bf16[2,256,64], index: 14, kind: input, shape index: {}]
  %s15 = inlined_call_operand.vmem [shape: f32[2,1,64], index: 15, kind: input, shape index: {}]
  %s16 = inlined_call_operand.vmem [shape: f32[1,1,64], index: 16, kind: input, shape index: {}]
  %s17 = inlined_call_operand.vmem [shape: f32[1,1,64], index: 17, kind: input, shape index: {}]
  %s18 = inlined_call_operand.vmem [shape: bf16[64,16], index: 18, kind: input, shape index: {}]
  %s19 = inlined_call_operand.hbm [shape: f32[4,1,16], index: 19, kind: output, shape index: {}]
  %s20 = sld [smem:[#allocation0]]
  $region124: #{frozen_clip_image_embedder.3} parent=0
    _
  %s22 = ssub.s32 1, %s20
  %s23 = scalar_select 0, %s22, %s20
  $region1: #{frozen_clip_image_embedder.3} parent=0
    #allocation5 [shape = 'u8[2048]{0}', space=vmem, size = 0x800, scoped, tag = 'output window, operand 0']
    #allocation6 [shape = 's32[2]{0}', space=sflag, size = 0x8, scoped, tag = 'scoped memory for frozen_clip_image_embedder.3']
    %24 = vsyncpa [#allocation6], 0
    %s25 = scalar_lea.sflag [#allocation6], 1
    %26 = vsyncpa %s25, 0
    loop: start=0, step=1, limit=10
    $region2: #{frozen_clip_image_embedder.3} parent=1 // loop_pre_header
      _
    $region3: #{frozen_clip_image_embedder.3} parent=1 // loop_header
      %s28 = sphi 0, %s32
      %p29 = scmp.ge.s32.totalorder %s28, 10
      %s35 = sphi 0, %s54
      %s36 = sphi 0, %s50
      %s37 = sphi 0, %s46
      %s38 = sphi 0, %s35
      %s39 = sphi 0, %s36
      %s40 = sphi 0, %s37
      %s41 = sphi 0, %s38
      %s42 = sphi 0, %s39
      %s43 = sphi 0, %s40
      %s57 = sphi 0, %s59
      %s60 = sphi 0, %s57
      %s61 = sphi 0, %s60
      %s77 = sphi 0, %s61
      %s81 = sphi 0, %s81
      %s83 = sphi 0, %s81
      %s84 = sphi 0, %s83
      %s98 = sphi 0, %s84
      %s102 = sphi 0, %s102
      %s104 = sphi 0, %s102
      %s105 = sphi 0, %s104
      %s119 = sphi 0, %s105
      %s123 = sphi 0, %s123
      %s125 = sphi 0, %s123
      %s126 = sphi 0, %s125
      %s140 = sphi 0, %s126
      %s146 = sphi 0, %s148
      %s149 = sphi 0, %s146
      %s150 = sphi 0, %s149
      %s166 = sphi 0, %s150
      %s172 = sphi 0, %s174
      %s175 = sphi 0, %s172
      %s176 = sphi 0, %s175
      %s192 = sphi 0, %s176
      %s198 = sphi 0, %s200
      %s201 = sphi 0, %s198
      %s202 = sphi 0, %s201
      %s218 = sphi 0, %s202
      %s224 = sphi 0, %s226
      %s227 = sphi 0, %s224
      %s228 = sphi 0, %s227
      %s244 = sphi 0, %s228
      %s250 = sphi 0, %s252
      %s253 = sphi 0, %s250
      %s254 = sphi 0, %s253
      %s270 = sphi 0, %s254
      %s276 = sphi 0, %s278
      %s279 = sphi 0, %s276
      %s280 = sphi 0, %s279
      %s296 = sphi 0, %s280
      %s302 = sphi 0, %s304
      %s305 = sphi 0, %s302
      %s306 = sphi 0, %s305
      %s322 = sphi 0, %s306
      %s328 = sphi 0, %s330
      %s331 = sphi 0, %s328
      %s332 = sphi 0, %s331
      %s348 = sphi 0, %s332
      %s354 = sphi 0, %s356
      %s357 = sphi 0, %s354
      %s358 = sphi 0, %s357
      %s374 = sphi 0, %s358
      %s380 = sphi 0, %s382
      %s383 = sphi 0, %s380
      %s384 = sphi 0, %s383
      %s400 = sphi 0, %s384
      %s406 = sphi 0, %s408
      %s409 = sphi 0, %s406
      %s410 = sphi 0, %s409
      %s426 = sphi 0, %s410
      %s432 = sphi 0, %s434
      %s435 = sphi 0, %s432
      %s436 = sphi 0, %s435
      %s452 = sphi 0, %s436
      %s456 = sphi 0, %s456
      %s458 = sphi 0, %s456
      %s459 = sphi 0, %s458
      %s473 = sphi 0, %s459
      %s477 = sphi 0, %s477
      %s479 = sphi 0, %s477
      %s480 = sphi 0, %s479
      %s494 = sphi 0, %s480
      %s498 = sphi 0, %s498
      %s500 = sphi 0, %s498
      %s501 = sphi 0, %s500
      %s515 = sphi 0, %s501
      %s521 = sphi 0, %s523
      %s524 = sphi 0, %s521
      %s525 = sphi 0, %s524
      %s541 = sphi 0, %s525
    $region4: #{frozen_clip_image_embedder.3} parent=1 // loop_header_branch
      %31 = sbr.rel (%p29) target = $region8
    $region5: #{frozen_clip_image_embedder.3} parent=1 // loop_body
      %s33 = ssub.s32 %s28, 1
      %s34 = ssub.s32 %s28, 2
      %s44 = sadd.s32 1, %s37
      %p45 = scmp.ge.s32.totalorder %s44, 2
      %s46 = scalar_select %p45, 0, %s44
      %s47 = sadd.s32 1, %s36
      %s48 = scalar_select %p45, %s47, %s36
      %p49 = scmp.ge.s32.totalorder %s48, 2
      %s50 = scalar_select %p49, 0, %s48
      %s51 = sadd.s32 1, %s35
      %s52 = scalar_select %p49, %s51, %s35
      %p53 = scmp.ge.s32.totalorder %s52, 2
      %s54 = scalar_select %p53, 0, %s52
      %s55 = ssub.s32 %s35, %s54
      %p56 = scmp.eq.s32.totalorder %s55, 0
      %s58 = sadd.s32 %s57, 1
      %s59 = scalar_select %p56, %s57, %s58
      %p62 = pneg %p56
      %p63 = scmp.eq.s32.totalorder %s28, 7
      %p64 = por %p62, %p63
      %p65 = scmp.ne.s32.totalorder %s57, %s60
      %p66 = scmp.eq.s32.totalorder %s28, 0
      %p67 = por %p65, %p66
      %p68 = scmp.ne.s32.totalorder %s57, %s60
      %p69 = scmp.eq.s32.totalorder %s33, 7
      %p70 = por %p68, %p69
      %p71 = scmp.ne.s32.totalorder %s60, %s61
      %p72 = scmp.eq.s32.totalorder %s33, 0
      %p73 = por %p71, %p72
      %p74 = scmp.ne.s32.totalorder %s60, %s61
      %p75 = scmp.eq.s32.totalorder %s34, 7
      %p76 = por %p74, %p75
      %p78 = scmp.ne.s32.totalorder %s61, %s77
      %p79 = scmp.eq.s32.totalorder %s34, 0
      %p80 = por %p78, %p79
      %s82 = sadd.s32 %s81, 1
      %p85 = scmp.eq.s32.totalorder %s28, 7
      %p86 = scmp.ne.s32.totalorder %s81, %s83
      %p87 = scmp.eq.s32.totalorder %s28, 0
      %p88 = por %p86, %p87
      %p89 = scmp.ne.s32.totalorder %s81, %s83
      %p90 = scmp.eq.s32.totalorder %s33, 7
      %p91 = por %p89, %p90
      %p92 = scmp.ne.s32.totalorder %s83, %s84
      %p93 = scmp.eq.s32.totalorder %s33, 0
      %p94 = por %p92, %p93
      %p95 = scmp.ne.s32.totalorder %s83, %s84
      %p96 = scmp.eq.s32.totalorder %s34, 7
      %p97 = por %p95, %p96
      %p99 = scmp.ne.s32.totalorder %s84, %s98
      %p100 = scmp.eq.s32.totalorder %s34, 0
      %p101 = por %p99, %p100
      %s103 = sadd.s32 %s102, 1
      %p106 = scmp.eq.s32.totalorder %s28, 7
      %p107 = scmp.ne.s32.totalorder %s102, %s104
      %p108 = scmp.eq.s32.totalorder %s28, 0
      %p109 = por %p107, %p108
      %p110 = scmp.ne.s32.totalorder %s102, %s104
      %p111 = scmp.eq.s32.totalorder %s33, 7
      %p112 = por %p110, %p111
      %p113 = scmp.ne.s32.totalorder %s104, %s105
      %p114 = scmp.eq.s32.totalorder %s33, 0
      %p115 = por %p113, %p114
      %p116 = scmp.ne.s32.totalorder %s104, %s105
      %p117 = scmp.eq.s32.totalorder %s34, 7
      %p118 = por %p116, %p117
      %p120 = scmp.ne.s32.totalorder %s105, %s119
      %p121 = scmp.eq.s32.totalorder %s34, 0
      %p122 = por %p120, %p121
      %s124 = sadd.s32 %s123, 1
      %p127 = scmp.eq.s32.totalorder %s28, 7
      %p128 = scmp.ne.s32.totalorder %s123, %s125
      %p129 = scmp.eq.s32.totalorder %s28, 0
      %p130 = por %p128, %p129
      %p131 = scmp.ne.s32.totalorder %s123, %s125
      %p132 = scmp.eq.s32.totalorder %s33, 7
      %p133 = por %p131, %p132
      %p134 = scmp.ne.s32.totalorder %s125, %s126
      %p135 = scmp.eq.s32.totalorder %s33, 0
      %p136 = por %p134, %p135
      %p137 = scmp.ne.s32.totalorder %s125, %s126
      %p138 = scmp.eq.s32.totalorder %s34, 7
      %p139 = por %p137, %p138
      %p141 = scmp.ne.s32.totalorder %s126, %s140
      %p142 = scmp.eq.s32.totalorder %s34, 0
      %p143 = por %p141, %p142
      %s144 = ssub.s32 %s36, %s50
      %p145 = scmp.eq.s32.totalorder %s144, 0
      %s147 = sadd.s32 %s146, 1
      %s148 = scalar_select %p145, %s146, %s147
      %p151 = pneg %p145
      %p152 = scmp.eq.s32.totalorder %s28, 7
      %p153 = por %p151, %p152
      %p154 = scmp.ne.s32.totalorder %s146, %s149
      %p155 = scmp.eq.s32.totalorder %s28, 0
      %p156 = por %p154, %p155
      %p157 = scmp.ne.s32.totalorder %s146, %s149
      %p158 = scmp.eq.s32.totalorder %s33, 7
      %p159 = por %p157, %p158
      %p160 = scmp.ne.s32.totalorder %s149, %s150
      %p161 = scmp.eq.s32.totalorder %s33, 0
      %p162 = por %p160, %p161
      %p163 = scmp.ne.s32.totalorder %s149, %s150
      %p164 = scmp.eq.s32.totalorder %s34, 7
      %p165 = por %p163, %p164
      %p167 = scmp.ne.s32.totalorder %s150, %s166
      %p168 = scmp.eq.s32.totalorder %s34, 0
      %p169 = por %p167, %p168
      %s170 = ssub.s32 %s36, %s50
      %p171 = scmp.eq.s32.totalorder %s170, 0
      %s173 = sadd.s32 %s172, 1
      %s174 = scalar_select %p171, %s172, %s173
      %p177 = pneg %p171
      %p178 = scmp.eq.s32.totalorder %s28, 7
      %p179 = por %p177, %p178
      %p180 = scmp.ne.s32.totalorder %s172, %s175
      %p181 = scmp.eq.s32.totalorder %s28, 0
      %p182 = por %p180, %p181
      %p183 = scmp.ne.s32.totalorder %s172, %s175
      %p184 = scmp.eq.s32.totalorder %s33, 7
      %p185 = por %p183, %p184
      %p186 = scmp.ne.s32.totalorder %s175, %s176
      %p187 = scmp.eq.s32.totalorder %s33, 0
      %p188 = por %p186, %p187
      %p189 = scmp.ne.s32.totalorder %s175, %s176
      %p190 = scmp.eq.s32.totalorder %s34, 7
      %p191 = por %p189, %p190
      %p193 = scmp.ne.s32.totalorder %s176, %s192
      %p194 = scmp.eq.s32.totalorder %s34, 0
      %p195 = por %p193, %p194
      %s196 = ssub.s32 %s36, %s50
      %p197 = scmp.eq.s32.totalorder %s196, 0
      %s199 = sadd.s32 %s198, 1
      %s200 = scalar_select %p197, %s198, %s199
      %p203 = pneg %p197
      %p204 = scmp.eq.s32.totalorder %s28, 7
      %p205 = por %p203, %p204
      %p206 = scmp.ne.s32.totalorder %s198, %s201
      %p207 = scmp.eq.s32.totalorder %s28, 0
      %p208 = por %p206, %p207
      %p209 = scmp.ne.s32.totalorder %s198, %s201
      %p210 = scmp.eq.s32.totalorder %s33, 7
      %p211 = por %p209, %p210
      %p212 = scmp.ne.s32.totalorder %s201, %s202
      %p213 = scmp.eq.s32.totalorder %s33, 0
      %p214 = por %p212, %p213
      %p215 = scmp.ne.s32.totalorder %s201, %s202
      %p216 = scmp.eq.s32.totalorder %s34, 7
      %p217 = por %p215, %p216
      %p219 = scmp.ne.s32.totalorder %s202, %s218
      %p220 = scmp.eq.s32.totalorder %s34, 0
      %p221 = por %p219, %p220
      %s222 = ssub.s32 %s36, %s50
      %p223 = scmp.eq.s32.totalorder %s222, 0
      %s225 = sadd.s32 %s224, 1
      %s226 = scalar_select %p223, %s224, %s225
      %p229 = pneg %p223
      %p230 = scmp.eq.s32.totalorder %s28, 7
      %p231 = por %p229, %p230
      %p232 = scmp.ne.s32.totalorder %s224, %s227
      %p233 = scmp.eq.s32.totalorder %s28, 0
      %p234 = por %p232, %p233
      %p235 = scmp.ne.s32.totalorder %s224, %s227
      %p236 = scmp.eq.s32.totalorder %s33, 7
      %p237 = por %p235, %p236
      %p238 = scmp.ne.s32.totalorder %s227, %s228
      %p239 = scmp.eq.s32.totalorder %s33, 0
      %p240 = por %p238, %p239
      %p241 = scmp.ne.s32.totalorder %s227, %s228
      %p242 = scmp.eq.s32.totalorder %s34, 7
      %p243 = por %p241, %p242
      %p245 = scmp.ne.s32.totalorder %s228, %s244
      %p246 = scmp.eq.s32.totalorder %s34, 0
      %p247 = por %p245, %p246
      %s248 = ssub.s32 %s36, %s50
      %p249 = scmp.eq.s32.totalorder %s248, 0
      %s251 = sadd.s32 %s250, 1
      %s252 = scalar_select %p249, %s250, %s251
      %p255 = pneg %p249
      %p256 = scmp.eq.s32.totalorder %s28, 7
      %p257 = por %p255, %p256
      %p258 = scmp.ne.s32.totalorder %s250, %s253
      %p259 = scmp.eq.s32.totalorder %s28, 0
      %p260 = por %p258, %p259
      %p261 = scmp.ne.s32.totalorder %s250, %s253
      %p262 = scmp.eq.s32.totalorder %s33, 7
      %p263 = por %p261, %p262
      %p264 = scmp.ne.s32.totalorder %s253, %s254
      %p265 = scmp.eq.s32.totalorder %s33, 0
      %p266 = por %p264, %p265
      %p267 = scmp.ne.s32.totalorder %s253, %s254
      %p268 = scmp.eq.s32.totalorder %s34, 7
      %p269 = por %p267, %p268
      %p271 = scmp.ne.s32.totalorder %s254, %s270
      %p272 = scmp.eq.s32.totalorder %s34, 0
      %p273 = por %p271, %p272
      %s274 = ssub.s32 %s36, %s50
      %p275 = scmp.eq.s32.totalorder %s274, 0
      %s277 = sadd.s32 %s276, 1
      %s278 = scalar_select %p275, %s276, %s277
      %p281 = pneg %p275
      %p282 = scmp.eq.s32.totalorder %s28, 7
      %p283 = por %p281, %p282
      %p284 = scmp.ne.s32.totalorder %s276, %s279
      %p285 = scmp.eq.s32.totalorder %s28, 0
      %p286 = por %p284, %p285
      %p287 = scmp.ne.s32.totalorder %s276, %s279
      %p288 = scmp.eq.s32.totalorder %s33, 7
      %p289 = por %p287, %p288
      %p290 = scmp.ne.s32.totalorder %s279, %s280
      %p291 = scmp.eq.s32.totalorder %s33, 0
      %p292 = por %p290, %p291
      %p293 = scmp.ne.s32.totalorder %s279, %s280
      %p294 = scmp.eq.s32.totalorder %s34, 7
      %p295 = por %p293, %p294
      %p297 = scmp.ne.s32.totalorder %s280, %s296
      %p298 = scmp.eq.s32.totalorder %s34, 0
      %p299 = por %p297, %p298
      %s300 = ssub.s32 %s36, %s50
      %p301 = scmp.eq.s32.totalorder %s300, 0
      %s303 = sadd.s32 %s302, 1
      %s304 = scalar_select %p301, %s302, %s303
      %p307 = pneg %p301
      %p308 = scmp.eq.s32.totalorder %s28, 7
      %p309 = por %p307, %p308
      %p310 = scmp.ne.s32.totalorder %s302, %s305
      %p311 = scmp.eq.s32.totalorder %s28, 0
      %p312 = por %p310, %p311
      %p313 = scmp.ne.s32.totalorder %s302, %s305
      %p314 = scmp.eq.s32.totalorder %s33, 7
      %p315 = por %p313, %p314
      %p316 = scmp.ne.s32.totalorder %s305, %s306
      %p317 = scmp.eq.s32.totalorder %s33, 0
      %p318 = por %p316, %p317
      %p319 = scmp.ne.s32.totalorder %s305, %s306
      %p320 = scmp.eq.s32.totalorder %s34, 7
      %p321 = por %p319, %p320
      %p323 = scmp.ne.s32.totalorder %s306, %s322
      %p324 = scmp.eq.s32.totalorder %s34, 0
      %p325 = por %p323, %p324
      %s326 = ssub.s32 %s36, %s50
      %p327 = scmp.eq.s32.totalorder %s326, 0
      %s329 = sadd.s32 %s328, 1
      %s330 = scalar_select %p327, %s328, %s329
      %p333 = pneg %p327
      %p334 = scmp.eq.s32.totalorder %s28, 7
      %p335 = por %p333, %p334
      %p336 = scmp.ne.s32.totalorder %s328, %s331
      %p337 = scmp.eq.s32.totalorder %s28, 0
      %p338 = por %p336, %p337
      %p339 = scmp.ne.s32.totalorder %s328, %s331
      %p340 = scmp.eq.s32.totalorder %s33, 7
      %p341 = por %p339, %p340
      %p342 = scmp.ne.s32.totalorder %s331, %s332
      %p343 = scmp.eq.s32.totalorder %s33, 0
      %p344 = por %p342, %p343
      %p345 = scmp.ne.s32.totalorder %s331, %s332
      %p346 = scmp.eq.s32.totalorder %s34, 7
      %p347 = por %p345, %p346
      %p349 = scmp.ne.s32.totalorder %s332, %s348
      %p350 = scmp.eq.s32.totalorder %s34, 0
      %p351 = por %p349, %p350
      %s352 = ssub.s32 %s36, %s50
      %p353 = scmp.eq.s32.totalorder %s352, 0
      %s355 = sadd.s32 %s354, 1
      %s356 = scalar_select %p353, %s354, %s355
      %p359 = pneg %p353
      %p360 = scmp.eq.s32.totalorder %s28, 7
      %p361 = por %p359, %p360
      %p362 = scmp.ne.s32.totalorder %s354, %s357
      %p363 = scmp.eq.s32.totalorder %s28, 0
      %p364 = por %p362, %p363
      %p365 = scmp.ne.s32.totalorder %s354, %s357
      %p366 = scmp.eq.s32.totalorder %s33, 7
      %p367 = por %p365, %p366
      %p368 = scmp.ne.s32.totalorder %s357, %s358
      %p369 = scmp.eq.s32.totalorder %s33, 0
      %p370 = por %p368, %p369
      %p371 = scmp.ne.s32.totalorder %s357, %s358
      %p372 = scmp.eq.s32.totalorder %s34, 7
      %p373 = por %p371, %p372
      %p375 = scmp.ne.s32.totalorder %s358, %s374
      %p376 = scmp.eq.s32.totalorder %s34, 0
      %p377 = por %p375, %p376
      %s378 = ssub.s32 %s36, %s50
      %p379 = scmp.eq.s32.totalorder %s378, 0
      %s381 = sadd.s32 %s380, 1
      %s382 = scalar_select %p379, %s380, %s381
      %p385 = pneg %p379
      %p386 = scmp.eq.s32.totalorder %s28, 7
      %p387 = por %p385, %p386
      %p388 = scmp.ne.s32.totalorder %s380, %s383
      %p389 = scmp.eq.s32.totalorder %s28, 0
      %p390 = por %p388, %p389
      %p391 = scmp.ne.s32.totalorder %s380, %s383
      %p392 = scmp.eq.s32.totalorder %s33, 7
      %p393 = por %p391, %p392
      %p394 = scmp.ne.s32.totalorder %s383, %s384
      %p395 = scmp.eq.s32.totalorder %s33, 0
      %p396 = por %p394, %p395
      %p397 = scmp.ne.s32.totalorder %s383, %s384
      %p398 = scmp.eq.s32.totalorder %s34, 7
      %p399 = por %p397, %p398
      %p401 = scmp.ne.s32.totalorder %s384, %s400
      %p402 = scmp.eq.s32.totalorder %s34, 0
      %p403 = por %p401, %p402
      %s404 = ssub.s32 %s36, %s50
      %p405 = scmp.eq.s32.totalorder %s404, 0
      %s407 = sadd.s32 %s406, 1
      %s408 = scalar_select %p405, %s406, %s407
      %p411 = pneg %p405
      %p412 = scmp.eq.s32.totalorder %s28, 7
      %p413 = por %p411, %p412
      %p414 = scmp.ne.s32.totalorder %s406, %s409
      %p415 = scmp.eq.s32.totalorder %s28, 0
      %p416 = por %p414, %p415
      %p417 = scmp.ne.s32.totalorder %s406, %s409
      %p418 = scmp.eq.s32.totalorder %s33, 7
      %p419 = por %p417, %p418
      %p420 = scmp.ne.s32.totalorder %s409, %s410
      %p421 = scmp.eq.s32.totalorder %s33, 0
      %p422 = por %p420, %p421
      %p423 = scmp.ne.s32.totalorder %s409, %s410
      %p424 = scmp.eq.s32.totalorder %s34, 7
      %p425 = por %p423, %p424
      %p427 = scmp.ne.s32.totalorder %s410, %s426
      %p428 = scmp.eq.s32.totalorder %s34, 0
      %p429 = por %p427, %p428
      %s430 = ssub.s32 %s36, %s50
      %p431 = scmp.eq.s32.totalorder %s430, 0
      %s433 = sadd.s32 %s432, 1
      %s434 = scalar_select %p431, %s432, %s433
      %p437 = pneg %p431
      %p438 = scmp.eq.s32.totalorder %s28, 7
      %p439 = por %p437, %p438
      %p440 = scmp.ne.s32.totalorder %s432, %s435
      %p441 = scmp.eq.s32.totalorder %s28, 0
      %p442 = por %p440, %p441
      %p443 = scmp.ne.s32.totalorder %s432, %s435
      %p444 = scmp.eq.s32.totalorder %s33, 7
      %p445 = por %p443, %p444
      %p446 = scmp.ne.s32.totalorder %s435, %s436
      %p447 = scmp.eq.s32.totalorder %s33, 0
      %p448 = por %p446, %p447
      %p449 = scmp.ne.s32.totalorder %s435, %s436
      %p450 = scmp.eq.s32.totalorder %s34, 7
      %p451 = por %p449, %p450
      %p453 = scmp.ne.s32.totalorder %s436, %s452
      %p454 = scmp.eq.s32.totalorder %s34, 0
      %p455 = por %p453, %p454
      %s457 = sadd.s32 %s456, 1
      %p460 = scmp.eq.s32.totalorder %s28, 7
      %p461 = scmp.ne.s32.totalorder %s456, %s458
      %p462 = scmp.eq.s32.totalorder %s28, 0
      %p463 = por %p461, %p462
      %p464 = scmp.ne.s32.totalorder %s456, %s458
      %p465 = scmp.eq.s32.totalorder %s33, 7
      %p466 = por %p464, %p465
      %p467 = scmp.ne.s32.totalorder %s458, %s459
      %p468 = scmp.eq.s32.totalorder %s33, 0
      %p469 = por %p467, %p468
      %p470 = scmp.ne.s32.totalorder %s458, %s459
      %p471 = scmp.eq.s32.totalorder %s34, 7
      %p472 = por %p470, %p471
      %p474 = scmp.ne.s32.totalorder %s459, %s473
      %p475 = scmp.eq.s32.totalorder %s34, 0
      %p476 = por %p474, %p475
      %s478 = sadd.s32 %s477, 1
      %p481 = scmp.eq.s32.totalorder %s28, 7
      %p482 = scmp.ne.s32.totalorder %s477, %s479
      %p483 = scmp.eq.s32.totalorder %s28, 0
      %p484 = por %p482, %p483
      %p485 = scmp.ne.s32.totalorder %s477, %s479
      %p486 = scmp.eq.s32.totalorder %s33, 7
      %p487 = por %p485, %p486
      %p488 = scmp.ne.s32.totalorder %s479, %s480
      %p489 = scmp.eq.s32.totalorder %s33, 0
      %p490 = por %p488, %p489
      %p491 = scmp.ne.s32.totalorder %s479, %s480
      %p492 = scmp.eq.s32.totalorder %s34, 7
      %p493 = por %p491, %p492
      %p495 = scmp.ne.s32.totalorder %s480, %s494
      %p496 = scmp.eq.s32.totalorder %s34, 0
      %p497 = por %p495, %p496
      %s499 = sadd.s32 %s498, 1
      %p502 = scmp.eq.s32.totalorder %s28, 7
      %p503 = scmp.ne.s32.totalorder %s498, %s500
      %p504 = scmp.eq.s32.totalorder %s28, 0
      %p505 = por %p503, %p504
      %p506 = scmp.ne.s32.totalorder %s498, %s500
      %p507 = scmp.eq.s32.totalorder %s33, 7
      %p508 = por %p506, %p507
      %p509 = scmp.ne.s32.totalorder %s500, %s501
      %p510 = scmp.eq.s32.totalorder %s33, 0
      %p511 = por %p509, %p510
      %p512 = scmp.ne.s32.totalorder %s500, %s501
      %p513 = scmp.eq.s32.totalorder %s34, 7
      %p514 = por %p512, %p513
      %p516 = scmp.ne.s32.totalorder %s501, %s515
      %p517 = scmp.eq.s32.totalorder %s34, 0
      %p518 = por %p516, %p517
      %s519 = ssub.s32 %s35, %s54
      %p520 = scmp.eq.s32.totalorder %s519, 0
      %s522 = sadd.s32 %s521, 1
      %s523 = scalar_select %p520, %s521, %s522
      %p526 = pneg %p520
      %p527 = scmp.eq.s32.totalorder %s28, 7
      %p528 = por %p526, %p527
      %p529 = scmp.ne.s32.totalorder %s521, %s524
      %p530 = scmp.eq.s32.totalorder %s28, 0
      %p531 = por %p529, %p530
      %p532 = scmp.ne.s32.totalorder %s521, %s524
      %p533 = scmp.eq.s32.totalorder %s33, 7
      %p534 = por %p532, %p533
      %p535 = scmp.ne.s32.totalorder %s524, %s525
      %p536 = scmp.eq.s32.totalorder %s33, 0
      %p537 = por %p535, %p536
      %p538 = scmp.ne.s32.totalorder %s524, %s525
      %p539 = scmp.eq.s32.totalorder %s34, 7
      %p540 = por %p538, %p539
      %p542 = scmp.ne.s32.totalorder %s525, %s541
      %p543 = scmp.eq.s32.totalorder %s34, 0
      %p544 = por %p542, %p543
      %p545 = scmp.le.s32.totalorder 1, %s28
      %p546 = scmp.lt.s32.totalorder %s28, 9
      %p547 = pnand %p545, %p546
      %p548 = pneg %p547
      // Predicated region
      $region9: #{frozen_clip_image_embedder.3} parent=5 // pred_check
        _
      $region10: #{frozen_clip_image_embedder.3} parent=5 // pred_check_branch
        %550 = sbr.rel (%p547) target = $region12
      $region11: #{frozen_clip_image_embedder.3} parent=5 // pred_region
        %s551 = ssub.s32 %s28, 1
        // Predicated region
        $region13: #{frozen_clip_image_embedder.3} parent=11 // pred_check
          %p552 = pneg %p94
        $region14: #{frozen_clip_image_embedder.3} parent=11 // pred_check_branch
          %554 = sbr.rel (%p552) target = $region16
        $region15: #{frozen_clip_image_embedder.3} parent=11 // pred_region
          _
        $region16: #{frozen_clip_image_embedder.3} parent=11 // pred_fallthru
          _
        // Predicated region
        $region17: #{frozen_clip_image_embedder.3} parent=11 // pred_check
          %p555 = pneg %p115
        $region18: #{frozen_clip_image_embedder.3} parent=11 // pred_check_branch
          %557 = sbr.rel (%p555) target = $region20
        $region19: #{frozen_clip_image_embedder.3} parent=11 // pred_region
          _
        $region20: #{frozen_clip_image_embedder.3} parent=11 // pred_fallthru
          _
        // Predicated region
        $region21: #{frozen_clip_image_embedder.3} parent=11 // pred_check
          %p558 = pneg %p136
        $region22: #{frozen_clip_image_embedder.3} parent=11 // pred_check_branch
          %560 = sbr.rel (%p558) target = $region24
        $region23: #{frozen_clip_image_embedder.3} parent=11 // pred_region
          _
        $region24: #{frozen_clip_image_embedder.3} parent=11 // pred_fallthru
          _
        // Predicated region
        $region25: #{frozen_clip_image_embedder.3} parent=11 // pred_check
          %p561 = pneg %p469
        $region26: #{frozen_clip_image_embedder.3} parent=11 // pred_check_branch
          %563 = sbr.rel (%p561) target = $region28
        $region27: #{frozen_clip_image_embedder.3} parent=11 // pred_region
          _
        $region28: #{frozen_clip_image_embedder.3} parent=11 // pred_fallthru
          _
        // Predicated region
        $region29: #{frozen_clip_image_embedder.3} parent=11 // pred_check
          %p564 = pneg %p490
        $region30: #{frozen_clip_image_embedder.3} parent=11 // pred_check_branch
          %566 = sbr.rel (%p564) target = $region32
        $region31: #{frozen_clip_image_embedder.3} parent=11 // pred_region
          _
        $region32: #{frozen_clip_image_embedder.3} parent=11 // pred_fallthru
          _
        // Predicated region
        $region33: #{frozen_clip_image_embedder.3} parent=11 // pred_check
          %p567 = pneg %p511
        $region34: #{frozen_clip_image_embedder.3} parent=11 // pred_check_branch
          %569 = sbr.rel (%p567) target = $region36
        $region35: #{frozen_clip_image_embedder.3} parent=11 // pred_region
          _
        $region36: #{frozen_clip_image_embedder.3} parent=11 // pred_fallthru
          _
      $region12: #{frozen_clip_image_embedder.3} parent=5 // pred_fallthru
        _
      %p570 = scmp.lt.s32.totalorder %s28, 8
      // Predicated region
      $region37: #{frozen_clip_image_embedder.3} parent=5 // pred_check
        %p571 = pneg %p570
      $region38: #{frozen_clip_image_embedder.3} parent=5 // pred_check_branch
        %573 = sbr.rel (%p571) target = $region40
      $region39: #{frozen_clip_image_embedder.3} parent=5 // pred_region
        // Predicated region
        $region41: #{frozen_clip_image_embedder.3} parent=39 // pred_check
          %p574 = pneg %p67
        $region42: #{frozen_clip_image_embedder.3} parent=39 // pred_check_branch
          %576 = sbr.rel (%p574) target = $region44
        $region43: #{frozen_clip_image_embedder.3} parent=39 // pred_region
          %s577 = smul.u32 2, %s35
          %p578 = scmp.lt.s32.totalorder %s577, 3
          %s579 = scalar_select %p578, %s577, 3
          %s580 = smul.addr %s579, 3
          %s581 = smul.addr %s580, 8
          %s582 = scalar_lea.vmem %s0, %s581
          %s583 = smul.u32 2, %s35
        $region44: #{frozen_clip_image_embedder.3} parent=39 // pred_fallthru
          _
        // Predicated region
        $region45: #{frozen_clip_image_embedder.3} parent=39 // pred_check
          %p584 = pneg %p156
        $region46: #{frozen_clip_image_embedder.3} parent=39 // pred_check_branch
          %586 = sbr.rel (%p584) target = $region48
        $region47: #{frozen_clip_image_embedder.3} parent=39 // pred_region
          %p587 = scmp.lt.s32.totalorder %s36, 1
          %s588 = scalar_select %p587, %s36, 1
          %s589 = scalar_lea.vmem %s4, %s588
        $region48: #{frozen_clip_image_embedder.3} parent=39 // pred_fallthru
          _
        // Predicated region
        $region49: #{frozen_clip_image_embedder.3} parent=39 // pred_check
          %p590 = pneg %p182
        $region50: #{frozen_clip_image_embedder.3} parent=39 // pred_check_branch
          %592 = sbr.rel (%p590) target = $region52
        $region51: #{frozen_clip_image_embedder.3} parent=39 // pred_region
          %p593 = scmp.lt.s32.totalorder %s36, 1
          %s594 = scalar_select %p593, %s36, 1
          %s595 = scalar_lea.vmem %s5, %s594
        $region52: #{frozen_clip_image_embedder.3} parent=39 // pred_fallthru
          _
        // Predicated region
        $region53: #{frozen_clip_image_embedder.3} parent=39 // pred_check
          %p596 = pneg %p208
        $region54: #{frozen_clip_image_embedder.3} parent=39 // pred_check_branch
          %598 = sbr.rel (%p596) target = $region56
        $region55: #{frozen_clip_image_embedder.3} parent=39 // pred_region
          %p599 = scmp.lt.s32.totalorder %s36, 1
          %s600 = scalar_select %p599, %s36, 1
          %s601 = smul.addr %s600, 16
          %s602 = smul.addr %s601, 4
          %s603 = scalar_lea.vmem %s6, %s602
        $region56: #{frozen_clip_image_embedder.3} parent=39 // pred_fallthru
          _
        // Predicated region
        $region57: #{frozen_clip_image_embedder.3} parent=39 // pred_check
          %p604 = pneg %p234
        $region58: #{frozen_clip_image_embedder.3} parent=39 // pred_check_branch
          %606 = sbr.rel (%p604) target = $region60
        $region59: #{frozen_clip_image_embedder.3} parent=39 // pred_region
          %p607 = scmp.lt.s32.totalorder %s36, 1
          %s608 = scalar_select %p607, %s36, 1
          %s609 = smul.addr %s608, 2
          %s610 = scalar_lea.vmem %s7, %s609
        $region60: #{frozen_clip_image_embedder.3} parent=39 // pred_fallthru
          _
        // Predicated region
        $region61: #{frozen_clip_image_embedder.3} parent=39 // pred_check
          %p611 = pneg %p260
        $region62: #{frozen_clip_image_embedder.3} parent=39 // pred_check_branch
          %613 = sbr.rel (%p611) target = $region64
        $region63: #{frozen_clip_image_embedder.3} parent=39 // pred_region
          %p614 = scmp.lt.s32.totalorder %s36, 1
          %s615 = scalar_select %p614, %s36, 1
          %s616 = smul.addr %s615, 8
          %s617 = smul.addr %s616, 4
          %s618 = scalar_lea.vmem %s8, %s617
        $region64: #{frozen_clip_image_embedder.3} parent=39 // pred_fallthru
          _
        // Predicated region
        $region65: #{frozen_clip_image_embedder.3} parent=39 // pred_check
          %p619 = pneg %p286
        $region66: #{frozen_clip_image_embedder.3} parent=39 // pred_check_branch
          %621 = sbr.rel (%p619) target = $region68
        $region67: #{frozen_clip_image_embedder.3} parent=39 // pred_region
          %p622 = scmp.lt.s32.totalorder %s36, 1
          %s623 = scalar_select %p622, %s36, 1
          %s624 = scalar_lea.vmem %s9, %s623
        $region68: #{frozen_clip_image_embedder.3} parent=39 // pred_fallthru
          _
        // Predicated region
        $region69: #{frozen_clip_image_embedder.3} parent=39 // pred_check
          %p625 = pneg %p312
        $region70: #{frozen_clip_image_embedder.3} parent=39 // pred_check_branch
          %627 = sbr.rel (%p625) target = $region72
        $region71: #{frozen_clip_image_embedder.3} parent=39 // pred_region
          %p628 = scmp.lt.s32.totalorder %s36, 1
          %s629 = scalar_select %p628, %s36, 1
          %s630 = scalar_lea.vmem %s10, %s629
        $region72: #{frozen_clip_image_embedder.3} parent=39 // pred_fallthru
          _
        // Predicated region
        $region73: #{frozen_clip_image_embedder.3} parent=39 // pred_check
          %p631 = pneg %p338
        $region74: #{frozen_clip_image_embedder.3} parent=39 // pred_check_branch
          %633 = sbr.rel (%p631) target = $region76
        $region75: #{frozen_clip_image_embedder.3} parent=39 // pred_region
          %p634 = scmp.lt.s32.totalorder %s36, 1
          %s635 = scalar_select %p634, %s36, 1
          %s636 = scalar_lea.vmem %s11, %s635
        $region76: #{frozen_clip_image_embedder.3} parent=39 // pred_fallthru
          _
        // Predicated region
        $region77: #{frozen_clip_image_embedder.3} parent=39 // pred_check
          %p637 = pneg %p364
        $region78: #{frozen_clip_image_embedder.3} parent=39 // pred_check_branch
          %639 = sbr.rel (%p637) target = $region80
        $region79: #{frozen_clip_image_embedder.3} parent=39 // pred_region
          %p640 = scmp.lt.s32.totalorder %s36, 1
          %s641 = scalar_select %p640, %s36, 1
          %s642 = smul.addr %s641, 16
          %s643 = smul.addr %s642, 4
          %s644 = scalar_lea.vmem %s12, %s643
        $region80: #{frozen_clip_image_embedder.3} parent=39 // pred_fallthru
          _
        // Predicated region
        $region81: #{frozen_clip_image_embedder.3} parent=39 // pred_check
          %p645 = pneg %p390
        $region82: #{frozen_clip_image_embedder.3} parent=39 // pred_check_branch
          %647 = sbr.rel (%p645) target = $region84
        $region83: #{frozen_clip_image_embedder.3} parent=39 // pred_region
          %p648 = scmp.lt.s32.totalorder %s36, 1
          %s649 = scalar_select %p648, %s36, 1
          %s650 = smul.addr %s649, 2
          %s651 = scalar_lea.vmem %s13, %s650
        $region84: #{frozen_clip_image_embedder.3} parent=39 // pred_fallthru
          _
        // Predicated region
        $region85: #{frozen_clip_image_embedder.3} parent=39 // pred_check
          %p652 = pneg %p416
        $region86: #{frozen_clip_image_embedder.3} parent=39 // pred_check_branch
          %654 = sbr.rel (%p652) target = $region88
        $region87: #{frozen_clip_image_embedder.3} parent=39 // pred_region
          %p655 = scmp.lt.s32.totalorder %s36, 1
          %s656 = scalar_select %p655, %s36, 1
          %s657 = smul.addr %s656, 32
          %s658 = smul.addr %s657, 4
          %s659 = scalar_lea.vmem %s14, %s658
        $region88: #{frozen_clip_image_embedder.3} parent=39 // pred_fallthru
          _
        // Predicated region
        $region89: #{frozen_clip_image_embedder.3} parent=39 // pred_check
          %p660 = pneg %p442
        $region90: #{frozen_clip_image_embedder.3} parent=39 // pred_check_branch
          %662 = sbr.rel (%p660) target = $region92
        $region91: #{frozen_clip_image_embedder.3} parent=39 // pred_region
          %p663 = scmp.lt.s32.totalorder %s36, 1
          %s664 = scalar_select %p663, %s36, 1
          %s665 = scalar_lea.vmem %s15, %s664
        $region92: #{frozen_clip_image_embedder.3} parent=39 // pred_fallthru
          _
      $region40: #{frozen_clip_image_embedder.3} parent=5 // pred_fallthru
        _
      %p666 = scmp.le.s32.totalorder 1, %s28
      %p667 = scmp.lt.s32.totalorder %s28, 9
      %p668 = pnand %p666, %p667
      %p669 = pneg %p668
      // Predicated region
      $region93: #{frozen_clip_image_embedder.3} parent=5 // pred_check
        _
      $region94: #{frozen_clip_image_embedder.3} parent=5 // pred_check_branch
        %671 = sbr.rel (%p668) target = $region96
      $region95: #{frozen_clip_image_embedder.3} parent=5 // pred_region
        %s672 = ssub.s32 %s28, 1
        %s673 = smul.u32 2, %s38
        %p674 = scmp.lt.s32.totalorder %s673, 3
        %s675 = scalar_select %p674, %s673, 3
        %s676 = smul.addr %s675, 3
        %s677 = smul.addr %s676, 8
        %s678 = scalar_lea.vmem %s0, %s677
        %p679 = pneg %p73
        %p680 = pneg %p70
        %p681 = pneg %p94
        %p682 = pneg %p91
        %p683 = pneg %p115
        %p684 = pneg %p112
        %p685 = pneg %p136
        %p686 = pneg %p133
        %p687 = scmp.lt.s32.totalorder %s39, 1
        %s688 = scalar_select %p687, %s39, 1
        %s689 = scalar_lea.vmem %s4, %s688
        %p690 = pneg %p162
        %p691 = pneg %p159
        %p692 = scmp.lt.s32.totalorder %s39, 1
        %s693 = scalar_select %p692, %s39, 1
        %s694 = scalar_lea.vmem %s5, %s693
        %p695 = pneg %p188
        %p696 = pneg %p185
        %p697 = scmp.lt.s32.totalorder %s39, 1
        %s698 = scalar_select %p697, %s39, 1
        %s699 = smul.addr %s698, 16
        %s700 = smul.addr %s699, 4
        %s701 = scalar_lea.vmem %s6, %s700
        %p702 = pneg %p214
        %p703 = pneg %p211
        %p704 = scmp.lt.s32.totalorder %s39, 1
        %s705 = scalar_select %p704, %s39, 1
        %s706 = smul.addr %s705, 2
        %s707 = scalar_lea.vmem %s7, %s706
        %p708 = pneg %p240
        %p709 = pneg %p237
        %p710 = scmp.lt.s32.totalorder %s39, 1
        %s711 = scalar_select %p710, %s39, 1
        %s712 = smul.addr %s711, 8
        %s713 = smul.addr %s712, 4
        %s714 = scalar_lea.vmem %s8, %s713
        %p715 = pneg %p266
        %p716 = pneg %p263
        %p717 = scmp.lt.s32.totalorder %s39, 1
        %s718 = scalar_select %p717, %s39, 1
        %s719 = scalar_lea.vmem %s9, %s718
        %p720 = pneg %p292
        %p721 = pneg %p289
        %p722 = scmp.lt.s32.totalorder %s39, 1
        %s723 = scalar_select %p722, %s39, 1
        %s724 = scalar_lea.vmem %s10, %s723
        %p725 = pneg %p318
        %p726 = pneg %p315
        %p727 = scmp.lt.s32.totalorder %s39, 1
        %s728 = scalar_select %p727, %s39, 1
        %s729 = scalar_lea.vmem %s11, %s728
        %p730 = pneg %p344
        %p731 = pneg %p341
        %p732 = scmp.lt.s32.totalorder %s39, 1
        %s733 = scalar_select %p732, %s39, 1
        %s734 = smul.addr %s733, 16
        %s735 = smul.addr %s734, 4
        %s736 = scalar_lea.vmem %s12, %s735
        %p737 = pneg %p370
        %p738 = pneg %p367
        %p739 = scmp.lt.s32.totalorder %s39, 1
        %s740 = scalar_select %p739, %s39, 1
        %s741 = smul.addr %s740, 2
        %s742 = scalar_lea.vmem %s13, %s741
        %p743 = pneg %p396
        %p744 = pneg %p393
        %p745 = scmp.lt.s32.totalorder %s39, 1
        %s746 = scalar_select %p745, %s39, 1
        %s747 = smul.addr %s746, 32
        %s748 = smul.addr %s747, 4
        %s749 = scalar_lea.vmem %s14, %s748
        %p750 = pneg %p422
        %p751 = pneg %p419
        %p752 = scmp.lt.s32.totalorder %s39, 1
        %s753 = scalar_select %p752, %s39, 1
        %s754 = scalar_lea.vmem %s15, %s753
        %p755 = pneg %p448
        %p756 = pneg %p445
        %p757 = pneg %p469
        %p758 = pneg %p466
        %p759 = pneg %p490
        %p760 = pneg %p487
        %p761 = pneg %p511
        %p762 = pneg %p508
        %p763 = pneg %p537
        %p764 = pneg %p534
        %s765 = sand.u32 %s524, 1
        %s766 = scalar_lea.sflag [#allocation6], %s765
        %s767 = sand.u32 %s524, 1
        %s768 = smul.addr %s767, 2
        %s769 = scalar_lea.vmem [#allocation5], %s768
        %s770 = smul.u32 2, %s38
        %p771 = scmp.lt.s32.totalorder %s770, 3
        %s772 = scalar_select %p771, %s770, 3
        %s773 = smul.addr %s772, 3
        %s774 = smul.addr %s773, 8
        %s775 = scalar_lea.vmem %s0, %s774
        %s776 = smul.u32 2, %s38
        %p777 = scmp.lt.s32.totalorder %s39, 1
        %s778 = scalar_select %p777, %s39, 1
        %s779 = scalar_lea.vmem %s4, %s778
        %p780 = scmp.lt.s32.totalorder %s39, 1
        %s781 = scalar_select %p780, %s39, 1
        %s782 = scalar_lea.vmem %s5, %s781
        %p783 = scmp.lt.s32.totalorder %s39, 1
        %s784 = scalar_select %p783, %s39, 1
        %s785 = smul.addr %s784, 16
        %s786 = smul.addr %s785, 4
        %s787 = scalar_lea.vmem %s6, %s786
        %p788 = scmp.lt.s32.totalorder %s39, 1
        %s789 = scalar_select %p788, %s39, 1
        %s790 = smul.addr %s789, 2
        %s791 = scalar_lea.vmem %s7, %s790
        %p792 = scmp.lt.s32.totalorder %s39, 1
        %s793 = scalar_select %p792, %s39, 1
        %s794 = smul.addr %s793, 8
        %s795 = smul.addr %s794, 4
        %s796 = scalar_lea.vmem %s8, %s795
        %p797 = scmp.lt.s32.totalorder %s39, 1
        %s798 = scalar_select %p797, %s39, 1
        %s799 = scalar_lea.vmem %s9, %s798
        %p800 = scmp.lt.s32.totalorder %s39, 1
        %s801 = scalar_select %p800, %s39, 1
        %s802 = scalar_lea.vmem %s10, %s801
        %p803 = scmp.lt.s32.totalorder %s39, 1
        %s804 = scalar_select %p803, %s39, 1
        %s805 = scalar_lea.vmem %s11, %s804
        %p806 = scmp.lt.s32.totalorder %s39, 1
        %s807 = scalar_select %p806, %s39, 1
        %s808 = smul.addr %s807, 16
        %s809 = smul.addr %s808, 4
        %s810 = scalar_lea.vmem %s12, %s809
        %p811 = scmp.lt.s32.totalorder %s39, 1
        %s812 = scalar_select %p811, %s39, 1
        %s813 = smul.addr %s812, 2
        %s814 = scalar_lea.vmem %s13, %s813
        %p815 = scmp.lt.s32.totalorder %s39, 1
        %s816 = scalar_select %p815, %s39, 1
        %s817 = smul.addr %s816, 32
        %s818 = smul.addr %s817, 4
        %s819 = scalar_lea.vmem %s14, %s818
        %p820 = scmp.lt.s32.totalorder %s39, 1
        %s821 = scalar_select %p820, %s39, 1
        %s822 = scalar_lea.vmem %s15, %s821
        %s823 = smul.u32 2, %s38
        %p827 = scmp.eq.s32.totalorder %s39, 0
        // Predicated region
        $region97: #{frozen_clip_image_embedder.3} parent=95 // pred_check
          %p828 = pneg %p827
        $region98: #{frozen_clip_image_embedder.3} parent=95 // pred_check_branch
          %830 = sbr.rel (%p828) target = $region100
        $region99: #{frozen_clip_image_embedder.3} parent=95 // pred_region
          %s831 = smul.u32 %s40, 24
          %s832 = scalar_lea.vmem %s775, %s831
          %v833 = vld [vmem:[%s832] sm:$0xff]
          %v834 = vld [vmem:[%s832 + $0x8] sm:$0xff]
          %v835 = vld [vmem:[%s832 + $0x10] sm:$0x1]
          %v836 = vld [vmem:[%s1] sm:$0xff]
          %v837 = vld [vmem:[%s1 + $0x8] sm:$0xff]
          %v838 = vld [vmem:[%s1 + $0x10] sm:$0x1]
          %v839 = vadd.f32 %v833, %v836
          %v840 = vadd.f32 %v834, %v837
          %v841 = vadd.f32 %v835, %v838
          %v842 = vld [vmem:[%s2] sm:$0x1]
          %v843 = vld [vmem:[%s3] sm:$0x1]
          %vm844 = vcmask 523264
          %v845 = vsel %vm844, %v839, 0.0
          %846 = vadd.xlane.f32.xlu0 %v845
          %v847 = vpop.xlane.xlu0 %846
          %v848 = vsel %vm844, %v840, 0.0
          %849 = vadd.xlane.f32.xlu0 %v848
          %v850 = vpop.xlane.xlu0 %849
          %vm851 = vcmask 516096
          %v852 = vsel %vm851, %v841, 0.0
          %853 = vadd.xlane.f32.xlu0 %v852
          %v854 = vpop.xlane.xlu0 %853
          %v855 = vrcp.pop 64.0
          %v856 = vmul.f32 %v847, %v855
          %v857 = vmul.f32 %v850, %v855
          %v858 = vmul.f32 %v854, %v855
          %v859 = vsub.f32 %v839, %v856
          %v860 = vsub.f32 %v840, %v857
          %v861 = vsub.f32 %v841, %v858
          %v862 = vmul.f32 %v859, %v859
          %v863 = vmul.f32 %v860, %v860
          %v864 = vmul.f32 %v861, %v861
          %v865 = vsel %vm844, %v862, 0.0
          %866 = vadd.xlane.f32.xlu0 %v865
          %v867 = vpop.xlane.xlu0 %866
          %v868 = vsel %vm844, %v863, 0.0
          %869 = vadd.xlane.f32.xlu0 %v868
          %v870 = vpop.xlane.xlu0 %869
          %v871 = vsel %vm851, %v864, 0.0
          %872 = vadd.xlane.f32.xlu0 %v871
          %v873 = vpop.xlane.xlu0 %872
          %v874 = vmul.f32 %v867, %v855
          %v875 = vmul.f32 %v870, %v855
          %v876 = vmul.f32 %v873, %v855
          %v877 = vadd.f32 %v874, 1e-05
          %v878 = vadd.f32 %v875, 1e-05
          %v879 = vadd.f32 %v876, 1e-05
          %v880 = vrsqrt.pop %v877
          %v881 = vrsqrt.pop %v878
          %v882 = vrsqrt.pop %v879
          %v883 = vmul.f32 %v859, %v880
          %v884 = vmul.f32 %v860, %v881
          %v885 = vmul.f32 %v861, %v882
          %v887 = vlaneseq
          %v888 = vshrl.u32 %v887, 7
          %v889 = vsub.s32 0, %v888
          %v890 = vrot.slane %v842, %v889
          %v892 = vmul.f32 %v883, %v890
          %v893 = vmul.f32 %v884, %v890
          %v894 = vmul.f32 %v885, %v890
          %v896 = vlaneseq
          %v897 = vshrl.u32 %v896, 7
          %v898 = vsub.s32 0, %v897
          %v899 = vrot.slane %v843, %v898
          %v901 = vadd.f32 %v892, %v899
          %v902 = vadd.f32 %v893, %v899
          %v903 = vadd.f32 %v894, %v899
          %s904 = scalar_lea.vmem [#allocation2], %s831
          %905 = vst.msk [vmem:[%s904] sm:$0xff] %vm844, %v901
          %906 = vst.msk [vmem:[%s904 + $0x8] sm:$0xff] %vm844, %v902
          %907 = vst.msk [vmem:[%s904 + $0x10] sm:$0x1] %vm851, %v903
        $region100: #{frozen_clip_image_embedder.3} parent=95 // pred_fallthru
          _
        %s908 = smul.u32 %s40, 24
        %s909 = scalar_lea.vmem [#allocation2], %s908
        %v910 = vld [vmem:[%s909] sm:$0xff]
        %v911 = vld [vmem:[%s909 + $0x8] sm:$0xff]
        %v912 = vld [vmem:[%s909 + $0x10] sm:$0x1]
        %v913 = vld [vmem:[%s779] sm:$0x1]
        %v914 = vld [vmem:[%s782] sm:$0x1]
        %vm915 = vcmask 523264
        %v916 = vsel %vm915, %v910, 0.0
        %917 = vadd.xlane.f32.xlu0 %v916
        %v918 = vpop.xlane.xlu0 %917
        %v919 = vsel %vm915, %v911, 0.0
        %920 = vadd.xlane.f32.xlu0 %v919
        %v921 = vpop.xlane.xlu0 %920
        %vm922 = vcmask 516096
        %v923 = vsel %vm922, %v912, 0.0
        %924 = vadd.xlane.f32.xlu0 %v923
        %v925 = vpop.xlane.xlu0 %924
        %v926 = vrcp.pop 64.0
        %v927 = vmul.f32 %v918, %v926
        %v928 = vmul.f32 %v921, %v926
        %v929 = vmul.f32 %v925, %v926
        %v930 = vsub.f32 %v910, %v927
        %v931 = vsub.f32 %v911, %v928
        %v932 = vsub.f32 %v912, %v929
        %v933 = vmul.f32 %v930, %v930
        %v934 = vmul.f32 %v931, %v931
        %v935 = vmul.f32 %v932, %v932
        %v936 = vsel %vm915, %v933, 0.0
        %937 = vadd.xlane.f32.xlu0 %v936
        %v938 = vpop.xlane.xlu0 %937
        %v939 = vsel %vm915, %v934, 0.0
        %940 = vadd.xlane.f32.xlu0 %v939
        %v941 = vpop.xlane.xlu0 %940
        %v942 = vsel %vm922, %v935, 0.0
        %943 = vadd.xlane.f32.xlu0 %v942
        %v944 = vpop.xlane.xlu0 %943
        %v945 = vmul.f32 %v938, %v926
        %v946 = vmul.f32 %v941, %v926
        %v947 = vmul.f32 %v944, %v926
        %v948 = vadd.f32 %v945, 1e-05
        %v949 = vadd.f32 %v946, 1e-05
        %v950 = vadd.f32 %v947, 1e-05
        %v951 = vrsqrt.pop %v948
        %v952 = vrsqrt.pop %v949
        %v953 = vrsqrt.pop %v950
        %v954 = vmul.f32 %v930, %v951
        %v955 = vmul.f32 %v931, %v952
        %v956 = vmul.f32 %v932, %v953
        %v958 = vlaneseq
        %v959 = vshrl.u32 %v958, 7
        %v960 = vsub.s32 0, %v959
        %v961 = vrot.slane %v913, %v960
        %v963 = vmul.f32 %v954, %v961
        %v964 = vmul.f32 %v955, %v961
        %v965 = vmul.f32 %v956, %v961
        %v967 = vlaneseq
        %v968 = vshrl.u32 %v967, 7
        %v969 = vsub.s32 0, %v968
        %v970 = vrot.slane %v914, %v969
        %v972 = vadd.f32 %v963, %v970
        %v973 = vadd.f32 %v964, %v970
        %v974 = vadd.f32 %v965, %v970
        %v975 = vpack.c.bf16 %v973, %v972
        %v976 = vpack.c.bf16 %v974, %v974
        %v977 = vld [vmem:[%s787] sm:$0xff]
        %v978 = vld [vmem:[%s787 + $0x8] sm:$0xff]
        %v979 = vld [vmem:[%s787 + $0x10] sm:$0xff]
        %v980 = vld [vmem:[%s787 + $0x18] sm:$0xff]
        %v981 = vld [vmem:[%s787 + $0x20] sm:$0xff]
        %v982 = vld [vmem:[%s787 + $0x28] sm:$0xff]
        %v983 = vld [vmem:[%s787 + $0x30] sm:$0xff]
        %v984 = vld [vmem:[%s787 + $0x38] sm:$0xff]
        %v985 = vld [vmem:[%s791] sm:$0x3]
        %v987 = vlaneseq
        %v988 = vshrl.u32 %v987, 7
        %v989 = vsub.s32 0, %v988
        %v990 = vrot.slane %v985, %v989
        %v991 = vlaneseq
        %v992 = vshrl.u32 %v991, 7
        %v993 = vsub.s32 1, %v992
        %v994 = vrot.slane %v985, %v993
        %v1005 = vunpack.c.l.b16 %v977
        %v1006 = vunpack.c.h.b16 %v977
        %v1007 = vunpack.c.l.b16 %v978
        %v1008 = vunpack.c.h.b16 %v978
        %v1009 = vunpack.c.l.b16 %v979
        %v1010 = vunpack.c.h.b16 %v979
        %v1011 = vunpack.c.l.b16 %v980
        %v1012 = vunpack.c.h.b16 %v980
        %v1013 = vunpack.c.l.b16 %v981
        %v1014 = vunpack.c.h.b16 %v981
        %v1015 = vunpack.c.l.b16 %v982
        %v1016 = vunpack.c.h.b16 %v982
        %v1017 = vunpack.c.l.b16 %v983
        %v1018 = vunpack.c.h.b16 %v983
        %v1019 = vunpack.c.l.b16 %v984
        %v1020 = vunpack.c.h.b16 %v984
        %v1021 = vpack.c.b16 %v1007, %v1005
        %v1022 = vpack.c.b16 %v1008, %v1006
        %v1023 = vpack.c.b16 %v1011, %v1009
        %v1024 = vpack.c.b16 %v1012, %v1010
        %v1025 = vpack.c.b16 %v1015, %v1013
        %v1026 = vpack.c.b16 %v1016, %v1014
        %v1027 = vpack.c.b16 %v1019, %v1017
        %v1028 = vpack.c.b16 %v1020, %v1018
        %v1038 = vsel %vm915, %v975, 0
        %v1041 = vsel %vm915, %v976, 0
        %1043 = vmatprep.subr.bf16.mxu0 0
        %1044 = vmatpush1.bf16.msra.mxu0 0
        %1045 = vmatprep.subr.bf16.mxu0 0
        %1046 = vmatpush1.bf16.msra.mxu0 0
        %1047 = vmatprep.subr.bf16.mxu0 0
        %1048 = vmatpush1.bf16.msra.mxu0 0
        %1049 = vmatprep.subr.bf16.mxu0 0
        %1050 = vmatpush1.bf16.msra.mxu0 0
        %1051 = vmatprep.subr.bf16.mxu0 %v1028
        %1052 = vmatpush1.bf16.msra.mxu0 %v1027
        %1053 = vmatprep.subr.bf16.mxu0 %v1026
        %1054 = vmatpush1.bf16.msra.mxu0 %v1025
        %1055 = vmatprep.subr.bf16.mxu0 %v1024
        %1056 = vmatpush1.bf16.msra.mxu0 %v1023
        %1057 = vmatprep.subr.bf16.mxu0 %v1022
        %1058 = vmatpush1.bf16.msra.mxu0 %v1021
        %1059 = vmatprep.subr.bf16.mxu0 0
        %1060 = vmatpush2.bf16.msra.mxu0 0
        %1061 = vmatprep.subr.bf16.mxu0 0
        %1062 = vmatpush2.bf16.msra.mxu0 0
        %1063 = vmatprep.subr.bf16.mxu0 0
        %1064 = vmatpush2.bf16.msra.mxu0 0
        %1065 = vmatprep.subr.bf16.mxu0 0
        %1066 = vmatpush2.bf16.msra.mxu0 0
        %1067 = vmatprep.subr.bf16.mxu0 0
        %1068 = vmatpush2.bf16.msra.mxu0 0
        %1069 = vmatprep.subr.bf16.mxu0 0
        %1070 = vmatpush2.bf16.msra.mxu0 0
        %1071 = vmatprep.subr.bf16.mxu0 0
        %1072 = vmatpush2.bf16.msra.mxu0 0
        %1073 = vmatprep.subr.bf16.mxu0 0
        %1074 = vmatpush2.bf16.msra.mxu0 0
        %1075 = vmatprep.mubr.bf16.mxu0 0
        %1076 = vmatmul.mubr.bf16.gmra.mxu0 %v1038
        %v1077 = vpop.f32.mrf.mxu0
        %v1078 = vadd.f32 %v990, %v1077
        %v1079 = vpop.f32.mrf.mxu0
        %v1080 = vadd.f32 %v994, %v1079
        %v1081 = vpop.f32.mrf.mxu0
        %v1082 = vadd.f32 %v990, %v1081
        %v1083 = vpop.f32.mrf.mxu0
        %v1084 = vadd.f32 %v994, %v1083
        %1085 = vmatprep.mubr.bf16.mxu0 0
        %1086 = vmatmul.mubr.bf16.gmra.mxu0 %v1041
        %v1087 = vpop.f32.mrf.mxu0
        %v1088 = vadd.f32 %v990, %v1087
        %v1089 = vpop.f32.mrf.mxu0
        %v1090 = vadd.f32 %v994, %v1089
        %v1091 = vpop.f32.mrf.mxu0
        %v1092 = vpop.f32.mrf.mxu0
        %1093 = vdwg.mxu0
        %v1094 = vmul.f32 %v1078, 0.25
        %v1095 = vmul.f32 %v1082, 0.25
        %v1096 = vmul.f32 %v1088, 0.25
        %v1097 = vpack.c.bf16 %v1095, %v1094
        %v1098 = vpack.c.bf16 %v1096, %v1096
        %v1099 = vpack.c.bf16 %v1082, %v1078
        %v1100 = vpack.c.bf16 %v1088, %v1088
        %v1101 = vpack.c.bf16 %v1084, %v1080
        %v1102 = vpack.c.bf16 %v1090, %v1090
        %1105 = vrot.lane.b32.xlu0 %v1099, 64
        %v1106 = vpop.permute.xlu0 %1105
        %1107 = vrot.lane.b32.xlu0 %v1100, 64
        %v1108 = vpop.permute.xlu0 %1107
        %vm1109 = vcmask 130048
        %v1111 = vsel %vm1109, %v1097, 0
        %v1114 = vsel %vm1109, %v1098, 0
        %v1117 = vsel %vm1109, %v1106, 0
        %v1120 = vsel %vm1109, %v1108, 0
        %1122 = vmatprep.subr.bf16.mxu0 0
        %1123 = vmatpush1.bf16.xpose.msra.mxu0 0
        %1124 = vmatprep.subr.bf16.mxu0 0
        %1125 = vmatpush1.bf16.xpose.msra.mxu0 0
        %1126 = vmatprep.subr.bf16.mxu0 0
        %1127 = vmatpush1.bf16.xpose.msra.mxu0 0
        %1128 = vmatprep.subr.bf16.mxu0 0
        %1129 = vmatpush1.bf16.xpose.msra.mxu0 0
        %1130 = vmatprep.subr.bf16.mxu0 0
        %1131 = vmatpush1.bf16.xpose.msra.mxu0 0
        %1132 = vmatprep.subr.bf16.mxu0 0
        %1133 = vmatpush1.bf16.xpose.msra.mxu0 0
        %1134 = vmatprep.subr.bf16.mxu0 0
        %1135 = vmatpush1.bf16.xpose.msra.mxu0 %v1120
        %1136 = vmatprep.subr.bf16.mxu0 0
        %1137 = vmatpush1.bf16.xpose.msra.mxu0 %v1117
        %1138 = vmatprep.subr.bf16.mxu0 0
        %1139 = vmatpush2.bf16.xpose.msra.mxu0 0
        %1140 = vmatprep.subr.bf16.mxu0 0
        %1141 = vmatpush2.bf16.xpose.msra.mxu0 0
        %1142 = vmatprep.subr.bf16.mxu0 0
        %1143 = vmatpush2.bf16.xpose.msra.mxu0 0
        %1144 = vmatprep.subr.bf16.mxu0 0
        %1145 = vmatpush2.bf16.xpose.msra.mxu0 0
        %1146 = vmatprep.subr.bf16.mxu0 0
        %1147 = vmatpush2.bf16.xpose.msra.mxu0 0
        %1148 = vmatprep.subr.bf16.mxu0 0
        %1149 = vmatpush2.bf16.xpose.msra.mxu0 0
        %1150 = vmatprep.subr.bf16.mxu0 0
        %1151 = vmatpush2.bf16.xpose.msra.mxu0 0
        %1152 = vmatprep.subr.bf16.mxu0 0
        %1153 = vmatpush2.bf16.xpose.msra.mxu0 0
        %1154 = vmatprep.mubr.bf16.mxu0 0
        %1155 = vmatmul.mubr.bf16.gmra.mxu0 %v1111
        %v1156 = vpop.f32.mrf.mxu0
        %v1157 = vadd.f32 0.0, %v1156
        %v1158 = vpop.f32.mrf.mxu0
        %v1159 = vpop.f32.mrf.mxu0
        %v1160 = vadd.f32 0.0, %v1159
        %v1161 = vpop.f32.mrf.mxu0
        %1162 = vmatprep.mubr.bf16.mxu0 0
        %1163 = vmatmul.mubr.bf16.gmra.mxu0 %v1114
        %v1164 = vpop.f32.mrf.mxu0
        %v1165 = vadd.f32 0.0, %v1164
        %v1166 = vpop.f32.mrf.mxu0
        %v1167 = vpop.f32.mrf.mxu0
        %v1168 = vpop.f32.mrf.mxu0
        %1169 = vdwg.mxu0
        %vm1170 = vcmask 138240
        %v1171 = vsel %vm1170, %v1157, -inf
        %1172 = vmax.xlane.f32.xlu0 %v1171
        %v1173 = vpop.xlane.xlu0 %1172
        %v1174 = vsel %vm1170, %v1160, -inf
        %1175 = vmax.xlane.f32.xlu0 %v1174
        %v1176 = vpop.xlane.xlu0 %1175
        %vm1177 = vcmask 131072
        %v1178 = vsel %vm1177, %v1165, -inf
        %1179 = vmax.xlane.f32.xlu0 %v1178
        %v1180 = vpop.xlane.xlu0 %1179
        %v1181 = vsub.f32 %v1157, %v1173
        %v1182 = vsub.f32 %v1160, %v1176
        %v1183 = vsub.f32 %v1165, %v1180
        %v1184 = vmul.f32 %v1181, 1.442695
        %v1185 = vpow.pop %v1184
        %v1186 = vmul.f32 %v1182, 1.442695
        %v1187 = vpow.pop %v1186
        %v1188 = vmul.f32 %v1183, 1.442695
        %v1189 = vpow.pop %v1188
        %v1190 = vsel %vm1170, %v1185, 0.0
        %1191 = vadd.xlane.f32.xlu0 %v1190
        %v1192 = vpop.xlane.xlu0 %1191
        %v1193 = vsel %vm1170, %v1187, 0.0
        %1194 = vadd.xlane.f32.xlu0 %v1193
        %v1195 = vpop.xlane.xlu0 %1194
        %v1196 = vsel %vm1177, %v1189, 0.0
        %1197 = vadd.xlane.f32.xlu0 %v1196
        %v1198 = vpop.xlane.xlu0 %1197
        %v1199 = vrcp.pop %v1192
        %v1200 = vrcp.pop %v1195
        %v1201 = vrcp.pop %v1198
        %v1202 = vmul.f32 %v1185, %v1199
        %v1203 = vmul.f32 %v1187, %v1200
        %v1204 = vmul.f32 %v1189, %v1201
        %v1205 = vpack.c.bf16 %v1203, %v1202
        %v1206 = vpack.c.bf16 %v1204, %v1204
        %v1208 = vsel %vm1170, %v1205, 0
        %v1211 = vsel %vm1170, %v1206, 0
        %vm1213 = vcmask 1040384
        %v1214 = vsel 0, 4294967295, 65535
        %v1215 = vsel %vm1213, %v1214, 0
        %v1217 = vand.u32 %v1102, %v1215
        %1219 = vmatprep.subr.bf16.mxu0 0
        %1220 = vmatpush1.bf16.msra.mxu0 0
        %1221 = vmatprep.subr.bf16.mxu0 0
        %1222 = vmatpush1.bf16.msra.mxu0 0
        %1223 = vmatprep.subr.bf16.mxu0 0
        %1224 = vmatpush1.bf16.msra.mxu0 0
        %1225 = vmatprep.subr.bf16.mxu0 0
        %1226 = vmatpush1.bf16.msra.mxu0 0
        %1227 = vmatprep.subr.bf16.mxu0 0
        %1228 = vmatpush1.bf16.msra.mxu0 0
        %1229 = vmatprep.subr.bf16.mxu0 0
        %1230 = vmatpush1.bf16.msra.mxu0 0
        %1231 = vmatprep.subr.bf16.mxu0 0
        %1232 = vmatpush1.bf16.msra.mxu0 %v1217
        %1233 = vmatprep.subr.bf16.mxu0 0
        %1234 = vmatpush1.bf16.msra.mxu0 %v1101
        %1235 = vmatprep.subr.bf16.mxu0 0
        %1236 = vmatpush2.bf16.msra.mxu0 0
        %1237 = vmatprep.subr.bf16.mxu0 0
        %1238 = vmatpush2.bf16.msra.mxu0 0
        %1239 = vmatprep.subr.bf16.mxu0 0
        %1240 = vmatpush2.bf16.msra.mxu0 0
        %1241 = vmatprep.subr.bf16.mxu0 0
        %1242 = vmatpush2.bf16.msra.mxu0 0
        %1243 = vmatprep.subr.bf16.mxu0 0
        %1244 = vmatpush2.bf16.msra.mxu0 0
        %1245 = vmatprep.subr.bf16.mxu0 0
        %1246 = vmatpush2.bf16.msra.mxu0 0
        %1247 = vmatprep.subr.bf16.mxu0 0
        %1248 = vmatpush2.bf16.msra.mxu0 0
        %1249 = vmatprep.subr.bf16.mxu0 0
        %1250 = vmatpush2.bf16.msra.mxu0 0
        %1251 = vmatprep.mubr.bf16.mxu0 0
        %1252 = vmatmul.mubr.bf16.gmra.mxu0 %v1208
        %v1253 = vpop.f32.mrf.mxu0
        %v1254 = vadd.f32 0.0, %v1253
        %v1255 = vpop.f32.mrf.mxu0
        %v1256 = vpop.f32.mrf.mxu0
        %v1257 = vadd.f32 0.0, %v1256
        %v1258 = vpop.f32.mrf.mxu0
        %1259 = vmatprep.mubr.bf16.mxu0 0
        %1260 = vmatmul.mubr.bf16.gmra.mxu0 %v1211
        %v1261 = vpop.f32.mrf.mxu0
        %v1262 = vadd.f32 0.0, %v1261
        %v1263 = vpop.f32.mrf.mxu0
        %v1264 = vpop.f32.mrf.mxu0
        %v1265 = vpop.f32.mrf.mxu0
        %1266 = vdwg.mxu0
        %v1267 = vpack.c.bf16 %v1257, %v1254
        %v1268 = vpack.c.bf16 %v1262, %v1262
        %v1271 = vunpack.c.l.b16 %v1267
        %v1272 = vunpack.c.h.b16 %v1267
        %v1273 = vunpack.c.l.b16 %v1268
        %v1274 = vpack.c.b16 %v1271, %v1271
        %v1275 = vpack.c.b16 %v1272, %v1272
        %v1276 = vpack.c.b16 %v1273, %v1273
        %vm1280 = vcmask 125952
        %1281 = vst.msk [vmem:[#allocation3] sm:$0xf] %vm1280, %v1274
        %1282 = vst.msk [vmem:[#allocation3 + $0x4] sm:$0xf] %vm1280, %v1275
        %vm1283 = vcmask 122880
        %vm1284 = vsmask.f32 256
        %vm1285 = vmand %vm1283, %vm1284
        %v1286 = vld [vmem:[#allocation3 + $0x8] sm:$0x1]
        %v1287 = vsel %vm1285, %v1276, %v1286
        %1288 = vst [vmem:[#allocation3 + $0x8] sm:$0x1] %v1287
        %1291 = vrot.lane.b32.xlu0 %v1097, 112
        %v1292 = vpop.permute.xlu0 %1291
        %1293 = vrot.lane.b32.xlu0 %v1098, 112
        %v1294 = vpop.permute.xlu0 %1293
        %1295 = vrot.lane.b32.xlu0 %v1099, 48
        %v1296 = vpop.permute.xlu0 %1295
        %1297 = vrot.lane.b32.xlu0 %v1100, 48
        %v1298 = vpop.permute.xlu0 %1297
        %v1300 = vsel %vm1109, %v1292, 0
        %v1303 = vsel %vm1109, %v1294, 0
        %v1306 = vsel %vm1109, %v1296, 0
        %v1309 = vsel %vm1109, %v1298, 0
        %1311 = vmatprep.subr.bf16.mxu0 0
        %1312 = vmatpush1.bf16.xpose.msra.mxu0 0
        %1313 = vmatprep.subr.bf16.mxu0 0
        %1314 = vmatpush1.bf16.xpose.msra.mxu0 0
        %1315 = vmatprep.subr.bf16.mxu0 0
        %1316 = vmatpush1.bf16.xpose.msra.mxu0 0
        %1317 = vmatprep.subr.bf16.mxu0 0
        %1318 = vmatpush1.bf16.xpose.msra.mxu0 0
        %1319 = vmatprep.subr.bf16.mxu0 0
        %1320 = vmatpush1.bf16.xpose.msra.mxu0 0
        %1321 = vmatprep.subr.bf16.mxu0 0
        %1322 = vmatpush1.bf16.xpose.msra.mxu0 0
        %1323 = vmatprep.subr.bf16.mxu0 0
        %1324 = vmatpush1.bf16.xpose.msra.mxu0 %v1309
        %1325 = vmatprep.subr.bf16.mxu0 0
        %1326 = vmatpush1.bf16.xpose.msra.mxu0 %v1306
        %1327 = vmatprep.subr.bf16.mxu0 0
        %1328 = vmatpush2.bf16.xpose.msra.mxu0 0
        %1329 = vmatprep.subr.bf16.mxu0 0
        %1330 = vmatpush2.bf16.xpose.msra.mxu0 0
        %1331 = vmatprep.subr.bf16.mxu0 0
        %1332 = vmatpush2.bf16.xpose.msra.mxu0 0
        %1333 = vmatprep.subr.bf16.mxu0 0
        %1334 = vmatpush2.bf16.xpose.msra.mxu0 0
        %1335 = vmatprep.subr.bf16.mxu0 0
        %1336 = vmatpush2.bf16.xpose.msra.mxu0 0
        %1337 = vmatprep.subr.bf16.mxu0 0
        %1338 = vmatpush2.bf16.xpose.msra.mxu0 0
        %1339 = vmatprep.subr.bf16.mxu0 0
        %1340 = vmatpush2.bf16.xpose.msra.mxu0 0
        %1341 = vmatprep.subr.bf16.mxu0 0
        %1342 = vmatpush2.bf16.xpose.msra.mxu0 0
        %1343 = vmatprep.mubr.bf16.mxu0 0
        %1344 = vmatmul.mubr.bf16.gmra.mxu0 %v1300
        %v1345 = vpop.f32.mrf.mxu0
        %v1346 = vadd.f32 0.0, %v1345
        %v1347 = vpop.f32.mrf.mxu0
        %v1348 = vpop.f32.mrf.mxu0
        %v1349 = vadd.f32 0.0, %v1348
        %v1350 = vpop.f32.mrf.mxu0
        %1351 = vmatprep.mubr.bf16.mxu0 0
        %1352 = vmatmul.mubr.bf16.gmra.mxu0 %v1303
        %v1353 = vpop.f32.mrf.mxu0
        %v1354 = vadd.f32 0.0, %v1353
        %v1355 = vpop.f32.mrf.mxu0
        %v1356 = vpop.f32.mrf.mxu0
        %v1357 = vpop.f32.mrf.mxu0
        %1358 = vdwg.mxu0
        %v1359 = vsel %vm1170, %v1346, -inf
        %1360 = vmax.xlane.f32.xlu0 %v1359
        %v1361 = vpop.xlane.xlu0 %1360
        %v1362 = vsel %vm1170, %v1349, -inf
        %1363 = vmax.xlane.f32.xlu0 %v1362
        %v1364 = vpop.xlane.xlu0 %1363
        %v1365 = vsel %vm1177, %v1354, -inf
        %1366 = vmax.xlane.f32.xlu0 %v1365
        %v1367 = vpop.xlane.xlu0 %1366
        %v1368 = vsub.f32 %v1346, %v1361
        %v1369 = vsub.f32 %v1349, %v1364
        %v1370 = vsub.f32 %v1354, %v1367
        %v1371 = vmul.f32 %v1368, 1.442695
        %v1372 = vpow.pop %v1371
        %v1373 = vmul.f32 %v1369, 1.442695
        %v1374 = vpow.pop %v1373
        %v1375 = vmul.f32 %v1370, 1.442695
        %v1376 = vpow.pop %v1375
        %v1377 = vsel %vm1170, %v1372, 0.0
        %1378 = vadd.xlane.f32.xlu0 %v1377
        %v1379 = vpop.xlane.xlu0 %1378
        %v1380 = vsel %vm1170, %v1374, 0.0
        %1381 = vadd.xlane.f32.xlu0 %v1380
        %v1382 = vpop.xlane.xlu0 %1381
        %v1383 = vsel %vm1177, %v1376, 0.0
        %1384 = vadd.xlane.f32.xlu0 %v1383
        %v1385 = vpop.xlane.xlu0 %1384
        %v1386 = vrcp.pop %v1379
        %v1387 = vrcp.pop %v1382
        %v1388 = vrcp.pop %v1385
        %v1389 = vmul.f32 %v1372, %v1386
        %v1390 = vmul.f32 %v1374, %v1387
        %v1391 = vmul.f32 %v1376, %v1388
        %v1392 = vpack.c.bf16 %v1390, %v1389
        %v1393 = vpack.c.bf16 %v1391, %v1391
        %1396 = vrot.lane.b32.xlu0 %v1101, 112
        %v1397 = vpop.permute.xlu0 %1396
        %1398 = vrot.lane.b32.xlu0 %v1102, 112
        %v1399 = vpop.permute.xlu0 %1398
        %v1402 = vsel %vm1170, %v1392, 0
        %v1405 = vsel %vm1170, %v1393, 0
        %v1408 = vand.u32 %v1399, %v1215
        %1410 = vmatprep.subr.bf16.mxu0 0
        %1411 = vmatpush1.bf16.msra.mxu0 0
        %1412 = vmatprep.subr.bf16.mxu0 0
        %1413 = vmatpush1.bf16.msra.mxu0 0
        %1414 = vmatprep.subr.bf16.mxu0 0
        %1415 = vmatpush1.bf16.msra.mxu0 0
        %1416 = vmatprep.subr.bf16.mxu0 0
        %1417 = vmatpush1.bf16.msra.mxu0 0
        %1418 = vmatprep.subr.bf16.mxu0 0
        %1419 = vmatpush1.bf16.msra.mxu0 0
        %1420 = vmatprep.subr.bf16.mxu0 0
        %1421 = vmatpush1.bf16.msra.mxu0 0
        %1422 = vmatprep.subr.bf16.mxu0 0
        %1423 = vmatpush1.bf16.msra.mxu0 %v1408
        %1424 = vmatprep.subr.bf16.mxu0 0
        %1425 = vmatpush1.bf16.msra.mxu0 %v1397
        %1426 = vmatprep.subr.bf16.mxu0 0
        %1427 = vmatpush2.bf16.msra.mxu0 0
        %1428 = vmatprep.subr.bf16.mxu0 0
        %1429 = vmatpush2.bf16.msra.mxu0 0
        %1430 = vmatprep.subr.bf16.mxu0 0
        %1431 = vmatpush2.bf16.msra.mxu0 0
        %1432 = vmatprep.subr.bf16.mxu0 0
        %1433 = vmatpush2.bf16.msra.mxu0 0
        %1434 = vmatprep.subr.bf16.mxu0 0
        %1435 = vmatpush2.bf16.msra.mxu0 0
        %1436 = vmatprep.subr.bf16.mxu0 0
        %1437 = vmatpush2.bf16.msra.mxu0 0
        %1438 = vmatprep.subr.bf16.mxu0 0
        %1439 = vmatpush2.bf16.msra.mxu0 0
        %1440 = vmatprep.subr.bf16.mxu0 0
        %1441 = vmatpush2.bf16.msra.mxu0 0
        %1442 = vmatprep.mubr.bf16.mxu0 0
        %1443 = vmatmul.mubr.bf16.gmra.mxu0 %v1402
        %v1444 = vpop.f32.mrf.mxu0
        %v1445 = vadd.f32 0.0, %v1444
        %v1446 = vpop.f32.mrf.mxu0
        %v1447 = vpop.f32.mrf.mxu0
        %v1448 = vadd.f32 0.0, %v1447
        %v1449 = vpop.f32.mrf.mxu0
        %1450 = vmatprep.mubr.bf16.mxu0 0
        %1451 = vmatmul.mubr.bf16.gmra.mxu0 %v1405
        %v1452 = vpop.f32.mrf.mxu0
        %v1453 = vadd.f32 0.0, %v1452
        %v1454 = vpop.f32.mrf.mxu0
        %v1455 = vpop.f32.mrf.mxu0
        %v1456 = vpop.f32.mrf.mxu0
        %1457 = vdwg.mxu0
        %v1458 = vpack.c.bf16 %v1448, %v1445
        %v1459 = vpack.c.bf16 %v1453, %v1453
        %v1462 = vunpack.c.l.b16 %v1458
        %v1463 = vunpack.c.h.b16 %v1458
        %v1464 = vunpack.c.l.b16 %v1459
        %v1465 = vpack.c.b16 %v1462, %v1462
        %v1466 = vpack.c.b16 %v1463, %v1463
        %v1467 = vpack.c.b16 %v1464, %v1464
        %1468 = vrot.lane.b32.xlu0 %v1465, 16
        %v1469 = vpop.permute.xlu0 %1468
        %1470 = vrot.lane.b32.xlu0 %v1466, 16
        %v1471 = vpop.permute.xlu0 %1470
        %1472 = vrot.lane.b32.xlu0 %v1467, 16
        %v1473 = vpop.permute.xlu0 %1472
        %vm1477 = vcmask 257152
        %1478 = vst.msk [vmem:[#allocation3] sm:$0xf] %vm1477, %v1469
        %1479 = vst.msk [vmem:[#allocation3 + $0x4] sm:$0xf] %vm1477, %v1471
        %vm1480 = vcmask 254080
        %vm1481 = vmand %vm1480, %vm1284
        %v1482 = vld [vmem:[#allocation3 + $0x8] sm:$0x1]
        %v1483 = vsel %vm1481, %v1473, %v1482
        %1484 = vst [vmem:[#allocation3 + $0x8] sm:$0x1] %v1483
        %1485 = vrot.lane.b32.xlu0 %v1097, 96
        %v1486 = vpop.permute.xlu0 %1485
        %1487 = vrot.lane.b32.xlu0 %v1098, 96
        %v1488 = vpop.permute.xlu0 %1487
        %1489 = vrot.lane.b32.xlu0 %v1099, 32
        %v1490 = vpop.permute.xlu0 %1489
        %1491 = vrot.lane.b32.xlu0 %v1100, 32
        %v1492 = vpop.permute.xlu0 %1491
        %v1494 = vsel %vm1109, %v1486, 0
        %v1497 = vsel %vm1109, %v1488, 0
        %v1500 = vsel %vm1109, %v1490, 0
        %v1503 = vsel %vm1109, %v1492, 0
        %1505 = vmatprep.subr.bf16.mxu0 0
        %1506 = vmatpush1.bf16.xpose.msra.mxu0 0
        %1507 = vmatprep.subr.bf16.mxu0 0
        %1508 = vmatpush1.bf16.xpose.msra.mxu0 0
        %1509 = vmatprep.subr.bf16.mxu0 0
        %1510 = vmatpush1.bf16.xpose.msra.mxu0 0
        %1511 = vmatprep.subr.bf16.mxu0 0
        %1512 = vmatpush1.bf16.xpose.msra.mxu0 0
        %1513 = vmatprep.subr.bf16.mxu0 0
        %1514 = vmatpush1.bf16.xpose.msra.mxu0 0
        %1515 = vmatprep.subr.bf16.mxu0 0
        %1516 = vmatpush1.bf16.xpose.msra.mxu0 0
        %1517 = vmatprep.subr.bf16.mxu0 0
        %1518 = vmatpush1.bf16.xpose.msra.mxu0 %v1503
        %1519 = vmatprep.subr.bf16.mxu0 0
        %1520 = vmatpush1.bf16.xpose.msra.mxu0 %v1500
        %1521 = vmatprep.subr.bf16.mxu0 0
        %1522 = vmatpush2.bf16.xpose.msra.mxu0 0
        %1523 = vmatprep.subr.bf16.mxu0 0
        %1524 = vmatpush2.bf16.xpose.msra.mxu0 0
        %1525 = vmatprep.subr.bf16.mxu0 0
        %1526 = vmatpush2.bf16.xpose.msra.mxu0 0
        %1527 = vmatprep.subr.bf16.mxu0 0
        %1528 = vmatpush2.bf16.xpose.msra.mxu0 0
        %1529 = vmatprep.subr.bf16.mxu0 0
        %1530 = vmatpush2.bf16.xpose.msra.mxu0 0
        %1531 = vmatprep.subr.bf16.mxu0 0
        %1532 = vmatpush2.bf16.xpose.msra.mxu0 0
        %1533 = vmatprep.subr.bf16.mxu0 0
        %1534 = vmatpush2.bf16.xpose.msra.mxu0 0
        %1535 = vmatprep.subr.bf16.mxu0 0
        %1536 = vmatpush2.bf16.xpose.msra.mxu0 0
        %1537 = vmatprep.mubr.bf16.mxu0 0
        %1538 = vmatmul.mubr.bf16.gmra.mxu0 %v1494
        %v1539 = vpop.f32.mrf.mxu0
        %v1540 = vadd.f32 0.0, %v1539
        %v1541 = vpop.f32.mrf.mxu0
        %v1542 = vpop.f32.mrf.mxu0
        %v1543 = vadd.f32 0.0, %v1542
        %v1544 = vpop.f32.mrf.mxu0
        %1545 = vmatprep.mubr.bf16.mxu0 0
        %1546 = vmatmul.mubr.bf16.gmra.mxu0 %v1497
        %v1547 = vpop.f32.mrf.mxu0
        %v1548 = vadd.f32 0.0, %v1547
        %v1549 = vpop.f32.mrf.mxu0
        %v1550 = vpop.f32.mrf.mxu0
        %v1551 = vpop.f32.mrf.mxu0
        %1552 = vdwg.mxu0
        %v1553 = vsel %vm1170, %v1540, -inf
        %1554 = vmax.xlane.f32.xlu0 %v1553
        %v1555 = vpop.xlane.xlu0 %1554
        %v1556 = vsel %vm1170, %v1543, -inf
        %1557 = vmax.xlane.f32.xlu0 %v1556
        %v1558 = vpop.xlane.xlu0 %1557
        %v1559 = vsel %vm1177, %v1548, -inf
        %1560 = vmax.xlane.f32.xlu0 %v1559
        %v1561 = vpop.xlane.xlu0 %1560
        %v1562 = vsub.f32 %v1540, %v1555
        %v1563 = vsub.f32 %v1543, %v1558
        %v1564 = vsub.f32 %v1548, %v1561
        %v1565 = vmul.f32 %v1562, 1.442695
        %v1566 = vpow.pop %v1565
        %v1567 = vmul.f32 %v1563, 1.442695
        %v1568 = vpow.pop %v1567
        %v1569 = vmul.f32 %v1564, 1.442695
        %v1570 = vpow.pop %v1569
        %v1571 = vsel %vm1170, %v1566, 0.0
        %1572 = vadd.xlane.f32.xlu0 %v1571
        %v1573 = vpop.xlane.xlu0 %1572
        %v1574 = vsel %vm1170, %v1568, 0.0
        %1575 = vadd.xlane.f32.xlu0 %v1574
        %v1576 = vpop.xlane.xlu0 %1575
        %v1577 = vsel %vm1177, %v1570, 0.0
        %1578 = vadd.xlane.f32.xlu0 %v1577
        %v1579 = vpop.xlane.xlu0 %1578
        %v1580 = vrcp.pop %v1573
        %v1581 = vrcp.pop %v1576
        %v1582 = vrcp.pop %v1579
        %v1583 = vmul.f32 %v1566, %v1580
        %v1584 = vmul.f32 %v1568, %v1581
        %v1585 = vmul.f32 %v1570, %v1582
        %v1586 = vpack.c.bf16 %v1584, %v1583
        %v1587 = vpack.c.bf16 %v1585, %v1585
        %1588 = vrot.lane.b32.xlu0 %v1101, 96
        %v1589 = vpop.permute.xlu0 %1588
        %1590 = vrot.lane.b32.xlu0 %v1102, 96
        %v1591 = vpop.permute.xlu0 %1590
        %v1594 = vsel %vm1170, %v1586, 0
        %v1597 = vsel %vm1170, %v1587, 0
        %v1600 = vand.u32 %v1591, %v1215
        %1602 = vmatprep.subr.bf16.mxu0 0
        %1603 = vmatpush1.bf16.msra.mxu0 0
        %1604 = vmatprep.subr.bf16.mxu0 0
        %1605 = vmatpush1.bf16.msra.mxu0 0
        %1606 = vmatprep.subr.bf16.mxu0 0
        %1607 = vmatpush1.bf16.msra.mxu0 0
        %1608 = vmatprep.subr.bf16.mxu0 0
        %1609 = vmatpush1.bf16.msra.mxu0 0
        %1610 = vmatprep.subr.bf16.mxu0 0
        %1611 = vmatpush1.bf16.msra.mxu0 0
        %1612 = vmatprep.subr.bf16.mxu0 0
        %1613 = vmatpush1.bf16.msra.mxu0 0
        %1614 = vmatprep.subr.bf16.mxu0 0
        %1615 = vmatpush1.bf16.msra.mxu0 %v1600
        %1616 = vmatprep.subr.bf16.mxu0 0
        %1617 = vmatpush1.bf16.msra.mxu0 %v1589
        %1618 = vmatprep.subr.bf16.mxu0 0
        %1619 = vmatpush2.bf16.msra.mxu0 0
        %1620 = vmatprep.subr.bf16.mxu0 0
        %1621 = vmatpush2.bf16.msra.mxu0 0
        %1622 = vmatprep.subr.bf16.mxu0 0
        %1623 = vmatpush2.bf16.msra.mxu0 0
        %1624 = vmatprep.subr.bf16.mxu0 0
        %1625 = vmatpush2.bf16.msra.mxu0 0
        %1626 = vmatprep.subr.bf16.mxu0 0
        %1627 = vmatpush2.bf16.msra.mxu0 0
        %1628 = vmatprep.subr.bf16.mxu0 0
        %1629 = vmatpush2.bf16.msra.mxu0 0
        %1630 = vmatprep.subr.bf16.mxu0 0
        %1631 = vmatpush2.bf16.msra.mxu0 0
        %1632 = vmatprep.subr.bf16.mxu0 0
        %1633 = vmatpush2.bf16.msra.mxu0 0
        %1634 = vmatprep.mubr.bf16.mxu0 0
        %1635 = vmatmul.mubr.bf16.gmra.mxu0 %v1594
        %v1636 = vpop.f32.mrf.mxu0
        %v1637 = vadd.f32 0.0, %v1636
        %v1638 = vpop.f32.mrf.mxu0
        %v1639 = vpop.f32.mrf.mxu0
        %v1640 = vadd.f32 0.0, %v1639
        %v1641 = vpop.f32.mrf.mxu0
        %1642 = vmatprep.mubr.bf16.mxu0 0
        %1643 = vmatmul.mubr.bf16.gmra.mxu0 %v1597
        %v1644 = vpop.f32.mrf.mxu0
        %v1645 = vadd.f32 0.0, %v1644
        %v1646 = vpop.f32.mrf.mxu0
        %v1647 = vpop.f32.mrf.mxu0
        %v1648 = vpop.f32.mrf.mxu0
        %1649 = vdwg.mxu0
        %v1650 = vpack.c.bf16 %v1640, %v1637
        %v1651 = vpack.c.bf16 %v1645, %v1645
        %v1654 = vunpack.c.l.b16 %v1650
        %v1655 = vunpack.c.h.b16 %v1650
        %v1656 = vunpack.c.l.b16 %v1651
        %v1657 = vpack.c.b16 %v1654, %v1654
        %v1658 = vpack.c.b16 %v1655, %v1655
        %v1659 = vpack.c.b16 %v1656, %v1656
        %1660 = vrot.lane.b32.xlu0 %v1657, 32
        %v1661 = vpop.permute.xlu0 %1660
        %1662 = vrot.lane.b32.xlu0 %v1658, 32
        %v1663 = vpop.permute.xlu0 %1662
        %1664 = vrot.lane.b32.xlu0 %v1659, 32
        %v1665 = vpop.permute.xlu0 %1664
        %vm1669 = vcmask 388352
        %1670 = vst.msk [vmem:[#allocation3] sm:$0xf] %vm1669, %v1661
        %1671 = vst.msk [vmem:[#allocation3 + $0x4] sm:$0xf] %vm1669, %v1663
        %vm1672 = vcmask 385280
        %vm1673 = vmand %vm1672, %vm1284
        %v1674 = vld [vmem:[#allocation3 + $0x8] sm:$0x1]
        %v1675 = vsel %vm1673, %v1665, %v1674
        %1676 = vst [vmem:[#allocation3 + $0x8] sm:$0x1] %v1675
        %1677 = vrot.lane.b32.xlu0 %v1097, 80
        %v1678 = vpop.permute.xlu0 %1677
        %1679 = vrot.lane.b32.xlu0 %v1098, 80
        %v1680 = vpop.permute.xlu0 %1679
        %1681 = vrot.lane.b32.xlu0 %v1099, 16
        %v1682 = vpop.permute.xlu0 %1681
        %1683 = vrot.lane.b32.xlu0 %v1100, 16
        %v1684 = vpop.permute.xlu0 %1683
        %v1686 = vsel %vm1109, %v1678, 0
        %v1689 = vsel %vm1109, %v1680, 0
        %v1692 = vsel %vm1109, %v1682, 0
        %v1695 = vsel %vm1109, %v1684, 0
        %1697 = vmatprep.subr.bf16.mxu0 0
        %1698 = vmatpush1.bf16.xpose.msra.mxu0 0
        %1699 = vmatprep.subr.bf16.mxu0 0
        %1700 = vmatpush1.bf16.xpose.msra.mxu0 0
        %1701 = vmatprep.subr.bf16.mxu0 0
        %1702 = vmatpush1.bf16.xpose.msra.mxu0 0
        %1703 = vmatprep.subr.bf16.mxu0 0
        %1704 = vmatpush1.bf16.xpose.msra.mxu0 0
        %1705 = vmatprep.subr.bf16.mxu0 0
        %1706 = vmatpush1.bf16.xpose.msra.mxu0 0
        %1707 = vmatprep.subr.bf16.mxu0 0
        %1708 = vmatpush1.bf16.xpose.msra.mxu0 0
        %1709 = vmatprep.subr.bf16.mxu0 0
        %1710 = vmatpush1.bf16.xpose.msra.mxu0 %v1695
        %1711 = vmatprep.subr.bf16.mxu0 0
        %1712 = vmatpush1.bf16.xpose.msra.mxu0 %v1692
        %1713 = vmatprep.subr.bf16.mxu0 0
        %1714 = vmatpush2.bf16.xpose.msra.mxu0 0
        %1715 = vmatprep.subr.bf16.mxu0 0
        %1716 = vmatpush2.bf16.xpose.msra.mxu0 0
        %1717 = vmatprep.subr.bf16.mxu0 0
        %1718 = vmatpush2.bf16.xpose.msra.mxu0 0
        %1719 = vmatprep.subr.bf16.mxu0 0
        %1720 = vmatpush2.bf16.xpose.msra.mxu0 0
        %1721 = vmatprep.subr.bf16.mxu0 0
        %1722 = vmatpush2.bf16.xpose.msra.mxu0 0
        %1723 = vmatprep.subr.bf16.mxu0 0
        %1724 = vmatpush2.bf16.xpose.msra.mxu0 0
        %1725 = vmatprep.subr.bf16.mxu0 0
        %1726 = vmatpush2.bf16.xpose.msra.mxu0 0
        %1727 = vmatprep.subr.bf16.mxu0 0
        %1728 = vmatpush2.bf16.xpose.msra.mxu0 0
        %1729 = vmatprep.mubr.bf16.mxu0 0
        %1730 = vmatmul.mubr.bf16.gmra.mxu0 %v1686
        %v1731 = vpop.f32.mrf.mxu0
        %v1732 = vadd.f32 0.0, %v1731
        %v1733 = vpop.f32.mrf.mxu0
        %v1734 = vpop.f32.mrf.mxu0
        %v1735 = vadd.f32 0.0, %v1734
        %v1736 = vpop.f32.mrf.mxu0
        %1737 = vmatprep.mubr.bf16.mxu0 0
        %1738 = vmatmul.mubr.bf16.gmra.mxu0 %v1689
        %v1739 = vpop.f32.mrf.mxu0
        %v1740 = vadd.f32 0.0, %v1739
        %v1741 = vpop.f32.mrf.mxu0
        %v1742 = vpop.f32.mrf.mxu0
        %v1743 = vpop.f32.mrf.mxu0
        %1744 = vdwg.mxu0
        %v1745 = vsel %vm1170, %v1732, -inf
        %1746 = vmax.xlane.f32.xlu0 %v1745
        %v1747 = vpop.xlane.xlu0 %1746
        %v1748 = vsel %vm1170, %v1735, -inf
        %1749 = vmax.xlane.f32.xlu0 %v1748
        %v1750 = vpop.xlane.xlu0 %1749
        %v1751 = vsel %vm1177, %v1740, -inf
        %1752 = vmax.xlane.f32.xlu0 %v1751
        %v1753 = vpop.xlane.xlu0 %1752
        %v1754 = vsub.f32 %v1732, %v1747
        %v1755 = vsub.f32 %v1735, %v1750
        %v1756 = vsub.f32 %v1740, %v1753
        %v1757 = vmul.f32 %v1754, 1.442695
        %v1758 = vpow.pop %v1757
        %v1759 = vmul.f32 %v1755, 1.442695
        %v1760 = vpow.pop %v1759
        %v1761 = vmul.f32 %v1756, 1.442695
        %v1762 = vpow.pop %v1761
        %v1763 = vsel %vm1170, %v1758, 0.0
        %1764 = vadd.xlane.f32.xlu0 %v1763
        %v1765 = vpop.xlane.xlu0 %1764
        %v1766 = vsel %vm1170, %v1760, 0.0
        %1767 = vadd.xlane.f32.xlu0 %v1766
        %v1768 = vpop.xlane.xlu0 %1767
        %v1769 = vsel %vm1177, %v1762, 0.0
        %1770 = vadd.xlane.f32.xlu0 %v1769
        %v1771 = vpop.xlane.xlu0 %1770
        %v1772 = vrcp.pop %v1765
        %v1773 = vrcp.pop %v1768
        %v1774 = vrcp.pop %v1771
        %v1775 = vmul.f32 %v1758, %v1772
        %v1776 = vmul.f32 %v1760, %v1773
        %v1777 = vmul.f32 %v1762, %v1774
        %v1778 = vpack.c.bf16 %v1776, %v1775
        %v1779 = vpack.c.bf16 %v1777, %v1777
        %1780 = vrot.lane.b32.xlu0 %v1101, 80
        %v1781 = vpop.permute.xlu0 %1780
        %1782 = vrot.lane.b32.xlu0 %v1102, 80
        %v1783 = vpop.permute.xlu0 %1782
        %v1786 = vsel %vm1170, %v1778, 0
        %v1789 = vsel %vm1170, %v1779, 0
        %v1792 = vand.u32 %v1783, %v1215
        %1794 = vmatprep.subr.bf16.mxu0 0
        %1795 = vmatpush1.bf16.msra.mxu0 0
        %1796 = vmatprep.subr.bf16.mxu0 0
        %1797 = vmatpush1.bf16.msra.mxu0 0
        %1798 = vmatprep.subr.bf16.mxu0 0
        %1799 = vmatpush1.bf16.msra.mxu0 0
        %1800 = vmatprep.subr.bf16.mxu0 0
        %1801 = vmatpush1.bf16.msra.mxu0 0
        %1802 = vmatprep.subr.bf16.mxu0 0
        %1803 = vmatpush1.bf16.msra.mxu0 0
        %1804 = vmatprep.subr.bf16.mxu0 0
        %1805 = vmatpush1.bf16.msra.mxu0 0
        %1806 = vmatprep.subr.bf16.mxu0 0
        %1807 = vmatpush1.bf16.msra.mxu0 %v1792
        %1808 = vmatprep.subr.bf16.mxu0 0
        %1809 = vmatpush1.bf16.msra.mxu0 %v1781
        %1810 = vmatprep.subr.bf16.mxu0 0
        %1811 = vmatpush2.bf16.msra.mxu0 0
        %1812 = vmatprep.subr.bf16.mxu0 0
        %1813 = vmatpush2.bf16.msra.mxu0 0
        %1814 = vmatprep.subr.bf16.mxu0 0
        %1815 = vmatpush2.bf16.msra.mxu0 0
        %1816 = vmatprep.subr.bf16.mxu0 0
        %1817 = vmatpush2.bf16.msra.mxu0 0
        %1818 = vmatprep.subr.bf16.mxu0 0
        %1819 = vmatpush2.bf16.msra.mxu0 0
        %1820 = vmatprep.subr.bf16.mxu0 0
        %1821 = vmatpush2.bf16.msra.mxu0 0
        %1822 = vmatprep.subr.bf16.mxu0 0
        %1823 = vmatpush2.bf16.msra.mxu0 0
        %1824 = vmatprep.subr.bf16.mxu0 0
        %1825 = vmatpush2.bf16.msra.mxu0 0
        %1826 = vmatprep.mubr.bf16.mxu0 0
        %1827 = vmatmul.mubr.bf16.gmra.mxu0 %v1786
        %v1828 = vpop.f32.mrf.mxu0
        %v1829 = vadd.f32 0.0, %v1828
        %v1830 = vpop.f32.mrf.mxu0
        %v1831 = vpop.f32.mrf.mxu0
        %v1832 = vadd.f32 0.0, %v1831
        %v1833 = vpop.f32.mrf.mxu0
        %1834 = vmatprep.mubr.bf16.mxu0 0
        %1835 = vmatmul.mubr.bf16.gmra.mxu0 %v1789
        %v1836 = vpop.f32.mrf.mxu0
        %v1837 = vadd.f32 0.0, %v1836
        %v1838 = vpop.f32.mrf.mxu0
        %v1839 = vpop.f32.mrf.mxu0
        %v1840 = vpop.f32.mrf.mxu0
        %1841 = vdwg.mxu0
        %v1842 = vpack.c.bf16 %v1832, %v1829
        %v1843 = vpack.c.bf16 %v1837, %v1837
        %v1846 = vunpack.c.l.b16 %v1842
        %v1847 = vunpack.c.h.b16 %v1842
        %v1848 = vunpack.c.l.b16 %v1843
        %v1849 = vpack.c.b16 %v1846, %v1846
        %v1850 = vpack.c.b16 %v1847, %v1847
        %v1851 = vpack.c.b16 %v1848, %v1848
        %1852 = vrot.lane.b32.xlu0 %v1849, 48
        %v1853 = vpop.permute.xlu0 %1852
        %1854 = vrot.lane.b32.xlu0 %v1850, 48
        %v1855 = vpop.permute.xlu0 %1854
        %1856 = vrot.lane.b32.xlu0 %v1851, 48
        %v1857 = vpop.permute.xlu0 %1856
        %vm1861 = vcmask 519552
        %1862 = vst.msk [vmem:[#allocation3] sm:$0xf] %vm1861, %v1853
        %1863 = vst.msk [vmem:[#allocation3 + $0x4] sm:$0xf] %vm1861, %v1855
        %vm1864 = vcmask 516480
        %vm1865 = vmand %vm1864, %vm1284
        %v1866 = vld [vmem:[#allocation3 + $0x8] sm:$0x1]
        %v1867 = vsel %vm1865, %v1857, %v1866
        %1868 = vst [vmem:[#allocation3 + $0x8] sm:$0x1] %v1867
        %v1869 = vld [vmem:[#allocation3] sm:$0xf]
        %v1870 = vld [vmem:[#allocation3 + $0x4] sm:$0xf]
        %v1871 = vld [vmem:[#allocation3 + $0x8] sm:$0x1]
        %v1872 = vld [vmem:[%s796] sm:$0xf]
        %v1873 = vld [vmem:[%s796 + $0x4] sm:$0xf]
        %v1874 = vld [vmem:[%s796 + $0x8] sm:$0xf]
        %v1875 = vld [vmem:[%s796 + $0xc] sm:$0xf]
        %v1876 = vld [vmem:[%s796 + $0x10] sm:$0xf]
        %v1877 = vld [vmem:[%s796 + $0x14] sm:$0xf]
        %v1878 = vld [vmem:[%s796 + $0x18] sm:$0xf]
        %v1879 = vld [vmem:[%s796 + $0x1c] sm:$0xf]
        %v1880 = vld [vmem:[%s799] sm:$0x1]
        %v1882 = vlaneseq
        %v1883 = vshrl.u32 %v1882, 7
        %v1884 = vsub.s32 0, %v1883
        %v1885 = vrot.slane %v1880, %v1884
        %v1890 = vunpack.c.l.b16 %v1869
        %v1891 = vunpack.c.l.b16 %v1870
        %v1892 = vunpack.c.l.b16 %v1871
        %v1893 = vpack.c.b16 %v1891, %v1890
        %v1894 = vpack.c.b16 %v1892, %v1892
        %v1903 = vunpack.c.l.b16 %v1872
        %v1904 = vunpack.c.l.b16 %v1873
        %v1905 = vunpack.c.l.b16 %v1874
        %v1906 = vunpack.c.l.b16 %v1875
        %v1907 = vunpack.c.l.b16 %v1876
        %v1908 = vunpack.c.l.b16 %v1877
        %v1909 = vunpack.c.l.b16 %v1878
        %v1910 = vunpack.c.l.b16 %v1879
        %v1911 = vpack.c.b16 %v1904, %v1903
        %v1912 = vpack.c.b16 %v1906, %v1905
        %v1913 = vpack.c.b16 %v1908, %v1907
        %v1914 = vpack.c.b16 %v1910, %v1909
        %v1920 = vsel %vm915, %v1893, 0
        %v1923 = vsel %vm915, %v1894, 0
        %1925 = vmatprep.subr.bf16.mxu0 0
        %1926 = vmatpush1.bf16.msra.mxu0 0
        %1927 = vmatprep.subr.bf16.mxu0 0
        %1928 = vmatpush1.bf16.msra.mxu0 0
        %1929 = vmatprep.subr.bf16.mxu0 0
        %1930 = vmatpush1.bf16.msra.mxu0 0
        %1931 = vmatprep.subr.bf16.mxu0 0
        %1932 = vmatpush1.bf16.msra.mxu0 0
        %1933 = vmatprep.subr.bf16.mxu0 0
        %1934 = vmatpush1.bf16.msra.mxu0 %v1914
        %1935 = vmatprep.subr.bf16.mxu0 0
        %1936 = vmatpush1.bf16.msra.mxu0 %v1913
        %1937 = vmatprep.subr.bf16.mxu0 0
        %1938 = vmatpush1.bf16.msra.mxu0 %v1912
        %1939 = vmatprep.subr.bf16.mxu0 0
        %1940 = vmatpush1.bf16.msra.mxu0 %v1911
        %1941 = vmatprep.subr.bf16.mxu0 0
        %1942 = vmatpush2.bf16.msra.mxu0 0
        %1943 = vmatprep.subr.bf16.mxu0 0
        %1944 = vmatpush2.bf16.msra.mxu0 0
        %1945 = vmatprep.subr.bf16.mxu0 0
        %1946 = vmatpush2.bf16.msra.mxu0 0
        %1947 = vmatprep.subr.bf16.mxu0 0
        %1948 = vmatpush2.bf16.msra.mxu0 0
        %1949 = vmatprep.subr.bf16.mxu0 0
        %1950 = vmatpush2.bf16.msra.mxu0 0
        %1951 = vmatprep.subr.bf16.mxu0 0
        %1952 = vmatpush2.bf16.msra.mxu0 0
        %1953 = vmatprep.subr.bf16.mxu0 0
        %1954 = vmatpush2.bf16.msra.mxu0 0
        %1955 = vmatprep.subr.bf16.mxu0 0
        %1956 = vmatpush2.bf16.msra.mxu0 0
        %1957 = vmatprep.mubr.bf16.mxu0 0
        %1958 = vmatmul.mubr.bf16.gmra.mxu0 %v1920
        %v1959 = vpop.f32.mrf.mxu0
        %v1960 = vadd.f32 %v1885, %v1959
        %v1961 = vpop.f32.mrf.mxu0
        %v1962 = vpop.f32.mrf.mxu0
        %v1963 = vadd.f32 %v1885, %v1962
        %v1964 = vpop.f32.mrf.mxu0
        %1965 = vmatprep.mubr.bf16.mxu0 0
        %1966 = vmatmul.mubr.bf16.gmra.mxu0 %v1923
        %v1967 = vpop.f32.mrf.mxu0
        %v1968 = vadd.f32 %v1885, %v1967
        %v1969 = vpop.f32.mrf.mxu0
        %v1970 = vpop.f32.mrf.mxu0
        %v1971 = vpop.f32.mrf.mxu0
        %1972 = vdwg.mxu0
        %v1973 = vadd.f32 %v910, %v1960
        %v1974 = vadd.f32 %v911, %v1963
        %v1975 = vadd.f32 %v912, %v1968
        %v1976 = vld [vmem:[%s802] sm:$0x1]
        %v1977 = vld [vmem:[%s805] sm:$0x1]
        %v1978 = vsel %vm915, %v1973, 0.0
        %1979 = vadd.xlane.f32.xlu0 %v1978
        %v1980 = vpop.xlane.xlu0 %1979
        %v1981 = vsel %vm915, %v1974, 0.0
        %1982 = vadd.xlane.f32.xlu0 %v1981
        %v1983 = vpop.xlane.xlu0 %1982
        %v1984 = vsel %vm922, %v1975, 0.0
        %1985 = vadd.xlane.f32.xlu0 %v1984
        %v1986 = vpop.xlane.xlu0 %1985
        %v1987 = vmul.f32 %v1980, %v926
        %v1988 = vmul.f32 %v1983, %v926
        %v1989 = vmul.f32 %v1986, %v926
        %v1990 = vsub.f32 %v1973, %v1987
        %v1991 = vsub.f32 %v1974, %v1988
        %v1992 = vsub.f32 %v1975, %v1989
        %v1993 = vmul.f32 %v1990, %v1990
        %v1994 = vmul.f32 %v1991, %v1991
        %v1995 = vmul.f32 %v1992, %v1992
        %v1996 = vsel %vm915, %v1993, 0.0
        %1997 = vadd.xlane.f32.xlu0 %v1996
        %v1998 = vpop.xlane.xlu0 %1997
        %v1999 = vsel %vm915, %v1994, 0.0
        %2000 = vadd.xlane.f32.xlu0 %v1999
        %v2001 = vpop.xlane.xlu0 %2000
        %v2002 = vsel %vm922, %v1995, 0.0
        %2003 = vadd.xlane.f32.xlu0 %v2002
        %v2004 = vpop.xlane.xlu0 %2003
        %v2005 = vmul.f32 %v1998, %v926
        %v2006 = vmul.f32 %v2001, %v926
        %v2007 = vmul.f32 %v2004, %v926
        %v2008 = vadd.f32 %v2005, 1e-05
        %v2009 = vadd.f32 %v2006, 1e-05
        %v2010 = vadd.f32 %v2007, 1e-05
        %v2011 = vrsqrt.pop %v2008
        %v2012 = vrsqrt.pop %v2009
        %v2013 = vrsqrt.pop %v2010
        %v2014 = vmul.f32 %v1990, %v2011
        %v2015 = vmul.f32 %v1991, %v2012
        %v2016 = vmul.f32 %v1992, %v2013
        %v2018 = vlaneseq
        %v2019 = vshrl.u32 %v2018, 7
        %v2020 = vsub.s32 0, %v2019
        %v2021 = vrot.slane %v1976, %v2020
        %v2023 = vmul.f32 %v2014, %v2021
        %v2024 = vmul.f32 %v2015, %v2021
        %v2025 = vmul.f32 %v2016, %v2021
        %v2027 = vlaneseq
        %v2028 = vshrl.u32 %v2027, 7
        %v2029 = vsub.s32 0, %v2028
        %v2030 = vrot.slane %v1977, %v2029
        %v2032 = vadd.f32 %v2023, %v2030
        %v2033 = vadd.f32 %v2024, %v2030
        %v2034 = vadd.f32 %v2025, %v2030
        %v2035 = vpack.c.bf16 %v2033, %v2032
        %v2036 = vpack.c.bf16 %v2034, %v2034
        %2037 = vst.msk [vmem:[#allocation4] sm:$0xff] %vm915, %v1973
        %2038 = vst.msk [vmem:[#allocation4 + $0x8] sm:$0xff] %vm915, %v1974
        %2039 = vst.msk [vmem:[#allocation4 + $0x10] sm:$0x1] %vm922, %v1975
        loop: start=0, step=1, limit=2
        $region101: #{frozen_clip_image_embedder.3} parent=95 // loop_pre_header
          _
        $region102: #{frozen_clip_image_embedder.3} parent=95 // loop_header
          %s2041 = sphi 0, %s2045
          %p2042 = scmp.ge.s32.totalorder %s2041, 2
        $region103: #{frozen_clip_image_embedder.3} parent=95 // loop_header_branch
          %2044 = sbr.rel (%p2042) target = $region107
        $region104: #{frozen_clip_image_embedder.3} parent=95 // loop_body
          %s2046 = smul.u32 %s2041, 128
          %s2047 = sshra.s32 %s2046, 7
          %s2048 = sand.u32 %s2046, 127
          %s2049 = smul.addr %s2047, 4
          %s2050 = scalar_lea.vmem %s810, %s2049
          %v2051 = vld [vmem:[%s2050] sm:$0xf]
          %v2052 = vld [vmem:[%s2050 + $0x8] sm:$0xf]
          %v2053 = vld [vmem:[%s2050 + $0x10] sm:$0xf]
          %v2054 = vld [vmem:[%s2050 + $0x18] sm:$0xf]
          %v2055 = vld [vmem:[%s2050 + $0x20] sm:$0xf]
          %v2056 = vld [vmem:[%s2050 + $0x28] sm:$0xf]
          %v2057 = vld [vmem:[%s2050 + $0x30] sm:$0xf]
          %v2058 = vld [vmem:[%s2050 + $0x38] sm:$0xf]
          %s2059 = scalar_lea.vmem %s814, %s2047
          %v2060 = vld [vmem:[%s2059] sm:$0x1]
          %v2062 = vlaneseq
          %v2063 = vshrl.u32 %v2062, 7
          %v2064 = vsub.s32 0, %v2063
          %v2065 = vrot.slane %v2060, %v2064
          %v2075 = vunpack.c.l.b16 %v2051
          %v2076 = vunpack.c.l.b16 %v2052
          %v2077 = vunpack.c.l.b16 %v2053
          %v2078 = vunpack.c.l.b16 %v2054
          %v2079 = vunpack.c.l.b16 %v2055
          %v2080 = vunpack.c.l.b16 %v2056
          %v2081 = vunpack.c.l.b16 %v2057
          %v2082 = vunpack.c.l.b16 %v2058
          %v2083 = vpack.c.b16 %v2076, %v2075
          %v2084 = vpack.c.b16 %v2078, %v2077
          %v2085 = vpack.c.b16 %v2080, %v2079
          %v2086 = vpack.c.b16 %v2082, %v2081
          %v2092 = vsel %vm915, %v2035, 0
          %v2095 = vsel %vm915, %v2036, 0
          %2097 = vmatprep.subr.bf16.mxu0 0
          %2098 = vmatpush1.bf16.msra.mxu0 0
          %2099 = vmatprep.subr.bf16.mxu0 0
          %2100 = vmatpush1.bf16.msra.mxu0 0
          %2101 = vmatprep.subr.bf16.mxu0 0
          %2102 = vmatpush1.bf16.msra.mxu0 0
          %2103 = vmatprep.subr.bf16.mxu0 0
          %2104 = vmatpush1.bf16.msra.mxu0 0
          %2105 = vmatprep.subr.bf16.mxu0 0
          %2106 = vmatpush1.bf16.msra.mxu0 %v2086
          %2107 = vmatprep.subr.bf16.mxu0 0
          %2108 = vmatpush1.bf16.msra.mxu0 %v2085
          %2109 = vmatprep.subr.bf16.mxu0 0
          %2110 = vmatpush1.bf16.msra.mxu0 %v2084
          %2111 = vmatprep.subr.bf16.mxu0 0
          %2112 = vmatpush1.bf16.msra.mxu0 %v2083
          %2113 = vmatprep.subr.bf16.mxu0 0
          %2114 = vmatpush2.bf16.msra.mxu0 0
          %2115 = vmatprep.subr.bf16.mxu0 0
          %2116 = vmatpush2.bf16.msra.mxu0 0
          %2117 = vmatprep.subr.bf16.mxu0 0
          %2118 = vmatpush2.bf16.msra.mxu0 0
          %2119 = vmatprep.subr.bf16.mxu0 0
          %2120 = vmatpush2.bf16.msra.mxu0 0
          %2121 = vmatprep.subr.bf16.mxu0 0
          %2122 = vmatpush2.bf16.msra.mxu0 0
          %2123 = vmatprep.subr.bf16.mxu0 0
          %2124 = vmatpush2.bf16.msra.mxu0 0
          %2125 = vmatprep.subr.bf16.mxu0 0
          %2126 = vmatpush2.bf16.msra.mxu0 0
          %2127 = vmatprep.subr.bf16.mxu0 0
          %2128 = vmatpush2.bf16.msra.mxu0 0
          %2129 = vmatprep.mubr.bf16.mxu0 0
          %2130 = vmatmul.mubr.bf16.gmra.mxu0 %v2092
          %v2131 = vpop.f32.mrf.mxu0
          %v2132 = vadd.f32 %v2065, %v2131
          %v2133 = vpop.f32.mrf.mxu0
          %v2134 = vpop.f32.mrf.mxu0
          %v2135 = vadd.f32 %v2065, %v2134
          %v2136 = vpop.f32.mrf.mxu0
          %2137 = vmatprep.mubr.bf16.mxu0 0
          %2138 = vmatmul.mubr.bf16.gmra.mxu0 %v2095
          %v2139 = vpop.f32.mrf.mxu0
          %v2140 = vadd.f32 %v2065, %v2139
          %v2141 = vpop.f32.mrf.mxu0
          %v2142 = vpop.f32.mrf.mxu0
          %v2143 = vpop.f32.mrf.mxu0
          %2144 = vdwg.mxu0
          %v2145 = vpack.c.bf16 %v2135, %v2132
          %v2146 = vpack.c.bf16 %v2140, %v2140
          %v2147 = vmul.bf16 %v2145, 1071267802
          %v2148 = vmul.bf16 %v2146, 1071267802
          %v2149 = vxor.u32 %v2147, 2147516416
          %v2150 = vxor.u32 %v2148, 2147516416
          %v2152 = vmul.bf16 %v2149, 1069105081
          %v2153 = vpow.bf16.pop %v2152
          %v2155 = vmul.bf16 %v2150, 1069105081
          %v2156 = vpow.bf16.pop %v2155
          %v2157 = vadd.bf16 %v2153, 1065369472
          %v2158 = vadd.bf16 %v2156, 1065369472
          %v2159 = vrcp.bf16.pop %v2157
          %v2160 = vmul.bf16 1065369472, %v2159
          %v2161 = vrcp.bf16.pop %v2158
          %v2162 = vmul.bf16 1065369472, %v2161
          %v2163 = vunpack.c.l.bf16 %v2160
          %v2164 = vunpack.c.h.bf16 %v2160
          %v2165 = vunpack.c.l.bf16 %v2162
          %v2166 = vmul.f32 %v2132, %v2163
          %v2167 = vmul.f32 %v2135, %v2164
          %v2168 = vmul.f32 %v2140, %v2165
          %v2169 = vld [vmem:[#allocation4] sm:$0xff]
          %v2170 = vld [vmem:[#allocation4 + $0x8] sm:$0xff]
          %v2171 = vld [vmem:[#allocation4 + $0x10] sm:$0x1]
          %v2172 = vpack.c.bf16 %v2167, %v2166
          %v2173 = vpack.c.bf16 %v2168, %v2168
          %s2174 = sshra.s32 %s2046, 3
          %s2175 = sand.u32 %s2046, 7
          %s2176 = smul.addr %s2174, 4
          %s2177 = scalar_lea.vmem %s819, %s2176
          %v2178 = vld [vmem:[%s2177] sm:$0xf]
          %v2179 = vld [vmem:[%s2177 + $0x4] sm:$0xf]
          %v2180 = vld [vmem:[%s2177 + $0x8] sm:$0xf]
          %v2181 = vld [vmem:[%s2177 + $0xc] sm:$0xf]
          %v2182 = vld [vmem:[%s2177 + $0x10] sm:$0xf]
          %v2183 = vld [vmem:[%s2177 + $0x14] sm:$0xf]
          %v2184 = vld [vmem:[%s2177 + $0x18] sm:$0xf]
          %v2185 = vld [vmem:[%s2177 + $0x1c] sm:$0xf]
          %v2186 = vld [vmem:[%s2177 + $0x20] sm:$0xf]
          %v2187 = vld [vmem:[%s2177 + $0x24] sm:$0xf]
          %v2188 = vld [vmem:[%s2177 + $0x28] sm:$0xf]
          %v2189 = vld [vmem:[%s2177 + $0x2c] sm:$0xf]
          %v2190 = vld [vmem:[%s2177 + $0x30] sm:$0xf]
          %v2191 = vld [vmem:[%s2177 + $0x34] sm:$0xf]
          %v2192 = vld [vmem:[%s2177 + $0x38] sm:$0xf]
          %v2193 = vld [vmem:[%s2177 + $0x3c] sm:$0xf]
          %v2210 = vunpack.c.l.b16 %v2178
          %v2211 = vunpack.c.l.b16 %v2179
          %v2212 = vunpack.c.l.b16 %v2180
          %v2213 = vunpack.c.l.b16 %v2181
          %v2214 = vunpack.c.l.b16 %v2182
          %v2215 = vunpack.c.l.b16 %v2183
          %v2216 = vunpack.c.l.b16 %v2184
          %v2217 = vunpack.c.l.b16 %v2185
          %v2218 = vunpack.c.l.b16 %v2186
          %v2219 = vunpack.c.l.b16 %v2187
          %v2220 = vunpack.c.l.b16 %v2188
          %v2221 = vunpack.c.l.b16 %v2189
          %v2222 = vunpack.c.l.b16 %v2190
          %v2223 = vunpack.c.l.b16 %v2191
          %v2224 = vunpack.c.l.b16 %v2192
          %v2225 = vunpack.c.l.b16 %v2193
          %v2226 = vpack.c.b16 %v2211, %v2210
          %v2227 = vpack.c.b16 %v2213, %v2212
          %v2228 = vpack.c.b16 %v2215, %v2214
          %v2229 = vpack.c.b16 %v2217, %v2216
          %v2230 = vpack.c.b16 %v2219, %v2218
          %v2231 = vpack.c.b16 %v2221, %v2220
          %v2232 = vpack.c.b16 %v2223, %v2222
          %v2233 = vpack.c.b16 %v2225, %v2224
          %2242 = vmatprep.subr.bf16.mxu0 0
          %2243 = vmatpush1.bf16.msra.mxu0 %v2233
          %2244 = vmatprep.subr.bf16.mxu0 0
          %2245 = vmatpush1.bf16.msra.mxu0 %v2232
          %2246 = vmatprep.subr.bf16.mxu0 0
          %2247 = vmatpush1.bf16.msra.mxu0 %v2231
          %2248 = vmatprep.subr.bf16.mxu0 0
          %2249 = vmatpush1.bf16.msra.mxu0 %v2230
          %2250 = vmatprep.subr.bf16.mxu0 0
          %2251 = vmatpush1.bf16.msra.mxu0 %v2229
          %2252 = vmatprep.subr.bf16.mxu0 0
          %2253 = vmatpush1.bf16.msra.mxu0 %v2228
          %2254 = vmatprep.subr.bf16.mxu0 0
          %2255 = vmatpush1.bf16.msra.mxu0 %v2227
          %2256 = vmatprep.subr.bf16.mxu0 0
          %2257 = vmatpush1.bf16.msra.mxu0 %v2226
          %2258 = vmatprep.subr.bf16.mxu0 0
          %2259 = vmatpush2.bf16.msra.mxu0 0
          %2260 = vmatprep.subr.bf16.mxu0 0
          %2261 = vmatpush2.bf16.msra.mxu0 0
          %2262 = vmatprep.subr.bf16.mxu0 0
          %2263 = vmatpush2.bf16.msra.mxu0 0
          %2264 = vmatprep.subr.bf16.mxu0 0
          %2265 = vmatpush2.bf16.msra.mxu0 0
          %2266 = vmatprep.subr.bf16.mxu0 0
          %2267 = vmatpush2.bf16.msra.mxu0 0
          %2268 = vmatprep.subr.bf16.mxu0 0
          %2269 = vmatpush2.bf16.msra.mxu0 0
          %2270 = vmatprep.subr.bf16.mxu0 0
          %2271 = vmatpush2.bf16.msra.mxu0 0
          %2272 = vmatprep.subr.bf16.mxu0 0
          %2273 = vmatpush2.bf16.msra.mxu0 0
          %2274 = vmatprep.mubr.bf16.mxu0 0
          %2275 = vmatmul.mubr.bf16.gmra.mxu0 %v2172
          %v2276 = vpop.f32.mrf.mxu0
          %v2277 = vadd.f32 0.0, %v2276
          %v2278 = vpop.f32.mrf.mxu0
          %v2279 = vpop.f32.mrf.mxu0
          %v2280 = vadd.f32 0.0, %v2279
          %v2281 = vpop.f32.mrf.mxu0
          %2282 = vmatprep.mubr.bf16.mxu0 0
          %2283 = vmatmul.mubr.bf16.gmra.mxu0 %v2173
          %v2284 = vpop.f32.mrf.mxu0
          %v2285 = vadd.f32 0.0, %v2284
          %v2286 = vpop.f32.mrf.mxu0
          %v2287 = vpop.f32.mrf.mxu0
          %v2288 = vpop.f32.mrf.mxu0
          %2289 = vdwg.mxu0
          %v2290 = vadd.f32 %v2169, %v2277
          %v2291 = vadd.f32 %v2170, %v2280
          %v2292 = vadd.f32 %v2171, %v2285
          %2293 = vst.msk [vmem:[#allocation4] sm:$0xff] %vm915, %v2290
          %2294 = vst.msk [vmem:[#allocation4 + $0x8] sm:$0xff] %vm915, %v2291
          %2295 = vst.msk [vmem:[#allocation4 + $0x10] sm:$0x1] %vm922, %v2292
        $region105: #{frozen_clip_image_embedder.3} parent=95 // loop_footer
          %s2045 = sadd.s32 1, %s2041
        $region106: #{frozen_clip_image_embedder.3} parent=95 // loop_footer_branch
          %2040 = sbr.rel target = $region102
        $region107: #{frozen_clip_image_embedder.3} parent=95 // loop_exit
          _
        %v2296 = vld [vmem:[#allocation4] sm:$0xff]
        %v2297 = vld [vmem:[#allocation4 + $0x8] sm:$0xff]
        %v2298 = vld [vmem:[#allocation4 + $0x10] sm:$0x1]
        %v2299 = vld [vmem:[%s822] sm:$0x1]
        %v2301 = vlaneseq
        %v2302 = vshrl.u32 %v2301, 7
        %v2303 = vsub.s32 0, %v2302
        %v2304 = vrot.slane %v2299, %v2303
        %v2306 = vadd.f32 %v2296, %v2304
        %v2307 = vadd.f32 %v2297, %v2304
        %v2308 = vadd.f32 %v2298, %v2304
        %2309 = vst.msk [vmem:[%s909] sm:$0xff] %vm915, %v2306
        %2310 = vst.msk [vmem:[%s909 + $0x8] sm:$0xff] %vm915, %v2307
        %2311 = vst.msk [vmem:[%s909 + $0x10] sm:$0x1] %vm922, %v2308
        %p2312 = scmp.eq.s32.totalorder %s39, 1
        // Predicated region
        $region108: #{frozen_clip_image_embedder.3} parent=95 // pred_check
          %p2313 = pneg %p2312
        $region109: #{frozen_clip_image_embedder.3} parent=95 // pred_check_branch
          %2315 = sbr.rel (%p2313) target = $region111
        $region110: #{frozen_clip_image_embedder.3} parent=95 // pred_region
          %v2316 = vld [vmem:[%s16] sm:$0x1]
          %v2317 = vld [vmem:[%s17] sm:$0x1]
          %v2318 = vsel %vm922, %v2306, 0.0
          %2319 = vadd.xlane.f32.xlu0 %v2318
          %v2320 = vpop.xlane.xlu0 %2319
          %v2321 = vmul.f32 %v2320, %v926
          %v2322 = vsub.f32 %v2306, %v2321
          %v2323 = vmul.f32 %v2322, %v2322
          %v2324 = vsel %vm922, %v2323, 0.0
          %2325 = vadd.xlane.f32.xlu0 %v2324
          %v2326 = vpop.xlane.xlu0 %2325
          %v2327 = vmul.f32 %v2326, %v926
          %v2328 = vadd.f32 %v2327, 1e-05
          %v2329 = vrsqrt.pop %v2328
          %v2330 = vmul.f32 %v2322, %v2329
          %v2331 = vmul.f32 %v2330, %v2316
          %v2332 = vadd.f32 %v2331, %v2317
          %v2333 = vpack.c.bf16 %v2332, %v2332
          %v2334 = vld [vmem:[%s18] sm:$0xf]
          %v2335 = vld [vmem:[%s18 + $0x4] sm:$0xf]
          %v2336 = vld [vmem:[%s18 + $0x8] sm:$0xf]
          %v2337 = vld [vmem:[%s18 + $0xc] sm:$0xf]
          %v2338 = vld [vmem:[%s18 + $0x10] sm:$0xf]
          %v2339 = vld [vmem:[%s18 + $0x14] sm:$0xf]
          %v2340 = vld [vmem:[%s18 + $0x18] sm:$0xf]
          %v2341 = vld [vmem:[%s18 + $0x1c] sm:$0xf]
          %v2350 = vunpack.c.l.b16 %v2334
          %v2351 = vunpack.c.l.b16 %v2335
          %v2352 = vunpack.c.l.b16 %v2336
          %v2353 = vunpack.c.l.b16 %v2337
          %v2354 = vunpack.c.l.b16 %v2338
          %v2355 = vunpack.c.l.b16 %v2339
          %v2356 = vunpack.c.l.b16 %v2340
          %v2357 = vunpack.c.l.b16 %v2341
          %v2358 = vpack.c.b16 %v2351, %v2350
          %v2359 = vpack.c.b16 %v2353, %v2352
          %v2360 = vpack.c.b16 %v2355, %v2354
          %v2361 = vpack.c.b16 %v2357, %v2356
          %v2367 = vsel %vm915, %v2333, 0
          %2369 = vmatprep.subr.bf16.mxu0 0
          %2370 = vmatpush1.bf16.msra.mxu0 0
          %2371 = vmatprep.subr.bf16.mxu0 0
          %2372 = vmatpush1.bf16.msra.mxu0 0
          %2373 = vmatprep.subr.bf16.mxu0 0
          %2374 = vmatpush1.bf16.msra.mxu0 0
          %2375 = vmatprep.subr.bf16.mxu0 0
          %2376 = vmatpush1.bf16.msra.mxu0 0
          %2377 = vmatprep.subr.bf16.mxu0 0
          %2378 = vmatpush1.bf16.msra.mxu0 %v2361
          %2379 = vmatprep.subr.bf16.mxu0 0
          %2380 = vmatpush1.bf16.msra.mxu0 %v2360
          %2381 = vmatprep.subr.bf16.mxu0 0
          %2382 = vmatpush1.bf16.msra.mxu0 %v2359
          %2383 = vmatprep.subr.bf16.mxu0 0
          %2384 = vmatpush1.bf16.msra.mxu0 %v2358
          %2385 = vmatprep.subr.bf16.mxu0 0
          %2386 = vmatpush2.bf16.msra.mxu0 0
          %2387 = vmatprep.subr.bf16.mxu0 0
          %2388 = vmatpush2.bf16.msra.mxu0 0
          %2389 = vmatprep.subr.bf16.mxu0 0
          %2390 = vmatpush2.bf16.msra.mxu0 0
          %2391 = vmatprep.subr.bf16.mxu0 0
          %2392 = vmatpush2.bf16.msra.mxu0 0
          %2393 = vmatprep.subr.bf16.mxu0 0
          %2394 = vmatpush2.bf16.msra.mxu0 0
          %2395 = vmatprep.subr.bf16.mxu0 0
          %2396 = vmatpush2.bf16.msra.mxu0 0
          %2397 = vmatprep.subr.bf16.mxu0 0
          %2398 = vmatpush2.bf16.msra.mxu0 0
          %2399 = vmatprep.subr.bf16.mxu0 0
          %2400 = vmatpush2.bf16.msra.mxu0 0
          %2401 = vmatprep.mubr.bf16.mxu0 0
          %2402 = vmatmul.mubr.bf16.gmra.mxu0 %v2367
          %v2403 = vpop.f32.mrf.mxu0
          %v2404 = vadd.f32 0.0, %v2403
          %v2405 = vpop.f32.mrf.mxu0
          %v2406 = vpop.f32.mrf.mxu0
          %v2407 = vpop.f32.mrf.mxu0
          %2408 = vdwg.mxu0
          %s2409 = scalar_lea.vmem %s769, %s40 [#allocation5]
          %vm2410 = vcmask 122880
          %2411 = vst.msk [vmem:[%s2409] sm:$0x1] %vm2410, %v2404
        $region111: #{frozen_clip_image_embedder.3} parent=95 // pred_fallthru
          _
        %s2412 = sand.u32 %s524, 1
        %s2413 = scalar_lea.sflag [#allocation6], %s2412
        %s2414 = sand.u32 %s524, 1
        %s2415 = smul.addr %s2414, 2
        %s2416 = scalar_lea.vmem [#allocation5], %s2415
        // Predicated region
        $region112: #{frozen_clip_image_embedder.3} parent=95 // pred_check
          %p2417 = pneg %p534
        $region113: #{frozen_clip_image_embedder.3} parent=95 // pred_check_branch
          %2419 = sbr.rel (%p2417) target = $region115
        $region114: #{frozen_clip_image_embedder.3} parent=95 // pred_region
          %s2420 = smul.u32 2, %s38
          %s2422 = ssub.s32 32, 32
          %2423 = vsyncadd %s2413, %s2422
          %s2424 = smul.addr %s2420, 16
          %s2425 = scalar_lea.hbm %s19, %s2424
          %s2426 = sshll.u32 %s2416, 4
          %s2427 = int_to_ptr.vmem [resolvable:$true] %s2426
          %2432 = dma.vmem_to_hbm [thread:$0]  %s2427, 32, %s2425, %s2413, 16, 16, 1
        $region115: #{frozen_clip_image_embedder.3} parent=95 // pred_fallthru
          _
      $region96: #{frozen_clip_image_embedder.3} parent=5 // pred_fallthru
        _
      %p2433 = scmp.le.s32.totalorder 2, %s28
      // Predicated region
      $region116: #{frozen_clip_image_embedder.3} parent=5 // pred_check
        %p2434 = pneg %p2433
      $region117: #{frozen_clip_image_embedder.3} parent=5 // pred_check_branch
        %2436 = sbr.rel (%p2434) target = $region119
      $region118: #{frozen_clip_image_embedder.3} parent=5 // pred_region
        %s2437 = ssub.s32 %s28, 2
        // Predicated region
        $region120: #{frozen_clip_image_embedder.3} parent=118 // pred_check
          %p2438 = pneg %p540
        $region121: #{frozen_clip_image_embedder.3} parent=118 // pred_check_branch
          %2440 = sbr.rel (%p2438) target = $region123
        $region122: #{frozen_clip_image_embedder.3} parent=118 // pred_region
          %s2441 = sand.u32 %s525, 1
          %s2442 = scalar_lea.sflag [#allocation6], %s2441
          %s2443 = sand.u32 %s525, 1
          %s2444 = smul.addr %s2443, 2
          %s2445 = scalar_lea.vmem [#allocation5], %s2444
          %2446 = dma.done %s2442, 32
        $region123: #{frozen_clip_image_embedder.3} parent=118 // pred_fallthru
          _
      $region119: #{frozen_clip_image_embedder.3} parent=5 // pred_fallthru
        _
    $region6: #{frozen_clip_image_embedder.3} parent=1 // loop_footer
      %s32 = sadd.s32 1, %s28
    $region7: #{frozen_clip_image_embedder.3} parent=1 // loop_footer_branch
      %27 = sbr.rel target = $region3
    $region8: #{frozen_clip_image_embedder.3} parent=1 // loop_exit
      _
    %2447 = vsyncpa [#allocation6], 1
    %s2448 = scalar_lea.sflag [#allocation6], 1
    %2449 = vsyncpa %s2448, 1

</llo_original>
